<compile_context>
chip_gen: v6e
topology: v6e:2x2x1
jax: 0.10.0
libtpu: 0.0.40
codegen_flags: <defaults>
</compile_context>

<pallas_src>
import jax
import jax.numpy as jnp
from jax import lax
from jax.experimental import pallas as pl
from jax.experimental.pallas import tpu as pltpu

LANE = 128


def _round_up(n, m):
    return (n + m - 1) // m * m


def _choose_batch_tile(B, requested):
    """Batch tile: big enough to fill MXU rows, clamped to the real batch, >=2 grid
    steps when the batch allows (v7x has 2 TensorCores sharing the parallel axis)."""
    tb = min(_round_up(requested, 16), max(16, _round_up(B, 16)))
    if _round_up(B, tb) // tb < 2 and tb >= 32 and B > tb // 2:
        tb = max(16, _round_up(tb // 2, 16))
    return tb


def _vmem_limit_bytes(T, tb, E, Hp, out_itemsize):
    """Per-tile VMEM footprint (double-buffered pipelined operands + scratch + weights),
    with margin, clamped to the chip's VMEM capacity."""
    x_tile = T * tb * E * 2 * 2                       # bf16 input tile, 2 bufs
    out_tile = T * tb * 2 * Hp * out_itemsize * 2     # output tile, 2 bufs
    gx = 2 * T * tb * 4 * Hp * 2                      # bf16 gx scratch (both dirs)
    carries = 4 * tb * Hp * 4                         # f32 h/c scratch
    weights = 2 * (E * 8 * Hp * 2 + 2 * Hp * 4 * Hp * 2 + 8 * Hp * 4)
    lens = 2 * tb * LANE * 4
    needed = x_tile + out_tile + gx + carries + weights + lens
    try:
        cap = getattr(pltpu.get_tpu_info(), "vmem_capacity_bytes", None) or (64 << 20)
    except Exception:  # pragma: no cover - info query unavailable
        cap = 64 << 20
    limit = max(int(needed * 1.25) + (4 << 20), 32 << 20)
    return int(min(limit, max(int(cap) - (8 << 20), 32 << 20)))


def _bilstm_kernel(x_ref, len_ref, wih_ref, whh_f_ref, whh_b_ref, b_ref,
                   out_ref,
                   gx_f_ref, gx_b_ref, hf_ref, cf_ref, hb_ref, cb_ref):
    """One batch tile.

    x_ref    : [T, tb, E]      bf16 (time-major)
    len_ref  : [tb, 1]         int32
    wih_ref  : [E, 8*Hp]       bf16  (forward | backward input weights, gate-padded)
    whh_*    : [Hp, 4*Hp]      bf16
    b_ref    : [1, 8*Hp]       f32   (b_ih + b_hh, forward | backward)
    out_ref  : [T, tb, 2*Hp]   bf16  (out[..., :Hp] = forward, out[..., Hp:] = backward)
    gx_*     : [T, tb, 4*Hp]   bf16  scratch: hoisted input projection (+bias)
    hf/cf/hb/cb : [tb, Hp]     f32   scratch: recurrence carries
    """
    T, tb, E = x_ref.shape
    Hp = whh_f_ref.shape[0]
    G = 4 * Hp

    # ---- fused input projection: one MXU pass over x feeds both directions ----
    x_flat = x_ref[...].reshape(T * tb, E)                               # bf16
    proj = jnp.dot(x_flat, wih_ref[...],
                   preferred_element_type=jnp.float32) + b_ref[...]
    gx_f_ref[...] = proj[:, 0:G].reshape(T, tb, G).astype(gx_f_ref.dtype)
    gx_b_ref[...] = proj[:, G:2 * G].reshape(T, tb, G).astype(gx_b_ref.dtype)

    whh_f = whh_f_ref[...]
    whh_b = whh_b_ref[...]
    lens = len_ref[...]                                                  # [tb, 1] int32

    # zero initial state (packed-sequence semantics); carries live in VMEM scratch
    hf_ref[...] = jnp.zeros_like(hf_ref)
    cf_ref[...] = jnp.zeros_like(cf_ref)
    hb_ref[...] = jnp.zeros_like(hb_ref)
    cb_ref[...] = jnp.zeros_like(cb_ref)

    def lstm_cell(pre, c):
        # lane-aligned gate slices (Hp multiple of 128); PyTorch gate order i, f, g, o.
        i_g = jax.nn.sigmoid(pre[:, 0 * Hp:1 * Hp])
        f_g = jax.nn.sigmoid(pre[:, 1 * Hp:2 * Hp])
        g_g = jnp.tanh(pre[:, 2 * Hp:3 * Hp])
        o_g = jax.nn.sigmoid(pre[:, 3 * Hp:4 * Hp])
        c_new = f_g * c + i_g * g_g
        h_new = o_g * jnp.tanh(c_new)
        return h_new, c_new

    def step(s, carry):
        t_f = s                       # forward direction walks 0 .. T-1
        t_b = T - 1 - s               # backward direction walks T-1 .. 0

        h_f = hf_ref[...]
        c_f = cf_ref[...]
        h_b = hb_ref[...]
        c_b = cb_ref[...]

        # Two independent recurrent matmuls issued back-to-back (overlap on MXU).
        rec_f = jnp.dot(h_f.astype(jnp.bfloat16), whh_f,
                        preferred_element_type=jnp.float32)
        rec_b = jnp.dot(h_b.astype(jnp.bfloat16), whh_b,
                        preferred_element_type=jnp.float32)
        pre_f = gx_f_ref[t_f].astype(jnp.float32) + rec_f
        pre_b = gx_b_ref[t_b].astype(jnp.float32) + rec_b

        hn_f, cn_f = lstm_cell(pre_f, c_f)
        hn_b, cn_b = lstm_cell(pre_b, c_b)

        # packed-sequence semantics: outputs zero past length; carried state frozen
        # (backward state stays zero until t_b == L_b - 1 -> zero init at last token).
        valid_f = lens > t_f                                             # [tb, 1]
        valid_b = lens > t_b
        out_ref[t_f, :, 0:Hp] = jnp.where(valid_f, hn_f, 0.0).astype(out_ref.dtype)
        out_ref[t_b, :, Hp:2 * Hp] = jnp.where(valid_b, hn_b, 0.0).astype(out_ref.dtype)

        hf_ref[...] = jnp.where(valid_f, hn_f, h_f)
        cf_ref[...] = jnp.where(valid_f, cn_f, c_f)
        hb_ref[...] = jnp.where(valid_b, hn_b, h_b)
        cb_ref[...] = jnp.where(valid_b, cn_b, c_b)
        return carry

    lax.fori_loop(0, T, step, 0, unroll=(True if T <= 32 else 4))


def _pack_direction(w_ih, w_hh, b_ih, b_hh, Hp):
    """PyTorch per-direction LSTM params -> kernel layout with per-gate H->Hp padding.

    w_ih [4H, E], w_hh [4H, H], b_* [4H] -> wih [E,4Hp] bf16, whh [Hp,4Hp] bf16, b [1,4Hp] f32.
    Zero-padded gate columns give sigmoid(0)=0.5 / tanh(0)=0, so padded hidden units stay
    exactly 0 from a zero initial state and never leak into real gates.
    """
    H = w_hh.shape[1]
    E = w_ih.shape[1]
    ph = Hp - H
    wih = jnp.pad(w_ih.reshape(4, H, E), ((0, 0), (0, ph), (0, 0)))
    wih = wih.reshape(4 * Hp, E).T
    whh = jnp.pad(w_hh.reshape(4, H, H), ((0, 0), (0, ph), (0, ph)))
    whh = whh.reshape(4 * Hp, Hp).T
    b = jnp.pad((b_ih + b_hh).reshape(4, H), ((0, 0), (0, ph))).reshape(1, 4 * Hp)
    return wih.astype(jnp.bfloat16), whh.astype(jnp.bfloat16), b.astype(jnp.float32)


def bilstm_forward(x, lengths, params, *, batch_tile=128, interpret=False):
    """x: [B, T, E] float32, lengths: [B] int32 (max(lengths) == T). Returns [B, T, 2H]."""
    B, T, E = x.shape
    H = params["w_hh_f"].shape[1]
    Hp = _round_up(H, LANE)                      # lane-aligned hidden dim (per gate)
    tb = _choose_batch_tile(B, batch_tile)
    Bp = _round_up(B, tb)

    wih_f, whh_f, b_f = _pack_direction(params["w_ih_f"], params["w_hh_f"],
                                        params["b_ih_f"], params["b_hh_f"], Hp)
    wih_b, whh_b, b_b = _pack_direction(params["w_ih_b"], params["w_hh_b"],
                                        params["b_ih_b"], params["b_hh_b"], Hp)
    # Fused input-projection weights: [E, 8*Hp] = [forward | backward], bias likewise.
    wih_cat = jnp.concatenate([wih_f, wih_b], axis=1)
    b_cat = jnp.concatenate([b_f, b_b], axis=1)

    # Time-major, batch padded (padded rows get length 0 -> all-zero output), bf16 for MXU.
    x_pad = jnp.pad(x, ((0, Bp - B), (0, 0), (0, 0)))
    x_tbe = jnp.transpose(x_pad, (1, 0, 2)).astype(jnp.bfloat16)          # [T, Bp, E]
    len2d = jnp.pad(lengths.astype(jnp.int32), (0, Bp - B))[:, None]      # [Bp, 1]

    out_dtype = jnp.bfloat16
    vmem_limit = _vmem_limit_bytes(T, tb, E, Hp, jnp.dtype(out_dtype).itemsize)

    const2 = lambda i: (0, 0)
    out = pl.pallas_call(
        _bilstm_kernel,
        out_shape=jax.ShapeDtypeStruct((T, Bp, 2 * Hp), out_dtype),
        grid_spec=pltpu.PrefetchScalarGridSpec(
            num_scalar_prefetch=0,
            grid=(Bp // tb,),
            in_specs=[
                pl.BlockSpec((T, tb, E), lambda i: (0, i, 0)),            # x tile
                pl.BlockSpec((tb, 1), lambda i: (i, 0)),                  # lengths tile
                pl.BlockSpec(wih_cat.shape, const2),                      # weights stay resident
                pl.BlockSpec(whh_f.shape, const2),
                pl.BlockSpec(whh_b.shape, const2),
                pl.BlockSpec(b_cat.shape, const2),
            ],
            out_specs=pl.BlockSpec((T, tb, 2 * Hp), lambda i: (0, i, 0)),
            scratch_shapes=[
                pltpu.VMEM((T, tb, 4 * Hp), jnp.bfloat16),                # gx forward
                pltpu.VMEM((T, tb, 4 * Hp), jnp.bfloat16),                # gx backward
                pltpu.VMEM((tb, Hp), jnp.float32),                        # h forward
                pltpu.VMEM((tb, Hp), jnp.float32),                        # c forward
                pltpu.VMEM((tb, Hp), jnp.float32),                        # h backward
                pltpu.VMEM((tb, Hp), jnp.float32),                        # c backward
            ],
        ),
        compiler_params=pltpu.CompilerParams(
            dimension_semantics=("parallel",),
            vmem_limit_bytes=vmem_limit),
        interpret=interpret,
    )(x_tbe, len2d, wih_cat, whh_f, whh_b, b_cat)

    out = jnp.transpose(out, (1, 0, 2))[:B]                               # [B, T, 2Hp] bf16
    # strip hidden-dim padding; concat [forward | backward] like nn.LSTM(bidirectional=True)
    if Hp == H:
        res = out[..., :2 * H]
    else:
        res = jnp.concatenate([out[..., 0:H], out[..., Hp:Hp + H]], axis=-1)
    return res.astype(x.dtype)


def init_params(key, embeddings_dim, rnn_dim):
    """nn.LSTM(embeddings_dim, rnn_dim, bidirectional=True) params, PyTorch layout,
    uniform(-1/sqrt(H), 1/sqrt(H)) init, deterministic via PRNGKey."""
    E, H = embeddings_dim, rnn_dim
    k = 1.0 / jnp.sqrt(jnp.float32(H))
    keys = jax.random.split(key, 8)
    u = lambda kk, shape: jax.random.uniform(kk, shape, jnp.float32, -k, k)
    return {
        "w_ih_f": u(keys[0], (4 * H, E)), "w_hh_f": u(keys[1], (4 * H, H)),
        "b_ih_f": u(keys[2], (4 * H,)),   "b_hh_f": u(keys[3], (4 * H,)),
        "w_ih_b": u(keys[4], (4 * H, E)), "w_hh_b": u(keys[5], (4 * H, H)),
        "b_ih_b": u(keys[6], (4 * H,)),   "b_hh_b": u(keys[7], (4 * H,)),
    }


def bilstm_reference(x, lengths, params):
    """Pure-JAX f32 reference with the same packed-BiLSTM semantics."""
    B, T, E = x.shape
    H = params["w_hh_f"].shape[1]

    def run(w_ih, w_hh, b_ih, b_hh, reverse):
        wih, whh = w_ih.T, w_hh.T
        b = (b_ih + b_hh)[None, :]
        h = jnp.zeros((B, H), jnp.float32)
        c = jnp.zeros((B, H), jnp.float32)
        outs = [None] * T
        order = range(T - 1, -1, -1) if reverse else range(T)
        for t in order:
            gates = x[:, t, :] @ wih + h @ whh + b
            i_g = jax.nn.sigmoid(gates[:, 0:H])
            f_g = jax.nn.sigmoid(gates[:, H:2 * H])
            g_g = jnp.tanh(gates[:, 2 * H:3 * H])
            o_g = jax.nn.sigmoid(gates[:, 3 * H:4 * H])
            c_new = f_g * c + i_g * g_g
            h_new = o_g * jnp.tanh(c_new)
            valid = (lengths > t)[:, None]
            outs[t] = jnp.where(valid, h_new, 0.0)
            h = jnp.where(valid, h_new, h)
            c = jnp.where(valid, c_new, c)
        return jnp.stack(outs, axis=1)

    out_f = run(params["w_ih_f"], params["w_hh_f"],
                params["b_ih_f"], params["b_hh_f"], reverse=False)
    out_b = run(params["w_ih_b"], params["w_hh_b"],
                params["b_ih_b"], params["b_hh_b"], reverse=True)
    return jnp.concatenate([out_f, out_b], axis=-1)


if __name__ == "__main__":
    B, T, E, H = 2, 8, 16, 32          # batch, seq, embeddings_dim, rnn_dim
    key = jax.random.PRNGKey(0)
    k_x, k_p = jax.random.split(key)

    weighted_embeddings = jax.random.normal(k_x, (B, T, E), jnp.float32)
    # max(lengths) == T so the output length matches pad_packed_sequence exactly.
    sequence_lengths = jnp.array([8, 5], dtype=jnp.int32)
    params = init_params(k_p, E, H)

    fwd = jax.jit(bilstm_forward)
    out = jax.block_until_ready(fwd(weighted_embeddings, sequence_lengths, params))
    ref = bilstm_reference(weighted_embeddings, sequence_lengths, params)

    assert out.shape == (B, T, 2 * H), out.shape
    # bf16 matmuls / bf16 output inside the kernel vs f32 reference -> loosened tolerance.
    max_err = float(jnp.max(jnp.abs(out - ref)))
    assert jnp.allclose(out, ref, atol=4e-2, rtol=4e-2), f"mismatch, max_err={max_err}"
    print("KERNEL_OK")
</pallas_src>

<mosaic_0001>
module attributes {stable_mosaic.version = 11 : i64} {
  func.func @_bilstm_kernel(%arg0: i32, %arg1: memref<8x16x16xbf16, #tpu.memory_space<vmem>>, %arg2: memref<16x1xi32, #tpu.memory_space<vmem>>, %arg3: memref<16x1024xbf16, #tpu.memory_space<vmem>>, %arg4: memref<128x512xbf16, #tpu.memory_space<vmem>>, %arg5: memref<128x512xbf16, #tpu.memory_space<vmem>>, %arg6: memref<1x1024xf32, #tpu.memory_space<vmem>>, %arg7: memref<8x16x256xbf16, #tpu.memory_space<vmem>>, %arg8: memref<8x16x512xbf16, #tpu.memory_space<vmem>>, %arg9: memref<8x16x512xbf16, #tpu.memory_space<vmem>>, %arg10: memref<16x128xf32, #tpu.memory_space<vmem>>, %arg11: memref<16x128xf32, #tpu.memory_space<vmem>>, %arg12: memref<16x128xf32, #tpu.memory_space<vmem>>, %arg13: memref<16x128xf32, #tpu.memory_space<vmem>>) attributes {dimension_semantics = [#tpu.dimension_semantics<parallel>], iteration_bounds = array<i64: 1>, scalar_prefetch = 0 : i64, scratch_operands = 6 : i64, tpu.core_type = #tpu.core_type<tc>, window_params = [{transform_indices = @transform_0, window_bounds = array<i64: 8, 16, 16>}, {transform_indices = @transform_1, window_bounds = array<i64: 16, 1>}, {pipeline_mode = #tpu.pipeline_mode<synchronous>, transform_indices = @transform_2, window_bounds = array<i64: 16, 1024>}, {pipeline_mode = #tpu.pipeline_mode<synchronous>, transform_indices = @transform_3, window_bounds = array<i64: 128, 512>}, {pipeline_mode = #tpu.pipeline_mode<synchronous>, transform_indices = @transform_4, window_bounds = array<i64: 128, 512>}, {pipeline_mode = #tpu.pipeline_mode<synchronous>, transform_indices = @transform_5, window_bounds = array<i64: 1, 1024>}, {transform_indices = @transform_6, window_bounds = array<i64: 8, 16, 256>}]} {
    %c0 = arith.constant 0 : index
    %c0_0 = arith.constant 0 : index
    %c0_1 = arith.constant 0 : index
    %0 = vector.load %arg1[%c0, %c0_0, %c0_1] : memref<8x16x16xbf16, #tpu.memory_space<vmem>>, vector<8x16x16xbf16>
    %1 = vector.shape_cast %0 : vector<8x16x16xbf16> to vector<128x16xbf16>
    %c0_2 = arith.constant 0 : index
    %c0_3 = arith.constant 0 : index
    %2 = vector.load %arg3[%c0_2, %c0_3] : memref<16x1024xbf16, #tpu.memory_space<vmem>>, vector<16x1024xbf16>
    %cst = arith.constant dense<0.000000e+00> : vector<128x1024xf32>
    %3 = tpu.matmul %1, %2, %cst {dimension_numbers = #tpu.dot_dimension_numbers<[1], [0], [0], [1], [0, 0, 1, 1], [], []>} : vector<128x16xbf16>, vector<16x1024xbf16>, vector<128x1024xf32> -> vector<128x1024xf32>
    %c0_4 = arith.constant 0 : index
    %c0_5 = arith.constant 0 : index
    %4 = vector.load %arg6[%c0_4, %c0_5] : memref<1x1024xf32, #tpu.memory_space<vmem>>, vector<1x1024xf32>
    %5 = vector.broadcast %4 : vector<1x1024xf32> to vector<128x1024xf32>
    %6 = arith.addf %3, %5 : vector<128x1024xf32>
    %7 = vector.extract_strided_slice %6 {offsets = [0, 0], sizes = [128, 512], strides = [1, 1]} : vector<128x1024xf32> to vector<128x512xf32>
    %8 = vector.shape_cast %7 : vector<128x512xf32> to vector<8x16x512xf32>
    %9 = arith.truncf %8 : vector<8x16x512xf32> to vector<8x16x512xbf16>
    %c0_6 = arith.constant 0 : index
    %c0_7 = arith.constant 0 : index
    %c0_8 = arith.constant 0 : index
    %10 = vector.load %arg8[%c0_6, %c0_7, %c0_8] : memref<8x16x512xbf16, #tpu.memory_space<vmem>>, vector<8x16x512xbf16>
    tpu.vector_store %arg8[%c0_6, %c0_7, %c0_8], %9 {strides = array<i32>} : memref<8x16x512xbf16, #tpu.memory_space<vmem>>, vector<8x16x512xbf16>,
    %11 = vector.extract_strided_slice %6 {offsets = [0, 512], sizes = [128, 512], strides = [1, 1]} : vector<128x1024xf32> to vector<128x512xf32>
    %12 = vector.shape_cast %11 : vector<128x512xf32> to vector<8x16x512xf32>
    %13 = arith.truncf %12 : vector<8x16x512xf32> to vector<8x16x512xbf16>
    %c0_9 = arith.constant 0 : index
    %c0_10 = arith.constant 0 : index
    %c0_11 = arith.constant 0 : index
    %14 = vector.load %arg9[%c0_9, %c0_10, %c0_11] : memref<8x16x512xbf16, #tpu.memory_space<vmem>>, vector<8x16x512xbf16>
    tpu.vector_store %arg9[%c0_9, %c0_10, %c0_11], %13 {strides = array<i32>} : memref<8x16x512xbf16, #tpu.memory_space<vmem>>, vector<8x16x512xbf16>,
    %c0_12 = arith.constant 0 : index
    %c0_13 = arith.constant 0 : index
    %15 = vector.load %arg4[%c0_12, %c0_13] : memref<128x512xbf16, #tpu.memory_space<vmem>>, vector<128x512xbf16>
    %c0_14 = arith.constant 0 : index
    %c0_15 = arith.constant 0 : index
    %16 = vector.load %arg5[%c0_14, %c0_15] : memref<128x512xbf16, #tpu.memory_space<vmem>>, vector<128x512xbf16>
    %c0_16 = arith.constant 0 : index
    %c0_17 = arith.constant 0 : index
    %17 = vector.load %arg2[%c0_16, %c0_17] : memref<16x1xi32, #tpu.memory_space<vmem>>, vector<16x1xi32>
    %cst_18 = arith.constant 0.000000e+00 : f32
    %18 = vector.broadcast %cst_18 : f32 to vector<16x128xf32>
    %c0_19 = arith.constant 0 : index
    %c0_20 = arith.constant 0 : index
    %19 = vector.load %arg10[%c0_19, %c0_20] : memref<16x128xf32, #tpu.memory_space<vmem>>, vector<16x128xf32>
    tpu.vector_store %arg10[%c0_19, %c0_20], %18 {strides = array<i32>} : memref<16x128xf32, #tpu.memory_space<vmem>>, vector<16x128xf32>,
    %cst_21 = arith.constant 0.000000e+00 : f32
    %20 = vector.broadcast %cst_21 : f32 to vector<16x128xf32>
    %c0_22 = arith.constant 0 : index
    %c0_23 = arith.constant 0 : index
    %21 = vector.load %arg11[%c0_22, %c0_23] : memref<16x128xf32, #tpu.memory_space<vmem>>, vector<16x128xf32>
    tpu.vector_store %arg11[%c0_22, %c0_23], %20 {strides = array<i32>} : memref<16x128xf32, #tpu.memory_space<vmem>>, vector<16x128xf32>,
    %cst_24 = arith.constant 0.000000e+00 : f32
    %22 = vector.broadcast %cst_24 : f32 to vector<16x128xf32>
    %c0_25 = arith.constant 0 : index
    %c0_26 = arith.constant 0 : index
    %23 = vector.load %arg12[%c0_25, %c0_26] : memref<16x128xf32, #tpu.memory_space<vmem>>, vector<16x128xf32>
    tpu.vector_store %arg12[%c0_25, %c0_26], %22 {strides = array<i32>} : memref<16x128xf32, #tpu.memory_space<vmem>>, vector<16x128xf32>,
    %cst_27 = arith.constant 0.000000e+00 : f32
    %24 = vector.broadcast %cst_27 : f32 to vector<16x128xf32>
    %c0_28 = arith.constant 0 : index
    %c0_29 = arith.constant 0 : index
    %25 = vector.load %arg13[%c0_28, %c0_29] : memref<16x128xf32, #tpu.memory_space<vmem>>, vector<16x128xf32>
    tpu.vector_store %arg13[%c0_28, %c0_29], %24 {strides = array<i32>} : memref<16x128xf32, #tpu.memory_space<vmem>>, vector<16x128xf32>,
    %c0_i32 = arith.constant 0 : i32
    %c7_i32 = arith.constant 7 : i32
    %26 = arith.subi %c7_i32, %c0_i32 : i32
    %c0_30 = arith.constant 0 : index
    %c0_31 = arith.constant 0 : index
    %27 = vector.load %arg10[%c0_30, %c0_31] : memref<16x128xf32, #tpu.memory_space<vmem>>, vector<16x128xf32>
    %c0_32 = arith.constant 0 : index
    %c0_33 = arith.constant 0 : index
    %28 = vector.load %arg11[%c0_32, %c0_33] : memref<16x128xf32, #tpu.memory_space<vmem>>, vector<16x128xf32>
    %c0_34 = arith.constant 0 : index
    %c0_35 = arith.constant 0 : index
    %29 = vector.load %arg12[%c0_34, %c0_35] : memref<16x128xf32, #tpu.memory_space<vmem>>, vector<16x128xf32>
    %c0_36 = arith.constant 0 : index
    %c0_37 = arith.constant 0 : index
    %30 = vector.load %arg13[%c0_36, %c0_37] : memref<16x128xf32, #tpu.memory_space<vmem>>, vector<16x128xf32>
    %31 = arith.truncf %27 : vector<16x128xf32> to vector<16x128xbf16>
    %cst_38 = arith.constant dense<0.000000e+00> : vector<16x512xf32>
    %32 = tpu.matmul %31, %15, %cst_38 {dimension_numbers = #tpu.dot_dimension_numbers<[1], [0], [0], [1], [0, 0, 1, 1], [], []>} : vector<16x128xbf16>, vector<128x512xbf16>, vector<16x512xf32> -> vector<16x512xf32>
    %33 = arith.truncf %29 : vector<16x128xf32> to vector<16x128xbf16>
    %cst_39 = arith.constant dense<0.000000e+00> : vector<16x512xf32>
    %34 = tpu.matmul %33, %16, %cst_39 {dimension_numbers = #tpu.dot_dimension_numbers<[1], [0], [0], [1], [0, 0, 1, 1], [], []>} : vector<16x128xbf16>, vector<128x512xbf16>, vector<16x512xf32> -> vector<16x512xf32>
    %35 = arith.index_cast %c0_i32 : i32 to index
    %c0_40 = arith.constant 0 : index
    %c0_41 = arith.constant 0 : index
    %36 = vector.load %arg8[%35, %c0_40, %c0_41] : memref<8x16x512xbf16, #tpu.memory_space<vmem>>, vector<1x16x512xbf16>
    %37 = vector.shape_cast %36 : vector<1x16x512xbf16> to vector<16x512xbf16>
    %38 = arith.extf %37 : vector<16x512xbf16> to vector<16x512xf32>
    %39 = arith.addf %38, %32 : vector<16x512xf32>
    %40 = arith.index_cast %26 : i32 to index
    %c0_42 = arith.constant 0 : index
    %c0_43 = arith.constant 0 : index
    %41 = vector.load %arg9[%40, %c0_42, %c0_43] : memref<8x16x512xbf16, #tpu.memory_space<vmem>>, vector<1x16x512xbf16>
    %42 = vector.shape_cast %41 : vector<1x16x512xbf16> to vector<16x512xbf16>
    %43 = arith.extf %42 : vector<16x512xbf16> to vector<16x512xf32>
    %44 = arith.addf %43, %34 : vector<16x512xf32>
    %45 = vector.extract_strided_slice %39 {offsets = [0, 0], sizes = [16, 128], strides = [1, 1]} : vector<16x512xf32> to vector<16x128xf32>
    %46 = arith.negf %45 : vector<16x128xf32>
    %47 = math.exp %46 : vector<16x128xf32>
    %cst_44 = arith.constant 1.000000e+00 : f32
    %48 = vector.broadcast %cst_44 : f32 to vector<16x128xf32>
    %49 = arith.addf %48, %47 : vector<16x128xf32>
    %50 = arith.divf %48, %49 : vector<16x128xf32>
    %51 = vector.extract_strided_slice %39 {offsets = [0, 128], sizes = [16, 128], strides = [1, 1]} : vector<16x512xf32> to vector<16x128xf32>
    %52 = arith.negf %51 : vector<16x128xf32>
    %53 = math.exp %52 : vector<16x128xf32>
    %cst_45 = arith.constant 1.000000e+00 : f32
    %54 = vector.broadcast %cst_45 : f32 to vector<16x128xf32>
    %55 = arith.addf %54, %53 : vector<16x128xf32>
    %56 = arith.divf %54, %55 : vector<16x128xf32>
    %57 = vector.extract_strided_slice %39 {offsets = [0, 256], sizes = [16, 128], strides = [1, 1]} : vector<16x512xf32> to vector<16x128xf32>
    %58 = math.tanh %57 : vector<16x128xf32>
    %59 = vector.extract_strided_slice %39 {offsets = [0, 384], sizes = [16, 128], strides = [1, 1]} : vector<16x512xf32> to vector<16x128xf32>
    %60 = arith.negf %59 : vector<16x128xf32>
    %61 = math.exp %60 : vector<16x128xf32>
    %cst_46 = arith.constant 1.000000e+00 : f32
    %62 = vector.broadcast %cst_46 : f32 to vector<16x128xf32>
    %63 = arith.addf %62, %61 : vector<16x128xf32>
    %64 = arith.divf %62, %63 : vector<16x128xf32>
    %65 = arith.mulf %56, %28 : vector<16x128xf32>
    %66 = arith.mulf %50, %58 : vector<16x128xf32>
    %67 = arith.addf %65, %66 : vector<16x128xf32>
    %68 = math.tanh %67 : vector<16x128xf32>
    %69 = arith.mulf %64, %68 : vector<16x128xf32>
    %70 = vector.extract_strided_slice %44 {offsets = [0, 0], sizes = [16, 128], strides = [1, 1]} : vector<16x512xf32> to vector<16x128xf32>
    %71 = arith.negf %70 : vector<16x128xf32>
    %72 = math.exp %71 : vector<16x128xf32>
    %cst_47 = arith.constant 1.000000e+00 : f32
    %73 = vector.broadcast %cst_47 : f32 to vector<16x128xf32>
    %74 = arith.addf %73, %72 : vector<16x128xf32>
    %75 = arith.divf %73, %74 : vector<16x128xf32>
    %76 = vector.extract_strided_slice %44 {offsets = [0, 128], sizes = [16, 128], strides = [1, 1]} : vector<16x512xf32> to vector<16x128xf32>
    %77 = arith.negf %76 : vector<16x128xf32>
    %78 = math.exp %77 : vector<16x128xf32>
    %cst_48 = arith.constant 1.000000e+00 : f32
    %79 = vector.broadcast %cst_48 : f32 to vector<16x128xf32>
    %80 = arith.addf %79, %78 : vector<16x128xf32>
    %81 = arith.divf %79, %80 : vector<16x128xf32>
    %82 = vector.extract_strided_slice %44 {offsets = [0, 256], sizes = [16, 128], strides = [1, 1]} : vector<16x512xf32> to vector<16x128xf32>
    %83 = math.tanh %82 : vector<16x128xf32>
    %84 = vector.extract_strided_slice %44 {offsets = [0, 384], sizes = [16, 128], strides = [1, 1]} : vector<16x512xf32> to vector<16x128xf32>
    %85 = arith.negf %84 : vector<16x128xf32>
    %86 = math.exp %85 : vector<16x128xf32>
    %cst_49 = arith.constant 1.000000e+00 : f32
    %87 = vector.broadcast %cst_49 : f32 to vector<16x128xf32>
    %88 = arith.addf %87, %86 : vector<16x128xf32>
    %89 = arith.divf %87, %88 : vector<16x128xf32>
    %90 = arith.mulf %81, %30 : vector<16x128xf32>
    %91 = arith.mulf %75, %83 : vector<16x128xf32>
    %92 = arith.addf %90, %91 : vector<16x128xf32>
    %93 = math.tanh %92 : vector<16x128xf32>
    %94 = arith.mulf %89, %93 : vector<16x128xf32>
    %95 = vector.broadcast %c0_i32 : i32 to vector<16x1xi32>
    %96 = arith.cmpi sgt, %17, %95 : vector<16x1xi32>
    %97 = vector.broadcast %26 : i32 to vector<16x1xi32>
    %98 = arith.cmpi sgt, %17, %97 : vector<16x1xi32>
    %cst_50 = arith.constant 0.000000e+00 : f32
    %99 = vector.shape_cast %96 : vector<16x1xi1> to vector<16x1xi1>
    %100 = vector.broadcast %99 : vector<16x1xi1> to vector<16x128xi1>
    %101 = vector.broadcast %cst_50 : f32 to vector<16x128xf32>
    %102 = arith.select %100, %69, %101 : vector<16x128xi1>, vector<16x128xf32>
    %103 = arith.truncf %102 : vector<16x128xf32> to vector<16x128xbf16>
    %104 = arith.index_cast %c0_i32 : i32 to index
    %c0_51 = arith.constant 0 : index
    %c0_52 = arith.constant 0 : index
    %105 = vector.load %arg7[%104, %c0_51, %c0_52] : memref<8x16x256xbf16, #tpu.memory_space<vmem>>, vector<1x16x128xbf16>
    %106 = vector.shape_cast %105 : vector<1x16x128xbf16> to vector<16x128xbf16>
    %107 = vector.shape_cast %103 : vector<16x128xbf16> to vector<1x16x128xbf16>
    tpu.vector_store %arg7[%104, %c0_51, %c0_52], %107 {strides = array<i32>} : memref<8x16x256xbf16, #tpu.memory_space<vmem>>, vector<1x16x128xbf16>,
    %cst_53 = arith.constant 0.000000e+00 : f32
    %108 = vector.shape_cast %98 : vector<16x1xi1> to vector<16x1xi1>
    %109 = vector.broadcast %108 : vector<16x1xi1> to vector<16x128xi1>
    %110 = vector.broadcast %cst_53 : f32 to vector<16x128xf32>
    %111 = arith.select %109, %94, %110 : vector<16x128xi1>, vector<16x128xf32>
    %112 = arith.truncf %111 : vector<16x128xf32> to vector<16x128xbf16>
    %113 = arith.index_cast %26 : i32 to index
    %c0_54 = arith.constant 0 : index
    %c128 = arith.constant 128 : index
    %114 = vector.load %arg7[%113, %c0_54, %c128] : memref<8x16x256xbf16, #tpu.memory_space<vmem>>, vector<1x16x128xbf16>
    %115 = vector.shape_cast %114 : vector<1x16x128xbf16> to vector<16x128xbf16>
    %116 = vector.shape_cast %112 : vector<16x128xbf16> to vector<1x16x128xbf16>
    tpu.vector_store %arg7[%113, %c0_54, %c128], %116 {strides = array<i32>} : memref<8x16x256xbf16, #tpu.memory_space<vmem>>, vector<1x16x128xbf16>,
    %117 = vector.shape_cast %96 : vector<16x1xi1> to vector<16x1xi1>
    %118 = vector.broadcast %117 : vector<16x1xi1> to vector<16x128xi1>
    %119 = arith.select %118, %69, %27 : vector<16x128xi1>, vector<16x128xf32>
    %c0_55 = arith.constant 0 : index
    %c0_56 = arith.constant 0 : index
    %120 = vector.load %arg10[%c0_55, %c0_56] : memref<16x128xf32, #tpu.memory_space<vmem>>, vector<16x128xf32>
    tpu.vector_store %arg10[%c0_55, %c0_56], %119 {strides = array<i32>} : memref<16x128xf32, #tpu.memory_space<vmem>>, vector<16x128xf32>,
    %121 = vector.shape_cast %96 : vector<16x1xi1> to vector<16x1xi1>
    %122 = vector.broadcast %121 : vector<16x1xi1> to vector<16x128xi1>
    %123 = arith.select %122, %67, %28 : vector<16x128xi1>, vector<16x128xf32>
    %c0_57 = arith.constant 0 : index
    %c0_58 = arith.constant 0 : index
    %124 = vector.load %arg11[%c0_57, %c0_58] : memref<16x128xf32, #tpu.memory_space<vmem>>, vector<16x128xf32>
    tpu.vector_store %arg11[%c0_57, %c0_58], %123 {strides = array<i32>} : memref<16x128xf32, #tpu.memory_space<vmem>>, vector<16x128xf32>,
    %125 = vector.shape_cast %98 : vector<16x1xi1> to vector<16x1xi1>
    %126 = vector.broadcast %125 : vector<16x1xi1> to vector<16x128xi1>
    %127 = arith.select %126, %94, %29 : vector<16x128xi1>, vector<16x128xf32>
    %c0_59 = arith.constant 0 : index
    %c0_60 = arith.constant 0 : index
    %128 = vector.load %arg12[%c0_59, %c0_60] : memref<16x128xf32, #tpu.memory_space<vmem>>, vector<16x128xf32>
    tpu.vector_store %arg12[%c0_59, %c0_60], %127 {strides = array<i32>} : memref<16x128xf32, #tpu.memory_space<vmem>>, vector<16x128xf32>,
    %129 = vector.shape_cast %98 : vector<16x1xi1> to vector<16x1xi1>
    %130 = vector.broadcast %129 : vector<16x1xi1> to vector<16x128xi1>
    %131 = arith.select %130, %92, %30 : vector<16x128xi1>, vector<16x128xf32>
    %c0_61 = arith.constant 0 : index
    %c0_62 = arith.constant 0 : index
    %132 = vector.load %arg13[%c0_61, %c0_62] : memref<16x128xf32, #tpu.memory_space<vmem>>, vector<16x128xf32>
    tpu.vector_store %arg13[%c0_61, %c0_62], %131 {strides = array<i32>} : memref<16x128xf32, #tpu.memory_space<vmem>>, vector<16x128xf32>,
    %c1_i32 = arith.constant 1 : i32
    %c7_i32_63 = arith.constant 7 : i32
    %133 = arith.subi %c7_i32_63, %c1_i32 : i32
    %c0_64 = arith.constant 0 : index
    %c0_65 = arith.constant 0 : index
    %134 = vector.load %arg10[%c0_64, %c0_65] : memref<16x128xf32, #tpu.memory_space<vmem>>, vector<16x128xf32>
    %c0_66 = arith.constant 0 : index
    %c0_67 = arith.constant 0 : index
    %135 = vector.load %arg11[%c0_66, %c0_67] : memref<16x128xf32, #tpu.memory_space<vmem>>, vector<16x128xf32>
    %c0_68 = arith.constant 0 : index
    %c0_69 = arith.constant 0 : index
    %136 = vector.load %arg12[%c0_68, %c0_69] : memref<16x128xf32, #tpu.memory_space<vmem>>, vector<16x128xf32>
    %c0_70 = arith.constant 0 : index
    %c0_71 = arith.constant 0 : index
    %137 = vector.load %arg13[%c0_70, %c0_71] : memref<16x128xf32, #tpu.memory_space<vmem>>, vector<16x128xf32>
    %138 = arith.truncf %134 : vector<16x128xf32> to vector<16x128xbf16>
    %cst_72 = arith.constant dense<0.000000e+00> : vector<16x512xf32>
    %139 = tpu.matmul %138, %15, %cst_72 {dimension_numbers = #tpu.dot_dimension_numbers<[1], [0], [0], [1], [0, 0, 1, 1], [], []>} : vector<16x128xbf16>, vector<128x512xbf16>, vector<16x512xf32> -> vector<16x512xf32>
    %140 = arith.truncf %136 : vector<16x128xf32> to vector<16x128xbf16>
    %cst_73 = arith.constant dense<0.000000e+00> : vector<16x512xf32>
    %141 = tpu.matmul %140, %16, %cst_73 {dimension_numbers = #tpu.dot_dimension_numbers<[1], [0], [0], [1], [0, 0, 1, 1], [], []>} : vector<16x128xbf16>, vector<128x512xbf16>, vector<16x512xf32> -> vector<16x512xf32>
    %142 = arith.index_cast %c1_i32 : i32 to index
    %c0_74 = arith.constant 0 : index
    %c0_75 = arith.constant 0 : index
    %143 = vector.load %arg8[%142, %c0_74, %c0_75] : memref<8x16x512xbf16, #tpu.memory_space<vmem>>, vector<1x16x512xbf16>
    %144 = vector.shape_cast %143 : vector<1x16x512xbf16> to vector<16x512xbf16>
    %145 = arith.extf %144 : vector<16x512xbf16> to vector<16x512xf32>
    %146 = arith.addf %145, %139 : vector<16x512xf32>
    %147 = arith.index_cast %133 : i32 to index
    %c0_76 = arith.constant 0 : index
    %c0_77 = arith.constant 0 : index
    %148 = vector.load %arg9[%147, %c0_76, %c0_77] : memref<8x16x512xbf16, #tpu.memory_space<vmem>>, vector<1x16x512xbf16>
    %149 = vector.shape_cast %148 : vector<1x16x512xbf16> to vector<16x512xbf16>
    %150 = arith.extf %149 : vector<16x512xbf16> to vector<16x512xf32>
    %151 = arith.addf %150, %141 : vector<16x512xf32>
    %152 = vector.extract_strided_slice %146 {offsets = [0, 0], sizes = [16, 128], strides = [1, 1]} : vector<16x512xf32> to vector<16x128xf32>
    %153 = arith.negf %152 : vector<16x128xf32>
    %154 = math.exp %153 : vector<16x128xf32>
    %cst_78 = arith.constant 1.000000e+00 : f32
    %155 = vector.broadcast %cst_78 : f32 to vector<16x128xf32>
    %156 = arith.addf %155, %154 : vector<16x128xf32>
    %157 = arith.divf %155, %156 : vector<16x128xf32>
    %158 = vector.extract_strided_slice %146 {offsets = [0, 128], sizes = [16, 128], strides = [1, 1]} : vector<16x512xf32> to vector<16x128xf32>
    %159 = arith.negf %158 : vector<16x128xf32>
    %160 = math.exp %159 : vector<16x128xf32>
    %cst_79 = arith.constant 1.000000e+00 : f32
    %161 = vector.broadcast %cst_79 : f32 to vector<16x128xf32>
    %162 = arith.addf %161, %160 : vector<16x128xf32>
    %163 = arith.divf %161, %162 : vector<16x128xf32>
    %164 = vector.extract_strided_slice %146 {offsets = [0, 256], sizes = [16, 128], strides = [1, 1]} : vector<16x512xf32> to vector<16x128xf32>
    %165 = math.tanh %164 : vector<16x128xf32>
    %166 = vector.extract_strided_slice %146 {offsets = [0, 384], sizes = [16, 128], strides = [1, 1]} : vector<16x512xf32> to vector<16x128xf32>
    %167 = arith.negf %166 : vector<16x128xf32>
    %168 = math.exp %167 : vector<16x128xf32>
    %cst_80 = arith.constant 1.000000e+00 : f32
    %169 = vector.broadcast %cst_80 : f32 to vector<16x128xf32>
    %170 = arith.addf %169, %168 : vector<16x128xf32>
    %171 = arith.divf %169, %170 : vector<16x128xf32>
    %172 = arith.mulf %163, %135 : vector<16x128xf32>
    %173 = arith.mulf %157, %165 : vector<16x128xf32>
    %174 = arith.addf %172, %173 : vector<16x128xf32>
    %175 = math.tanh %174 : vector<16x128xf32>
    %176 = arith.mulf %171, %175 : vector<16x128xf32>
    %177 = vector.extract_strided_slice %151 {offsets = [0, 0], sizes = [16, 128], strides = [1, 1]} : vector<16x512xf32> to vector<16x128xf32>
    %178 = arith.negf %177 : vector<16x128xf32>
    %179 = math.exp %178 : vector<16x128xf32>
    %cst_81 = arith.constant 1.000000e+00 : f32
    %180 = vector.broadcast %cst_81 : f32 to vector<16x128xf32>
    %181 = arith.addf %180, %179 : vector<16x128xf32>
    %182 = arith.divf %180, %181 : vector<16x128xf32>
    %183 = vector.extract_strided_slice %151 {offsets = [0, 128], sizes = [16, 128], strides = [1, 1]} : vector<16x512xf32> to vector<16x128xf32>
    %184 = arith.negf %183 : vector<16x128xf32>
    %185 = math.exp %184 : vector<16x128xf32>
    %cst_82 = arith.constant 1.000000e+00 : f32
    %186 = vector.broadcast %cst_82 : f32 to vector<16x128xf32>
    %187 = arith.addf %186, %185 : vector<16x128xf32>
    %188 = arith.divf %186, %187 : vector<16x128xf32>
    %189 = vector.extract_strided_slice %151 {offsets = [0, 256], sizes = [16, 128], strides = [1, 1]} : vector<16x512xf32> to vector<16x128xf32>
    %190 = math.tanh %189 : vector<16x128xf32>
    %191 = vector.extract_strided_slice %151 {offsets = [0, 384], sizes = [16, 128], strides = [1, 1]} : vector<16x512xf32> to vector<16x128xf32>
    %192 = arith.negf %191 : vector<16x128xf32>
    %193 = math.exp %192 : vector<16x128xf32>
    %cst_83 = arith.constant 1.000000e+00 : f32
    %194 = vector.broadcast %cst_83 : f32 to vector<16x128xf32>
    %195 = arith.addf %194, %193 : vector<16x128xf32>
    %196 = arith.divf %194, %195 : vector<16x128xf32>
    %197 = arith.mulf %188, %137 : vector<16x128xf32>
    %198 = arith.mulf %182, %190 : vector<16x128xf32>
    %199 = arith.addf %197, %198 : vector<16x128xf32>
    %200 = math.tanh %199 : vector<16x128xf32>
    %201 = arith.mulf %196, %200 : vector<16x128xf32>
    %202 = vector.broadcast %c1_i32 : i32 to vector<16x1xi32>
    %203 = arith.cmpi sgt, %17, %202 : vector<16x1xi32>
    %204 = vector.broadcast %133 : i32 to vector<16x1xi32>
    %205 = arith.cmpi sgt, %17, %204 : vector<16x1xi32>
    %cst_84 = arith.constant 0.000000e+00 : f32
    %206 = vector.shape_cast %203 : vector<16x1xi1> to vector<16x1xi1>
    %207 = vector.broadcast %206 : vector<16x1xi1> to vector<16x128xi1>
    %208 = vector.broadcast %cst_84 : f32 to vector<16x128xf32>
    %209 = arith.select %207, %176, %208 : vector<16x128xi1>, vector<16x128xf32>
    %210 = arith.truncf %209 : vector<16x128xf32> to vector<16x128xbf16>
    %211 = arith.index_cast %c1_i32 : i32 to index
    %c0_85 = arith.constant 0 : index
    %c0_86 = arith.constant 0 : index
    %212 = vector.load %arg7[%211, %c0_85, %c0_86] : memref<8x16x256xbf16, #tpu.memory_space<vmem>>, vector<1x16x128xbf16>
    %213 = vector.shape_cast %212 : vector<1x16x128xbf16> to vector<16x128xbf16>
    %214 = vector.shape_cast %210 : vector<16x128xbf16> to vector<1x16x128xbf16>
    tpu.vector_store %arg7[%211, %c0_85, %c0_86], %214 {strides = array<i32>} : memref<8x16x256xbf16, #tpu.memory_space<vmem>>, vector<1x16x128xbf16>,
    %cst_87 = arith.constant 0.000000e+00 : f32
    %215 = vector.shape_cast %205 : vector<16x1xi1> to vector<16x1xi1>
    %216 = vector.broadcast %215 : vector<16x1xi1> to vector<16x128xi1>
    %217 = vector.broadcast %cst_87 : f32 to vector<16x128xf32>
    %218 = arith.select %216, %201, %217 : vector<16x128xi1>, vector<16x128xf32>
    %219 = arith.truncf %218 : vector<16x128xf32> to vector<16x128xbf16>
    %220 = arith.index_cast %133 : i32 to index
    %c0_88 = arith.constant 0 : index
    %c128_89 = arith.constant 128 : index
    %221 = vector.load %arg7[%220, %c0_88, %c128_89] : memref<8x16x256xbf16, #tpu.memory_space<vmem>>, vector<1x16x128xbf16>
    %222 = vector.shape_cast %221 : vector<1x16x128xbf16> to vector<16x128xbf16>
    %223 = vector.shape_cast %219 : vector<16x128xbf16> to vector<1x16x128xbf16>
    tpu.vector_store %arg7[%220, %c0_88, %c128_89], %223 {strides = array<i32>} : memref<8x16x256xbf16, #tpu.memory_space<vmem>>, vector<1x16x128xbf16>,
    %224 = vector.shape_cast %203 : vector<16x1xi1> to vector<16x1xi1>
    %225 = vector.broadcast %224 : vector<16x1xi1> to vector<16x128xi1>
    %226 = arith.select %225, %176, %134 : vector<16x128xi1>, vector<16x128xf32>
    %c0_90 = arith.constant 0 : index
    %c0_91 = arith.constant 0 : index
    %227 = vector.load %arg10[%c0_90, %c0_91] : memref<16x128xf32, #tpu.memory_space<vmem>>, vector<16x128xf32>
    tpu.vector_store %arg10[%c0_90, %c0_91], %226 {strides = array<i32>} : memref<16x128xf32, #tpu.memory_space<vmem>>, vector<16x128xf32>,
    %228 = vector.shape_cast %203 : vector<16x1xi1> to vector<16x1xi1>
    %229 = vector.broadcast %228 : vector<16x1xi1> to vector<16x128xi1>
    %230 = arith.select %229, %174, %135 : vector<16x128xi1>, vector<16x128xf32>
    %c0_92 = arith.constant 0 : index
    %c0_93 = arith.constant 0 : index
    %231 = vector.load %arg11[%c0_92, %c0_93] : memref<16x128xf32, #tpu.memory_space<vmem>>, vector<16x128xf32>
    tpu.vector_store %arg11[%c0_92, %c0_93], %230 {strides = array<i32>} : memref<16x128xf32, #tpu.memory_space<vmem>>, vector<16x128xf32>,
    %232 = vector.shape_cast %205 : vector<16x1xi1> to vector<16x1xi1>
    %233 = vector.broadcast %232 : vector<16x1xi1> to vector<16x128xi1>
    %234 = arith.select %233, %201, %136 : vector<16x128xi1>, vector<16x128xf32>
    %c0_94 = arith.constant 0 : index
    %c0_95 = arith.constant 0 : index
    %235 = vector.load %arg12[%c0_94, %c0_95] : memref<16x128xf32, #tpu.memory_space<vmem>>, vector<16x128xf32>
    tpu.vector_store %arg12[%c0_94, %c0_95], %234 {strides = array<i32>} : memref<16x128xf32, #tpu.memory_space<vmem>>, vector<16x128xf32>,
    %236 = vector.shape_cast %205 : vector<16x1xi1> to vector<16x1xi1>
    %237 = vector.broadcast %236 : vector<16x1xi1> to vector<16x128xi1>
    %238 = arith.select %237, %199, %137 : vector<16x128xi1>, vector<16x128xf32>
    %c0_96 = arith.constant 0 : index
    %c0_97 = arith.constant 0 : index
    %239 = vector.load %arg13[%c0_96, %c0_97] : memref<16x128xf32, #tpu.memory_space<vmem>>, vector<16x128xf32>
    tpu.vector_store %arg13[%c0_96, %c0_97], %238 {strides = array<i32>} : memref<16x128xf32, #tpu.memory_space<vmem>>, vector<16x128xf32>,
    %c2_i32 = arith.constant 2 : i32
    %c7_i32_98 = arith.constant 7 : i32
    %240 = arith.subi %c7_i32_98, %c2_i32 : i32
    %c0_99 = arith.constant 0 : index
    %c0_100 = arith.constant 0 : index
    %241 = vector.load %arg10[%c0_99, %c0_100] : memref<16x128xf32, #tpu.memory_space<vmem>>, vector<16x128xf32>
    %c0_101 = arith.constant 0 : index
    %c0_102 = arith.constant 0 : index
    %242 = vector.load %arg11[%c0_101, %c0_102] : memref<16x128xf32, #tpu.memory_space<vmem>>, vector<16x128xf32>
    %c0_103 = arith.constant 0 : index
    %c0_104 = arith.constant 0 : index
    %243 = vector.load %arg12[%c0_103, %c0_104] : memref<16x128xf32, #tpu.memory_space<vmem>>, vector<16x128xf32>
    %c0_105 = arith.constant 0 : index
    %c0_106 = arith.constant 0 : index
    %244 = vector.load %arg13[%c0_105, %c0_106] : memref<16x128xf32, #tpu.memory_space<vmem>>, vector<16x128xf32>
    %245 = arith.truncf %241 : vector<16x128xf32> to vector<16x128xbf16>
    %cst_107 = arith.constant dense<0.000000e+00> : vector<16x512xf32>
    %246 = tpu.matmul %245, %15, %cst_107 {dimension_numbers = #tpu.dot_dimension_numbers<[1], [0], [0], [1], [0, 0, 1, 1], [], []>} : vector<16x128xbf16>, vector<128x512xbf16>, vector<16x512xf32> -> vector<16x512xf32>
    %247 = arith.truncf %243 : vector<16x128xf32> to vector<16x128xbf16>
    %cst_108 = arith.constant dense<0.000000e+00> : vector<16x512xf32>
    %248 = tpu.matmul %247, %16, %cst_108 {dimension_numbers = #tpu.dot_dimension_numbers<[1], [0], [0], [1], [0, 0, 1, 1], [], []>} : vector<16x128xbf16>, vector<128x512xbf16>, vector<16x512xf32> -> vector<16x512xf32>
    %249 = arith.index_cast %c2_i32 : i32 to index
    %c0_109 = arith.constant 0 : index
    %c0_110 = arith.constant 0 : index
    %250 = vector.load %arg8[%249, %c0_109, %c0_110] : memref<8x16x512xbf16, #tpu.memory_space<vmem>>, vector<1x16x512xbf16>
    %251 = vector.shape_cast %250 : vector<1x16x512xbf16> to vector<16x512xbf16>
    %252 = arith.extf %251 : vector<16x512xbf16> to vector<16x512xf32>
    %253 = arith.addf %252, %246 : vector<16x512xf32>
    %254 = arith.index_cast %240 : i32 to index
    %c0_111 = arith.constant 0 : index
    %c0_112 = arith.constant 0 : index
    %255 = vector.load %arg9[%254, %c0_111, %c0_112] : memref<8x16x512xbf16, #tpu.memory_space<vmem>>, vector<1x16x512xbf16>
    %256 = vector.shape_cast %255 : vector<1x16x512xbf16> to vector<16x512xbf16>
    %257 = arith.extf %256 : vector<16x512xbf16> to vector<16x512xf32>
    %258 = arith.addf %257, %248 : vector<16x512xf32>
    %259 = vector.extract_strided_slice %253 {offsets = [0, 0], sizes = [16, 128], strides = [1, 1]} : vector<16x512xf32> to vector<16x128xf32>
    %260 = arith.negf %259 : vector<16x128xf32>
    %261 = math.exp %260 : vector<16x128xf32>
    %cst_113 = arith.constant 1.000000e+00 : f32
    %262 = vector.broadcast %cst_113 : f32 to vector<16x128xf32>
    %263 = arith.addf %262, %261 : vector<16x128xf32>
    %264 = arith.divf %262, %263 : vector<16x128xf32>
    %265 = vector.extract_strided_slice %253 {offsets = [0, 128], sizes = [16, 128], strides = [1, 1]} : vector<16x512xf32> to vector<16x128xf32>
    %266 = arith.negf %265 : vector<16x128xf32>
    %267 = math.exp %266 : vector<16x128xf32>
    %cst_114 = arith.constant 1.000000e+00 : f32
    %268 = vector.broadcast %cst_114 : f32 to vector<16x128xf32>
    %269 = arith.addf %268, %267 : vector<16x128xf32>
    %270 = arith.divf %268, %269 : vector<16x128xf32>
    %271 = vector.extract_strided_slice %253 {offsets = [0, 256], sizes = [16, 128], strides = [1, 1]} : vector<16x512xf32> to vector<16x128xf32>
    %272 = math.tanh %271 : vector<16x128xf32>
    %273 = vector.extract_strided_slice %253 {offsets = [0, 384], sizes = [16, 128], strides = [1, 1]} : vector<16x512xf32> to vector<16x128xf32>
    %274 = arith.negf %273 : vector<16x128xf32>
    %275 = math.exp %274 : vector<16x128xf32>
    %cst_115 = arith.constant 1.000000e+00 : f32
    %276 = vector.broadcast %cst_115 : f32 to vector<16x128xf32>
    %277 = arith.addf %276, %275 : vector<16x128xf32>
    %278 = arith.divf %276, %277 : vector<16x128xf32>
    %279 = arith.mulf %270, %242 : vector<16x128xf32>
    %280 = arith.mulf %264, %272 : vector<16x128xf32>
    %281 = arith.addf %279, %280 : vector<16x128xf32>
    %282 = math.tanh %281 : vector<16x128xf32>
    %283 = arith.mulf %278, %282 : vector<16x128xf32>
    %284 = vector.extract_strided_slice %258 {offsets = [0, 0], sizes = [16, 128], strides = [1, 1]} : vector<16x512xf32> to vector<16x128xf32>
    %285 = arith.negf %284 : vector<16x128xf32>
    %286 = math.exp %285 : vector<16x128xf32>
    %cst_116 = arith.constant 1.000000e+00 : f32
    %287 = vector.broadcast %cst_116 : f32 to vector<16x128xf32>
    %288 = arith.addf %287, %286 : vector<16x128xf32>
    %289 = arith.divf %287, %288 : vector<16x128xf32>
    %290 = vector.extract_strided_slice %258 {offsets = [0, 128], sizes = [16, 128], strides = [1, 1]} : vector<16x512xf32> to vector<16x128xf32>
    %291 = arith.negf %290 : vector<16x128xf32>
    %292 = math.exp %291 : vector<16x128xf32>
    %cst_117 = arith.constant 1.000000e+00 : f32
    %293 = vector.broadcast %cst_117 : f32 to vector<16x128xf32>
    %294 = arith.addf %293, %292 : vector<16x128xf32>
    %295 = arith.divf %293, %294 : vector<16x128xf32>
    %296 = vector.extract_strided_slice %258 {offsets = [0, 256], sizes = [16, 128], strides = [1, 1]} : vector<16x512xf32> to vector<16x128xf32>
    %297 = math.tanh %296 : vector<16x128xf32>
    %298 = vector.extract_strided_slice %258 {offsets = [0, 384], sizes = [16, 128], strides = [1, 1]} : vector<16x512xf32> to vector<16x128xf32>
    %299 = arith.negf %298 : vector<16x128xf32>
    %300 = math.exp %299 : vector<16x128xf32>
    %cst_118 = arith.constant 1.000000e+00 : f32
    %301 = vector.broadcast %cst_118 : f32 to vector<16x128xf32>
    %302 = arith.addf %301, %300 : vector<16x128xf32>
    %303 = arith.divf %301, %302 : vector<16x128xf32>
    %304 = arith.mulf %295, %244 : vector<16x128xf32>
    %305 = arith.mulf %289, %297 : vector<16x128xf32>
    %306 = arith.addf %304, %305 : vector<16x128xf32>
    %307 = math.tanh %306 : vector<16x128xf32>
    %308 = arith.mulf %303, %307 : vector<16x128xf32>
    %309 = vector.broadcast %c2_i32 : i32 to vector<16x1xi32>
    %310 = arith.cmpi sgt, %17, %309 : vector<16x1xi32>
    %311 = vector.broadcast %240 : i32 to vector<16x1xi32>
    %312 = arith.cmpi sgt, %17, %311 : vector<16x1xi32>
    %cst_119 = arith.constant 0.000000e+00 : f32
    %313 = vector.shape_cast %310 : vector<16x1xi1> to vector<16x1xi1>
    %314 = vector.broadcast %313 : vector<16x1xi1> to vector<16x128xi1>
    %315 = vector.broadcast %cst_119 : f32 to vector<16x128xf32>
    %316 = arith.select %314, %283, %315 : vector<16x128xi1>, vector<16x128xf32>
    %317 = arith.truncf %316 : vector<16x128xf32> to vector<16x128xbf16>
    %318 = arith.index_cast %c2_i32 : i32 to index
    %c0_120 = arith.constant 0 : index
    %c0_121 = arith.constant 0 : index
    %319 = vector.load %arg7[%318, %c0_120, %c0_121] : memref<8x16x256xbf16, #tpu.memory_space<vmem>>, vector<1x16x128xbf16>
    %320 = vector.shape_cast %319 : vector<1x16x128xbf16> to vector<16x128xbf16>
    %321 = vector.shape_cast %317 : vector<16x128xbf16> to vector<1x16x128xbf16>
    tpu.vector_store %arg7[%318, %c0_120, %c0_121], %321 {strides = array<i32>} : memref<8x16x256xbf16, #tpu.memory_space<vmem>>, vector<1x16x128xbf16>,
    %cst_122 = arith.constant 0.000000e+00 : f32
    %322 = vector.shape_cast %312 : vector<16x1xi1> to vector<16x1xi1>
    %323 = vector.broadcast %322 : vector<16x1xi1> to vector<16x128xi1>
    %324 = vector.broadcast %cst_122 : f32 to vector<16x128xf32>
    %325 = arith.select %323, %308, %324 : vector<16x128xi1>, vector<16x128xf32>
    %326 = arith.truncf %325 : vector<16x128xf32> to vector<16x128xbf16>
    %327 = arith.index_cast %240 : i32 to index
    %c0_123 = arith.constant 0 : index
    %c128_124 = arith.constant 128 : index
    %328 = vector.load %arg7[%327, %c0_123, %c128_124] : memref<8x16x256xbf16, #tpu.memory_space<vmem>>, vector<1x16x128xbf16>
    %329 = vector.shape_cast %328 : vector<1x16x128xbf16> to vector<16x128xbf16>
    %330 = vector.shape_cast %326 : vector<16x128xbf16> to vector<1x16x128xbf16>
    tpu.vector_store %arg7[%327, %c0_123, %c128_124], %330 {strides = array<i32>} : memref<8x16x256xbf16, #tpu.memory_space<vmem>>, vector<1x16x128xbf16>,
    %331 = vector.shape_cast %310 : vector<16x1xi1> to vector<16x1xi1>
    %332 = vector.broadcast %331 : vector<16x1xi1> to vector<16x128xi1>
    %333 = arith.select %332, %283, %241 : vector<16x128xi1>, vector<16x128xf32>
    %c0_125 = arith.constant 0 : index
    %c0_126 = arith.constant 0 : index
    %334 = vector.load %arg10[%c0_125, %c0_126] : memref<16x128xf32, #tpu.memory_space<vmem>>, vector<16x128xf32>
    tpu.vector_store %arg10[%c0_125, %c0_126], %333 {strides = array<i32>} : memref<16x128xf32, #tpu.memory_space<vmem>>, vector<16x128xf32>,
    %335 = vector.shape_cast %310 : vector<16x1xi1> to vector<16x1xi1>
    %336 = vector.broadcast %335 : vector<16x1xi1> to vector<16x128xi1>
    %337 = arith.select %336, %281, %242 : vector<16x128xi1>, vector<16x128xf32>
    %c0_127 = arith.constant 0 : index
    %c0_128 = arith.constant 0 : index
    %338 = vector.load %arg11[%c0_127, %c0_128] : memref<16x128xf32, #tpu.memory_space<vmem>>, vector<16x128xf32>
    tpu.vector_store %arg11[%c0_127, %c0_128], %337 {strides = array<i32>} : memref<16x128xf32, #tpu.memory_space<vmem>>, vector<16x128xf32>,
    %339 = vector.shape_cast %312 : vector<16x1xi1> to vector<16x1xi1>
    %340 = vector.broadcast %339 : vector<16x1xi1> to vector<16x128xi1>
    %341 = arith.select %340, %308, %243 : vector<16x128xi1>, vector<16x128xf32>
    %c0_129 = arith.constant 0 : index
    %c0_130 = arith.constant 0 : index
    %342 = vector.load %arg12[%c0_129, %c0_130] : memref<16x128xf32, #tpu.memory_space<vmem>>, vector<16x128xf32>
    tpu.vector_store %arg12[%c0_129, %c0_130], %341 {strides = array<i32>} : memref<16x128xf32, #tpu.memory_space<vmem>>, vector<16x128xf32>,
    %343 = vector.shape_cast %312 : vector<16x1xi1> to vector<16x1xi1>
    %344 = vector.broadcast %343 : vector<16x1xi1> to vector<16x128xi1>
    %345 = arith.select %344, %306, %244 : vector<16x128xi1>, vector<16x128xf32>
    %c0_131 = arith.constant 0 : index
    %c0_132 = arith.constant 0 : index
    %346 = vector.load %arg13[%c0_131, %c0_132] : memref<16x128xf32, #tpu.memory_space<vmem>>, vector<16x128xf32>
    tpu.vector_store %arg13[%c0_131, %c0_132], %345 {strides = array<i32>} : memref<16x128xf32, #tpu.memory_space<vmem>>, vector<16x128xf32>,
    %c3_i32 = arith.constant 3 : i32
    %c7_i32_133 = arith.constant 7 : i32
    %347 = arith.subi %c7_i32_133, %c3_i32 : i32
    %c0_134 = arith.constant 0 : index
    %c0_135 = arith.constant 0 : index
    %348 = vector.load %arg10[%c0_134, %c0_135] : memref<16x128xf32, #tpu.memory_space<vmem>>, vector<16x128xf32>
    %c0_136 = arith.constant 0 : index
    %c0_137 = arith.constant 0 : index
    %349 = vector.load %arg11[%c0_136, %c0_137] : memref<16x128xf32, #tpu.memory_space<vmem>>, vector<16x128xf32>
    %c0_138 = arith.constant 0 : index
    %c0_139 = arith.constant 0 : index
    %350 = vector.load %arg12[%c0_138, %c0_139] : memref<16x128xf32, #tpu.memory_space<vmem>>, vector<16x128xf32>
    %c0_140 = arith.constant 0 : index
    %c0_141 = arith.constant 0 : index
    %351 = vector.load %arg13[%c0_140, %c0_141] : memref<16x128xf32, #tpu.memory_space<vmem>>, vector<16x128xf32>
    %352 = arith.truncf %348 : vector<16x128xf32> to vector<16x128xbf16>
    %cst_142 = arith.constant dense<0.000000e+00> : vector<16x512xf32>
    %353 = tpu.matmul %352, %15, %cst_142 {dimension_numbers = #tpu.dot_dimension_numbers<[1], [0], [0], [1], [0, 0, 1, 1], [], []>} : vector<16x128xbf16>, vector<128x512xbf16>, vector<16x512xf32> -> vector<16x512xf32>
    %354 = arith.truncf %350 : vector<16x128xf32> to vector<16x128xbf16>
    %cst_143 = arith.constant dense<0.000000e+00> : vector<16x512xf32>
    %355 = tpu.matmul %354, %16, %cst_143 {dimension_numbers = #tpu.dot_dimension_numbers<[1], [0], [0], [1], [0, 0, 1, 1], [], []>} : vector<16x128xbf16>, vector<128x512xbf16>, vector<16x512xf32> -> vector<16x512xf32>
    %356 = arith.index_cast %c3_i32 : i32 to index
    %c0_144 = arith.constant 0 : index
    %c0_145 = arith.constant 0 : index
    %357 = vector.load %arg8[%356, %c0_144, %c0_145] : memref<8x16x512xbf16, #tpu.memory_space<vmem>>, vector<1x16x512xbf16>
    %358 = vector.shape_cast %357 : vector<1x16x512xbf16> to vector<16x512xbf16>
    %359 = arith.extf %358 : vector<16x512xbf16> to vector<16x512xf32>
    %360 = arith.addf %359, %353 : vector<16x512xf32>
    %361 = arith.index_cast %347 : i32 to index
    %c0_146 = arith.constant 0 : index
    %c0_147 = arith.constant 0 : index
    %362 = vector.load %arg9[%361, %c0_146, %c0_147] : memref<8x16x512xbf16, #tpu.memory_space<vmem>>, vector<1x16x512xbf16>
    %363 = vector.shape_cast %362 : vector<1x16x512xbf16> to vector<16x512xbf16>
    %364 = arith.extf %363 : vector<16x512xbf16> to vector<16x512xf32>
    %365 = arith.addf %364, %355 : vector<16x512xf32>
    %366 = vector.extract_strided_slice %360 {offsets = [0, 0], sizes = [16, 128], strides = [1, 1]} : vector<16x512xf32> to vector<16x128xf32>
    %367 = arith.negf %366 : vector<16x128xf32>
    %368 = math.exp %367 : vector<16x128xf32>
    %cst_148 = arith.constant 1.000000e+00 : f32
    %369 = vector.broadcast %cst_148 : f32 to vector<16x128xf32>
    %370 = arith.addf %369, %368 : vector<16x128xf32>
    %371 = arith.divf %369, %370 : vector<16x128xf32>
    %372 = vector.extract_strided_slice %360 {offsets = [0, 128], sizes = [16, 128], strides = [1, 1]} : vector<16x512xf32> to vector<16x128xf32>
    %373 = arith.negf %372 : vector<16x128xf32>
    %374 = math.exp %373 : vector<16x128xf32>
    %cst_149 = arith.constant 1.000000e+00 : f32
    %375 = vector.broadcast %cst_149 : f32 to vector<16x128xf32>
    %376 = arith.addf %375, %374 : vector<16x128xf32>
    %377 = arith.divf %375, %376 : vector<16x128xf32>
    %378 = vector.extract_strided_slice %360 {offsets = [0, 256], sizes = [16, 128], strides = [1, 1]} : vector<16x512xf32> to vector<16x128xf32>
    %379 = math.tanh %378 : vector<16x128xf32>
    %380 = vector.extract_strided_slice %360 {offsets = [0, 384], sizes = [16, 128], strides = [1, 1]} : vector<16x512xf32> to vector<16x128xf32>
    %381 = arith.negf %380 : vector<16x128xf32>
    %382 = math.exp %381 : vector<16x128xf32>
    %cst_150 = arith.constant 1.000000e+00 : f32
    %383 = vector.broadcast %cst_150 : f32 to vector<16x128xf32>
    %384 = arith.addf %383, %382 : vector<16x128xf32>
    %385 = arith.divf %383, %384 : vector<16x128xf32>
    %386 = arith.mulf %377, %349 : vector<16x128xf32>
    %387 = arith.mulf %371, %379 : vector<16x128xf32>
    %388 = arith.addf %386, %387 : vector<16x128xf32>
    %389 = math.tanh %388 : vector<16x128xf32>
    %390 = arith.mulf %385, %389 : vector<16x128xf32>
    %391 = vector.extract_strided_slice %365 {offsets = [0, 0], sizes = [16, 128], strides = [1, 1]} : vector<16x512xf32> to vector<16x128xf32>
    %392 = arith.negf %391 : vector<16x128xf32>
    %393 = math.exp %392 : vector<16x128xf32>
    %cst_151 = arith.constant 1.000000e+00 : f32
    %394 = vector.broadcast %cst_151 : f32 to vector<16x128xf32>
    %395 = arith.addf %394, %393 : vector<16x128xf32>
    %396 = arith.divf %394, %395 : vector<16x128xf32>
    %397 = vector.extract_strided_slice %365 {offsets = [0, 128], sizes = [16, 128], strides = [1, 1]} : vector<16x512xf32> to vector<16x128xf32>
    %398 = arith.negf %397 : vector<16x128xf32>
    %399 = math.exp %398 : vector<16x128xf32>
    %cst_152 = arith.constant 1.000000e+00 : f32
    %400 = vector.broadcast %cst_152 : f32 to vector<16x128xf32>
    %401 = arith.addf %400, %399 : vector<16x128xf32>
    %402 = arith.divf %400, %401 : vector<16x128xf32>
    %403 = vector.extract_strided_slice %365 {offsets = [0, 256], sizes = [16, 128], strides = [1, 1]} : vector<16x512xf32> to vector<16x128xf32>
    %404 = math.tanh %403 : vector<16x128xf32>
    %405 = vector.extract_strided_slice %365 {offsets = [0, 384], sizes = [16, 128], strides = [1, 1]} : vector<16x512xf32> to vector<16x128xf32>
    %406 = arith.negf %405 : vector<16x128xf32>
    %407 = math.exp %406 : vector<16x128xf32>
    %cst_153 = arith.constant 1.000000e+00 : f32
    %408 = vector.broadcast %cst_153 : f32 to vector<16x128xf32>
    %409 = arith.addf %408, %407 : vector<16x128xf32>
    %410 = arith.divf %408, %409 : vector<16x128xf32>
    %411 = arith.mulf %402, %351 : vector<16x128xf32>
    %412 = arith.mulf %396, %404 : vector<16x128xf32>
    %413 = arith.addf %411, %412 : vector<16x128xf32>
    %414 = math.tanh %413 : vector<16x128xf32>
    %415 = arith.mulf %410, %414 : vector<16x128xf32>
    %416 = vector.broadcast %c3_i32 : i32 to vector<16x1xi32>
    %417 = arith.cmpi sgt, %17, %416 : vector<16x1xi32>
    %418 = vector.broadcast %347 : i32 to vector<16x1xi32>
    %419 = arith.cmpi sgt, %17, %418 : vector<16x1xi32>
    %cst_154 = arith.constant 0.000000e+00 : f32
    %420 = vector.shape_cast %417 : vector<16x1xi1> to vector<16x1xi1>
    %421 = vector.broadcast %420 : vector<16x1xi1> to vector<16x128xi1>
    %422 = vector.broadcast %cst_154 : f32 to vector<16x128xf32>
    %423 = arith.select %421, %390, %422 : vector<16x128xi1>, vector<16x128xf32>
    %424 = arith.truncf %423 : vector<16x128xf32> to vector<16x128xbf16>
    %425 = arith.index_cast %c3_i32 : i32 to index
    %c0_155 = arith.constant 0 : index
    %c0_156 = arith.constant 0 : index
    %426 = vector.load %arg7[%425, %c0_155, %c0_156] : memref<8x16x256xbf16, #tpu.memory_space<vmem>>, vector<1x16x128xbf16>
    %427 = vector.shape_cast %426 : vector<1x16x128xbf16> to vector<16x128xbf16>
    %428 = vector.shape_cast %424 : vector<16x128xbf16> to vector<1x16x128xbf16>
    tpu.vector_store %arg7[%425, %c0_155, %c0_156], %428 {strides = array<i32>} : memref<8x16x256xbf16, #tpu.memory_space<vmem>>, vector<1x16x128xbf16>,
    %cst_157 = arith.constant 0.000000e+00 : f32
    %429 = vector.shape_cast %419 : vector<16x1xi1> to vector<16x1xi1>
    %430 = vector.broadcast %429 : vector<16x1xi1> to vector<16x128xi1>
    %431 = vector.broadcast %cst_157 : f32 to vector<16x128xf32>
    %432 = arith.select %430, %415, %431 : vector<16x128xi1>, vector<16x128xf32>
    %433 = arith.truncf %432 : vector<16x128xf32> to vector<16x128xbf16>
    %434 = arith.index_cast %347 : i32 to index
    %c0_158 = arith.constant 0 : index
    %c128_159 = arith.constant 128 : index
    %435 = vector.load %arg7[%434, %c0_158, %c128_159] : memref<8x16x256xbf16, #tpu.memory_space<vmem>>, vector<1x16x128xbf16>
    %436 = vector.shape_cast %435 : vector<1x16x128xbf16> to vector<16x128xbf16>
    %437 = vector.shape_cast %433 : vector<16x128xbf16> to vector<1x16x128xbf16>
    tpu.vector_store %arg7[%434, %c0_158, %c128_159], %437 {strides = array<i32>} : memref<8x16x256xbf16, #tpu.memory_space<vmem>>, vector<1x16x128xbf16>,
    %438 = vector.shape_cast %417 : vector<16x1xi1> to vector<16x1xi1>
    %439 = vector.broadcast %438 : vector<16x1xi1> to vector<16x128xi1>
    %440 = arith.select %439, %390, %348 : vector<16x128xi1>, vector<16x128xf32>
    %c0_160 = arith.constant 0 : index
    %c0_161 = arith.constant 0 : index
    %441 = vector.load %arg10[%c0_160, %c0_161] : memref<16x128xf32, #tpu.memory_space<vmem>>, vector<16x128xf32>
    tpu.vector_store %arg10[%c0_160, %c0_161], %440 {strides = array<i32>} : memref<16x128xf32, #tpu.memory_space<vmem>>, vector<16x128xf32>,
    %442 = vector.shape_cast %417 : vector<16x1xi1> to vector<16x1xi1>
    %443 = vector.broadcast %442 : vector<16x1xi1> to vector<16x128xi1>
    %444 = arith.select %443, %388, %349 : vector<16x128xi1>, vector<16x128xf32>
    %c0_162 = arith.constant 0 : index
    %c0_163 = arith.constant 0 : index
    %445 = vector.load %arg11[%c0_162, %c0_163] : memref<16x128xf32, #tpu.memory_space<vmem>>, vector<16x128xf32>
    tpu.vector_store %arg11[%c0_162, %c0_163], %444 {strides = array<i32>} : memref<16x128xf32, #tpu.memory_space<vmem>>, vector<16x128xf32>,
    %446 = vector.shape_cast %419 : vector<16x1xi1> to vector<16x1xi1>
    %447 = vector.broadcast %446 : vector<16x1xi1> to vector<16x128xi1>
    %448 = arith.select %447, %415, %350 : vector<16x128xi1>, vector<16x128xf32>
    %c0_164 = arith.constant 0 : index
    %c0_165 = arith.constant 0 : index
    %449 = vector.load %arg12[%c0_164, %c0_165] : memref<16x128xf32, #tpu.memory_space<vmem>>, vector<16x128xf32>
    tpu.vector_store %arg12[%c0_164, %c0_165], %448 {strides = array<i32>} : memref<16x128xf32, #tpu.memory_space<vmem>>, vector<16x128xf32>,
    %450 = vector.shape_cast %419 : vector<16x1xi1> to vector<16x1xi1>
    %451 = vector.broadcast %450 : vector<16x1xi1> to vector<16x128xi1>
    %452 = arith.select %451, %413, %351 : vector<16x128xi1>, vector<16x128xf32>
    %c0_166 = arith.constant 0 : index
    %c0_167 = arith.constant 0 : index
    %453 = vector.load %arg13[%c0_166, %c0_167] : memref<16x128xf32, #tpu.memory_space<vmem>>, vector<16x128xf32>
    tpu.vector_store %arg13[%c0_166, %c0_167], %452 {strides = array<i32>} : memref<16x128xf32, #tpu.memory_space<vmem>>, vector<16x128xf32>,
    %c4_i32 = arith.constant 4 : i32
    %c7_i32_168 = arith.constant 7 : i32
    %454 = arith.subi %c7_i32_168, %c4_i32 : i32
    %c0_169 = arith.constant 0 : index
    %c0_170 = arith.constant 0 : index
    %455 = vector.load %arg10[%c0_169, %c0_170] : memref<16x128xf32, #tpu.memory_space<vmem>>, vector<16x128xf32>
    %c0_171 = arith.constant 0 : index
    %c0_172 = arith.constant 0 : index
    %456 = vector.load %arg11[%c0_171, %c0_172] : memref<16x128xf32, #tpu.memory_space<vmem>>, vector<16x128xf32>
    %c0_173 = arith.constant 0 : index
    %c0_174 = arith.constant 0 : index
    %457 = vector.load %arg12[%c0_173, %c0_174] : memref<16x128xf32, #tpu.memory_space<vmem>>, vector<16x128xf32>
    %c0_175 = arith.constant 0 : index
    %c0_176 = arith.constant 0 : index
    %458 = vector.load %arg13[%c0_175, %c0_176] : memref<16x128xf32, #tpu.memory_space<vmem>>, vector<16x128xf32>
    %459 = arith.truncf %455 : vector<16x128xf32> to vector<16x128xbf16>
    %cst_177 = arith.constant dense<0.000000e+00> : vector<16x512xf32>
    %460 = tpu.matmul %459, %15, %cst_177 {dimension_numbers = #tpu.dot_dimension_numbers<[1], [0], [0], [1], [0, 0, 1, 1], [], []>} : vector<16x128xbf16>, vector<128x512xbf16>, vector<16x512xf32> -> vector<16x512xf32>
    %461 = arith.truncf %457 : vector<16x128xf32> to vector<16x128xbf16>
    %cst_178 = arith.constant dense<0.000000e+00> : vector<16x512xf32>
    %462 = tpu.matmul %461, %16, %cst_178 {dimension_numbers = #tpu.dot_dimension_numbers<[1], [0], [0], [1], [0, 0, 1, 1], [], []>} : vector<16x128xbf16>, vector<128x512xbf16>, vector<16x512xf32> -> vector<16x512xf32>
    %463 = arith.index_cast %c4_i32 : i32 to index
    %c0_179 = arith.constant 0 : index
    %c0_180 = arith.constant 0 : index
    %464 = vector.load %arg8[%463, %c0_179, %c0_180] : memref<8x16x512xbf16, #tpu.memory_space<vmem>>, vector<1x16x512xbf16>
    %465 = vector.shape_cast %464 : vector<1x16x512xbf16> to vector<16x512xbf16>
    %466 = arith.extf %465 : vector<16x512xbf16> to vector<16x512xf32>
    %467 = arith.addf %466, %460 : vector<16x512xf32>
    %468 = arith.index_cast %454 : i32 to index
    %c0_181 = arith.constant 0 : index
    %c0_182 = arith.constant 0 : index
    %469 = vector.load %arg9[%468, %c0_181, %c0_182] : memref<8x16x512xbf16, #tpu.memory_space<vmem>>, vector<1x16x512xbf16>
    %470 = vector.shape_cast %469 : vector<1x16x512xbf16> to vector<16x512xbf16>
    %471 = arith.extf %470 : vector<16x512xbf16> to vector<16x512xf32>
    %472 = arith.addf %471, %462 : vector<16x512xf32>
    %473 = vector.extract_strided_slice %467 {offsets = [0, 0], sizes = [16, 128], strides = [1, 1]} : vector<16x512xf32> to vector<16x128xf32>
    %474 = arith.negf %473 : vector<16x128xf32>
    %475 = math.exp %474 : vector<16x128xf32>
    %cst_183 = arith.constant 1.000000e+00 : f32
    %476 = vector.broadcast %cst_183 : f32 to vector<16x128xf32>
    %477 = arith.addf %476, %475 : vector<16x128xf32>
    %478 = arith.divf %476, %477 : vector<16x128xf32>
    %479 = vector.extract_strided_slice %467 {offsets = [0, 128], sizes = [16, 128], strides = [1, 1]} : vector<16x512xf32> to vector<16x128xf32>
    %480 = arith.negf %479 : vector<16x128xf32>
    %481 = math.exp %480 : vector<16x128xf32>
    %cst_184 = arith.constant 1.000000e+00 : f32
    %482 = vector.broadcast %cst_184 : f32 to vector<16x128xf32>
    %483 = arith.addf %482, %481 : vector<16x128xf32>
    %484 = arith.divf %482, %483 : vector<16x128xf32>
    %485 = vector.extract_strided_slice %467 {offsets = [0, 256], sizes = [16, 128], strides = [1, 1]} : vector<16x512xf32> to vector<16x128xf32>
    %486 = math.tanh %485 : vector<16x128xf32>
    %487 = vector.extract_strided_slice %467 {offsets = [0, 384], sizes = [16, 128], strides = [1, 1]} : vector<16x512xf32> to vector<16x128xf32>
    %488 = arith.negf %487 : vector<16x128xf32>
    %489 = math.exp %488 : vector<16x128xf32>
    %cst_185 = arith.constant 1.000000e+00 : f32
    %490 = vector.broadcast %cst_185 : f32 to vector<16x128xf32>
    %491 = arith.addf %490, %489 : vector<16x128xf32>
    %492 = arith.divf %490, %491 : vector<16x128xf32>
    %493 = arith.mulf %484, %456 : vector<16x128xf32>
    %494 = arith.mulf %478, %486 : vector<16x128xf32>
    %495 = arith.addf %493, %494 : vector<16x128xf32>
    %496 = math.tanh %495 : vector<16x128xf32>
    %497 = arith.mulf %492, %496 : vector<16x128xf32>
    %498 = vector.extract_strided_slice %472 {offsets = [0, 0], sizes = [16, 128], strides = [1, 1]} : vector<16x512xf32> to vector<16x128xf32>
    %499 = arith.negf %498 : vector<16x128xf32>
    %500 = math.exp %499 : vector<16x128xf32>
    %cst_186 = arith.constant 1.000000e+00 : f32
    %501 = vector.broadcast %cst_186 : f32 to vector<16x128xf32>
    %502 = arith.addf %501, %500 : vector<16x128xf32>
    %503 = arith.divf %501, %502 : vector<16x128xf32>
    %504 = vector.extract_strided_slice %472 {offsets = [0, 128], sizes = [16, 128], strides = [1, 1]} : vector<16x512xf32> to vector<16x128xf32>
    %505 = arith.negf %504 : vector<16x128xf32>
    %506 = math.exp %505 : vector<16x128xf32>
    %cst_187 = arith.constant 1.000000e+00 : f32
    %507 = vector.broadcast %cst_187 : f32 to vector<16x128xf32>
    %508 = arith.addf %507, %506 : vector<16x128xf32>
    %509 = arith.divf %507, %508 : vector<16x128xf32>
    %510 = vector.extract_strided_slice %472 {offsets = [0, 256], sizes = [16, 128], strides = [1, 1]} : vector<16x512xf32> to vector<16x128xf32>
    %511 = math.tanh %510 : vector<16x128xf32>
    %512 = vector.extract_strided_slice %472 {offsets = [0, 384], sizes = [16, 128], strides = [1, 1]} : vector<16x512xf32> to vector<16x128xf32>
    %513 = arith.negf %512 : vector<16x128xf32>
    %514 = math.exp %513 : vector<16x128xf32>
    %cst_188 = arith.constant 1.000000e+00 : f32
    %515 = vector.broadcast %cst_188 : f32 to vector<16x128xf32>
    %516 = arith.addf %515, %514 : vector<16x128xf32>
    %517 = arith.divf %515, %516 : vector<16x128xf32>
    %518 = arith.mulf %509, %458 : vector<16x128xf32>
    %519 = arith.mulf %503, %511 : vector<16x128xf32>
    %520 = arith.addf %518, %519 : vector<16x128xf32>
    %521 = math.tanh %520 : vector<16x128xf32>
    %522 = arith.mulf %517, %521 : vector<16x128xf32>
    %523 = vector.broadcast %c4_i32 : i32 to vector<16x1xi32>
    %524 = arith.cmpi sgt, %17, %523 : vector<16x1xi32>
    %525 = vector.broadcast %454 : i32 to vector<16x1xi32>
    %526 = arith.cmpi sgt, %17, %525 : vector<16x1xi32>
    %cst_189 = arith.constant 0.000000e+00 : f32
    %527 = vector.shape_cast %524 : vector<16x1xi1> to vector<16x1xi1>
    %528 = vector.broadcast %527 : vector<16x1xi1> to vector<16x128xi1>
    %529 = vector.broadcast %cst_189 : f32 to vector<16x128xf32>
    %530 = arith.select %528, %497, %529 : vector<16x128xi1>, vector<16x128xf32>
    %531 = arith.truncf %530 : vector<16x128xf32> to vector<16x128xbf16>
    %532 = arith.index_cast %c4_i32 : i32 to index
    %c0_190 = arith.constant 0 : index
    %c0_191 = arith.constant 0 : index
    %533 = vector.load %arg7[%532, %c0_190, %c0_191] : memref<8x16x256xbf16, #tpu.memory_space<vmem>>, vector<1x16x128xbf16>
    %534 = vector.shape_cast %533 : vector<1x16x128xbf16> to vector<16x128xbf16>
    %535 = vector.shape_cast %531 : vector<16x128xbf16> to vector<1x16x128xbf16>
    tpu.vector_store %arg7[%532, %c0_190, %c0_191], %535 {strides = array<i32>} : memref<8x16x256xbf16, #tpu.memory_space<vmem>>, vector<1x16x128xbf16>,
    %cst_192 = arith.constant 0.000000e+00 : f32
    %536 = vector.shape_cast %526 : vector<16x1xi1> to vector<16x1xi1>
    %537 = vector.broadcast %536 : vector<16x1xi1> to vector<16x128xi1>
    %538 = vector.broadcast %cst_192 : f32 to vector<16x128xf32>
    %539 = arith.select %537, %522, %538 : vector<16x128xi1>, vector<16x128xf32>
    %540 = arith.truncf %539 : vector<16x128xf32> to vector<16x128xbf16>
    %541 = arith.index_cast %454 : i32 to index
    %c0_193 = arith.constant 0 : index
    %c128_194 = arith.constant 128 : index
    %542 = vector.load %arg7[%541, %c0_193, %c128_194] : memref<8x16x256xbf16, #tpu.memory_space<vmem>>, vector<1x16x128xbf16>
    %543 = vector.shape_cast %542 : vector<1x16x128xbf16> to vector<16x128xbf16>
    %544 = vector.shape_cast %540 : vector<16x128xbf16> to vector<1x16x128xbf16>
    tpu.vector_store %arg7[%541, %c0_193, %c128_194], %544 {strides = array<i32>} : memref<8x16x256xbf16, #tpu.memory_space<vmem>>, vector<1x16x128xbf16>,
    %545 = vector.shape_cast %524 : vector<16x1xi1> to vector<16x1xi1>
    %546 = vector.broadcast %545 : vector<16x1xi1> to vector<16x128xi1>
    %547 = arith.select %546, %497, %455 : vector<16x128xi1>, vector<16x128xf32>
    %c0_195 = arith.constant 0 : index
    %c0_196 = arith.constant 0 : index
    %548 = vector.load %arg10[%c0_195, %c0_196] : memref<16x128xf32, #tpu.memory_space<vmem>>, vector<16x128xf32>
    tpu.vector_store %arg10[%c0_195, %c0_196], %547 {strides = array<i32>} : memref<16x128xf32, #tpu.memory_space<vmem>>, vector<16x128xf32>,
    %549 = vector.shape_cast %524 : vector<16x1xi1> to vector<16x1xi1>
    %550 = vector.broadcast %549 : vector<16x1xi1> to vector<16x128xi1>
    %551 = arith.select %550, %495, %456 : vector<16x128xi1>, vector<16x128xf32>
    %c0_197 = arith.constant 0 : index
    %c0_198 = arith.constant 0 : index
    %552 = vector.load %arg11[%c0_197, %c0_198] : memref<16x128xf32, #tpu.memory_space<vmem>>, vector<16x128xf32>
    tpu.vector_store %arg11[%c0_197, %c0_198], %551 {strides = array<i32>} : memref<16x128xf32, #tpu.memory_space<vmem>>, vector<16x128xf32>,
    %553 = vector.shape_cast %526 : vector<16x1xi1> to vector<16x1xi1>
    %554 = vector.broadcast %553 : vector<16x1xi1> to vector<16x128xi1>
    %555 = arith.select %554, %522, %457 : vector<16x128xi1>, vector<16x128xf32>
    %c0_199 = arith.constant 0 : index
    %c0_200 = arith.constant 0 : index
    %556 = vector.load %arg12[%c0_199, %c0_200] : memref<16x128xf32, #tpu.memory_space<vmem>>, vector<16x128xf32>
    tpu.vector_store %arg12[%c0_199, %c0_200], %555 {strides = array<i32>} : memref<16x128xf32, #tpu.memory_space<vmem>>, vector<16x128xf32>,
    %557 = vector.shape_cast %526 : vector<16x1xi1> to vector<16x1xi1>
    %558 = vector.broadcast %557 : vector<16x1xi1> to vector<16x128xi1>
    %559 = arith.select %558, %520, %458 : vector<16x128xi1>, vector<16x128xf32>
    %c0_201 = arith.constant 0 : index
    %c0_202 = arith.constant 0 : index
    %560 = vector.load %arg13[%c0_201, %c0_202] : memref<16x128xf32, #tpu.memory_space<vmem>>, vector<16x128xf32>
    tpu.vector_store %arg13[%c0_201, %c0_202], %559 {strides = array<i32>} : memref<16x128xf32, #tpu.memory_space<vmem>>, vector<16x128xf32>,
    %c5_i32 = arith.constant 5 : i32
    %c7_i32_203 = arith.constant 7 : i32
    %561 = arith.subi %c7_i32_203, %c5_i32 : i32
    %c0_204 = arith.constant 0 : index
    %c0_205 = arith.constant 0 : index
    %562 = vector.load %arg10[%c0_204, %c0_205] : memref<16x128xf32, #tpu.memory_space<vmem>>, vector<16x128xf32>
    %c0_206 = arith.constant 0 : index
    %c0_207 = arith.constant 0 : index
    %563 = vector.load %arg11[%c0_206, %c0_207] : memref<16x128xf32, #tpu.memory_space<vmem>>, vector<16x128xf32>
    %c0_208 = arith.constant 0 : index
    %c0_209 = arith.constant 0 : index
    %564 = vector.load %arg12[%c0_208, %c0_209] : memref<16x128xf32, #tpu.memory_space<vmem>>, vector<16x128xf32>
    %c0_210 = arith.constant 0 : index
    %c0_211 = arith.constant 0 : index
    %565 = vector.load %arg13[%c0_210, %c0_211] : memref<16x128xf32, #tpu.memory_space<vmem>>, vector<16x128xf32>
    %566 = arith.truncf %562 : vector<16x128xf32> to vector<16x128xbf16>
    %cst_212 = arith.constant dense<0.000000e+00> : vector<16x512xf32>
    %567 = tpu.matmul %566, %15, %cst_212 {dimension_numbers = #tpu.dot_dimension_numbers<[1], [0], [0], [1], [0, 0, 1, 1], [], []>} : vector<16x128xbf16>, vector<128x512xbf16>, vector<16x512xf32> -> vector<16x512xf32>
    %568 = arith.truncf %564 : vector<16x128xf32> to vector<16x128xbf16>
    %cst_213 = arith.constant dense<0.000000e+00> : vector<16x512xf32>
    %569 = tpu.matmul %568, %16, %cst_213 {dimension_numbers = #tpu.dot_dimension_numbers<[1], [0], [0], [1], [0, 0, 1, 1], [], []>} : vector<16x128xbf16>, vector<128x512xbf16>, vector<16x512xf32> -> vector<16x512xf32>
    %570 = arith.index_cast %c5_i32 : i32 to index
    %c0_214 = arith.constant 0 : index
    %c0_215 = arith.constant 0 : index
    %571 = vector.load %arg8[%570, %c0_214, %c0_215] : memref<8x16x512xbf16, #tpu.memory_space<vmem>>, vector<1x16x512xbf16>
    %572 = vector.shape_cast %571 : vector<1x16x512xbf16> to vector<16x512xbf16>
    %573 = arith.extf %572 : vector<16x512xbf16> to vector<16x512xf32>
    %574 = arith.addf %573, %567 : vector<16x512xf32>
    %575 = arith.index_cast %561 : i32 to index
    %c0_216 = arith.constant 0 : index
    %c0_217 = arith.constant 0 : index
    %576 = vector.load %arg9[%575, %c0_216, %c0_217] : memref<8x16x512xbf16, #tpu.memory_space<vmem>>, vector<1x16x512xbf16>
    %577 = vector.shape_cast %576 : vector<1x16x512xbf16> to vector<16x512xbf16>
    %578 = arith.extf %577 : vector<16x512xbf16> to vector<16x512xf32>
    %579 = arith.addf %578, %569 : vector<16x512xf32>
    %580 = vector.extract_strided_slice %574 {offsets = [0, 0], sizes = [16, 128], strides = [1, 1]} : vector<16x512xf32> to vector<16x128xf32>
    %581 = arith.negf %580 : vector<16x128xf32>
    %582 = math.exp %581 : vector<16x128xf32>
    %cst_218 = arith.constant 1.000000e+00 : f32
    %583 = vector.broadcast %cst_218 : f32 to vector<16x128xf32>
    %584 = arith.addf %583, %582 : vector<16x128xf32>
    %585 = arith.divf %583, %584 : vector<16x128xf32>
    %586 = vector.extract_strided_slice %574 {offsets = [0, 128], sizes = [16, 128], strides = [1, 1]} : vector<16x512xf32> to vector<16x128xf32>
    %587 = arith.negf %586 : vector<16x128xf32>
    %588 = math.exp %587 : vector<16x128xf32>
    %cst_219 = arith.constant 1.000000e+00 : f32
    %589 = vector.broadcast %cst_219 : f32 to vector<16x128xf32>
    %590 = arith.addf %589, %588 : vector<16x128xf32>
    %591 = arith.divf %589, %590 : vector<16x128xf32>
    %592 = vector.extract_strided_slice %574 {offsets = [0, 256], sizes = [16, 128], strides = [1, 1]} : vector<16x512xf32> to vector<16x128xf32>
    %593 = math.tanh %592 : vector<16x128xf32>
    %594 = vector.extract_strided_slice %574 {offsets = [0, 384], sizes = [16, 128], strides = [1, 1]} : vector<16x512xf32> to vector<16x128xf32>
    %595 = arith.negf %594 : vector<16x128xf32>
    %596 = math.exp %595 : vector<16x128xf32>
    %cst_220 = arith.constant 1.000000e+00 : f32
    %597 = vector.broadcast %cst_220 : f32 to vector<16x128xf32>
    %598 = arith.addf %597, %596 : vector<16x128xf32>
    %599 = arith.divf %597, %598 : vector<16x128xf32>
    %600 = arith.mulf %591, %563 : vector<16x128xf32>
    %601 = arith.mulf %585, %593 : vector<16x128xf32>
    %602 = arith.addf %600, %601 : vector<16x128xf32>
    %603 = math.tanh %602 : vector<16x128xf32>
    %604 = arith.mulf %599, %603 : vector<16x128xf32>
    %605 = vector.extract_strided_slice %579 {offsets = [0, 0], sizes = [16, 128], strides = [1, 1]} : vector<16x512xf32> to vector<16x128xf32>
    %606 = arith.negf %605 : vector<16x128xf32>
    %607 = math.exp %606 : vector<16x128xf32>
    %cst_221 = arith.constant 1.000000e+00 : f32
    %608 = vector.broadcast %cst_221 : f32 to vector<16x128xf32>
    %609 = arith.addf %608, %607 : vector<16x128xf32>
    %610 = arith.divf %608, %609 : vector<16x128xf32>
    %611 = vector.extract_strided_slice %579 {offsets = [0, 128], sizes = [16, 128], strides = [1, 1]} : vector<16x512xf32> to vector<16x128xf32>
    %612 = arith.negf %611 : vector<16x128xf32>
    %613 = math.exp %612 : vector<16x128xf32>
    %cst_222 = arith.constant 1.000000e+00 : f32
    %614 = vector.broadcast %cst_222 : f32 to vector<16x128xf32>
    %615 = arith.addf %614, %613 : vector<16x128xf32>
    %616 = arith.divf %614, %615 : vector<16x128xf32>
    %617 = vector.extract_strided_slice %579 {offsets = [0, 256], sizes = [16, 128], strides = [1, 1]} : vector<16x512xf32> to vector<16x128xf32>
    %618 = math.tanh %617 : vector<16x128xf32>
    %619 = vector.extract_strided_slice %579 {offsets = [0, 384], sizes = [16, 128], strides = [1, 1]} : vector<16x512xf32> to vector<16x128xf32>
    %620 = arith.negf %619 : vector<16x128xf32>
    %621 = math.exp %620 : vector<16x128xf32>
    %cst_223 = arith.constant 1.000000e+00 : f32
    %622 = vector.broadcast %cst_223 : f32 to vector<16x128xf32>
    %623 = arith.addf %622, %621 : vector<16x128xf32>
    %624 = arith.divf %622, %623 : vector<16x128xf32>
    %625 = arith.mulf %616, %565 : vector<16x128xf32>
    %626 = arith.mulf %610, %618 : vector<16x128xf32>
    %627 = arith.addf %625, %626 : vector<16x128xf32>
    %628 = math.tanh %627 : vector<16x128xf32>
    %629 = arith.mulf %624, %628 : vector<16x128xf32>
    %630 = vector.broadcast %c5_i32 : i32 to vector<16x1xi32>
    %631 = arith.cmpi sgt, %17, %630 : vector<16x1xi32>
    %632 = vector.broadcast %561 : i32 to vector<16x1xi32>
    %633 = arith.cmpi sgt, %17, %632 : vector<16x1xi32>
    %cst_224 = arith.constant 0.000000e+00 : f32
    %634 = vector.shape_cast %631 : vector<16x1xi1> to vector<16x1xi1>
    %635 = vector.broadcast %634 : vector<16x1xi1> to vector<16x128xi1>
    %636 = vector.broadcast %cst_224 : f32 to vector<16x128xf32>
    %637 = arith.select %635, %604, %636 : vector<16x128xi1>, vector<16x128xf32>
    %638 = arith.truncf %637 : vector<16x128xf32> to vector<16x128xbf16>
    %639 = arith.index_cast %c5_i32 : i32 to index
    %c0_225 = arith.constant 0 : index
    %c0_226 = arith.constant 0 : index
    %640 = vector.load %arg7[%639, %c0_225, %c0_226] : memref<8x16x256xbf16, #tpu.memory_space<vmem>>, vector<1x16x128xbf16>
    %641 = vector.shape_cast %640 : vector<1x16x128xbf16> to vector<16x128xbf16>
    %642 = vector.shape_cast %638 : vector<16x128xbf16> to vector<1x16x128xbf16>
    tpu.vector_store %arg7[%639, %c0_225, %c0_226], %642 {strides = array<i32>} : memref<8x16x256xbf16, #tpu.memory_space<vmem>>, vector<1x16x128xbf16>,
    %cst_227 = arith.constant 0.000000e+00 : f32
    %643 = vector.shape_cast %633 : vector<16x1xi1> to vector<16x1xi1>
    %644 = vector.broadcast %643 : vector<16x1xi1> to vector<16x128xi1>
    %645 = vector.broadcast %cst_227 : f32 to vector<16x128xf32>
    %646 = arith.select %644, %629, %645 : vector<16x128xi1>, vector<16x128xf32>
    %647 = arith.truncf %646 : vector<16x128xf32> to vector<16x128xbf16>
    %648 = arith.index_cast %561 : i32 to index
    %c0_228 = arith.constant 0 : index
    %c128_229 = arith.constant 128 : index
    %649 = vector.load %arg7[%648, %c0_228, %c128_229] : memref<8x16x256xbf16, #tpu.memory_space<vmem>>, vector<1x16x128xbf16>
    %650 = vector.shape_cast %649 : vector<1x16x128xbf16> to vector<16x128xbf16>
    %651 = vector.shape_cast %647 : vector<16x128xbf16> to vector<1x16x128xbf16>
    tpu.vector_store %arg7[%648, %c0_228, %c128_229], %651 {strides = array<i32>} : memref<8x16x256xbf16, #tpu.memory_space<vmem>>, vector<1x16x128xbf16>,
    %652 = vector.shape_cast %631 : vector<16x1xi1> to vector<16x1xi1>
    %653 = vector.broadcast %652 : vector<16x1xi1> to vector<16x128xi1>
    %654 = arith.select %653, %604, %562 : vector<16x128xi1>, vector<16x128xf32>
    %c0_230 = arith.constant 0 : index
    %c0_231 = arith.constant 0 : index
    %655 = vector.load %arg10[%c0_230, %c0_231] : memref<16x128xf32, #tpu.memory_space<vmem>>, vector<16x128xf32>
    tpu.vector_store %arg10[%c0_230, %c0_231], %654 {strides = array<i32>} : memref<16x128xf32, #tpu.memory_space<vmem>>, vector<16x128xf32>,
    %656 = vector.shape_cast %631 : vector<16x1xi1> to vector<16x1xi1>
    %657 = vector.broadcast %656 : vector<16x1xi1> to vector<16x128xi1>
    %658 = arith.select %657, %602, %563 : vector<16x128xi1>, vector<16x128xf32>
    %c0_232 = arith.constant 0 : index
    %c0_233 = arith.constant 0 : index
    %659 = vector.load %arg11[%c0_232, %c0_233] : memref<16x128xf32, #tpu.memory_space<vmem>>, vector<16x128xf32>
    tpu.vector_store %arg11[%c0_232, %c0_233], %658 {strides = array<i32>} : memref<16x128xf32, #tpu.memory_space<vmem>>, vector<16x128xf32>,
    %660 = vector.shape_cast %633 : vector<16x1xi1> to vector<16x1xi1>
    %661 = vector.broadcast %660 : vector<16x1xi1> to vector<16x128xi1>
    %662 = arith.select %661, %629, %564 : vector<16x128xi1>, vector<16x128xf32>
    %c0_234 = arith.constant 0 : index
    %c0_235 = arith.constant 0 : index
    %663 = vector.load %arg12[%c0_234, %c0_235] : memref<16x128xf32, #tpu.memory_space<vmem>>, vector<16x128xf32>
    tpu.vector_store %arg12[%c0_234, %c0_235], %662 {strides = array<i32>} : memref<16x128xf32, #tpu.memory_space<vmem>>, vector<16x128xf32>,
    %664 = vector.shape_cast %633 : vector<16x1xi1> to vector<16x1xi1>
    %665 = vector.broadcast %664 : vector<16x1xi1> to vector<16x128xi1>
    %666 = arith.select %665, %627, %565 : vector<16x128xi1>, vector<16x128xf32>
    %c0_236 = arith.constant 0 : index
    %c0_237 = arith.constant 0 : index
    %667 = vector.load %arg13[%c0_236, %c0_237] : memref<16x128xf32, #tpu.memory_space<vmem>>, vector<16x128xf32>
    tpu.vector_store %arg13[%c0_236, %c0_237], %666 {strides = array<i32>} : memref<16x128xf32, #tpu.memory_space<vmem>>, vector<16x128xf32>,
    %c6_i32 = arith.constant 6 : i32
    %c7_i32_238 = arith.constant 7 : i32
    %668 = arith.subi %c7_i32_238, %c6_i32 : i32
    %c0_239 = arith.constant 0 : index
    %c0_240 = arith.constant 0 : index
    %669 = vector.load %arg10[%c0_239, %c0_240] : memref<16x128xf32, #tpu.memory_space<vmem>>, vector<16x128xf32>
    %c0_241 = arith.constant 0 : index
    %c0_242 = arith.constant 0 : index
    %670 = vector.load %arg11[%c0_241, %c0_242] : memref<16x128xf32, #tpu.memory_space<vmem>>, vector<16x128xf32>
    %c0_243 = arith.constant 0 : index
    %c0_244 = arith.constant 0 : index
    %671 = vector.load %arg12[%c0_243, %c0_244] : memref<16x128xf32, #tpu.memory_space<vmem>>, vector<16x128xf32>
    %c0_245 = arith.constant 0 : index
    %c0_246 = arith.constant 0 : index
    %672 = vector.load %arg13[%c0_245, %c0_246] : memref<16x128xf32, #tpu.memory_space<vmem>>, vector<16x128xf32>
    %673 = arith.truncf %669 : vector<16x128xf32> to vector<16x128xbf16>
    %cst_247 = arith.constant dense<0.000000e+00> : vector<16x512xf32>
    %674 = tpu.matmul %673, %15, %cst_247 {dimension_numbers = #tpu.dot_dimension_numbers<[1], [0], [0], [1], [0, 0, 1, 1], [], []>} : vector<16x128xbf16>, vector<128x512xbf16>, vector<16x512xf32> -> vector<16x512xf32>
    %675 = arith.truncf %671 : vector<16x128xf32> to vector<16x128xbf16>
    %cst_248 = arith.constant dense<0.000000e+00> : vector<16x512xf32>
    %676 = tpu.matmul %675, %16, %cst_248 {dimension_numbers = #tpu.dot_dimension_numbers<[1], [0], [0], [1], [0, 0, 1, 1], [], []>} : vector<16x128xbf16>, vector<128x512xbf16>, vector<16x512xf32> -> vector<16x512xf32>
    %677 = arith.index_cast %c6_i32 : i32 to index
    %c0_249 = arith.constant 0 : index
    %c0_250 = arith.constant 0 : index
    %678 = vector.load %arg8[%677, %c0_249, %c0_250] : memref<8x16x512xbf16, #tpu.memory_space<vmem>>, vector<1x16x512xbf16>
    %679 = vector.shape_cast %678 : vector<1x16x512xbf16> to vector<16x512xbf16>
    %680 = arith.extf %679 : vector<16x512xbf16> to vector<16x512xf32>
    %681 = arith.addf %680, %674 : vector<16x512xf32>
    %682 = arith.index_cast %668 : i32 to index
    %c0_251 = arith.constant 0 : index
    %c0_252 = arith.constant 0 : index
    %683 = vector.load %arg9[%682, %c0_251, %c0_252] : memref<8x16x512xbf16, #tpu.memory_space<vmem>>, vector<1x16x512xbf16>
    %684 = vector.shape_cast %683 : vector<1x16x512xbf16> to vector<16x512xbf16>
    %685 = arith.extf %684 : vector<16x512xbf16> to vector<16x512xf32>
    %686 = arith.addf %685, %676 : vector<16x512xf32>
    %687 = vector.extract_strided_slice %681 {offsets = [0, 0], sizes = [16, 128], strides = [1, 1]} : vector<16x512xf32> to vector<16x128xf32>
    %688 = arith.negf %687 : vector<16x128xf32>
    %689 = math.exp %688 : vector<16x128xf32>
    %cst_253 = arith.constant 1.000000e+00 : f32
    %690 = vector.broadcast %cst_253 : f32 to vector<16x128xf32>
    %691 = arith.addf %690, %689 : vector<16x128xf32>
    %692 = arith.divf %690, %691 : vector<16x128xf32>
    %693 = vector.extract_strided_slice %681 {offsets = [0, 128], sizes = [16, 128], strides = [1, 1]} : vector<16x512xf32> to vector<16x128xf32>
    %694 = arith.negf %693 : vector<16x128xf32>
    %695 = math.exp %694 : vector<16x128xf32>
    %cst_254 = arith.constant 1.000000e+00 : f32
    %696 = vector.broadcast %cst_254 : f32 to vector<16x128xf32>
    %697 = arith.addf %696, %695 : vector<16x128xf32>
    %698 = arith.divf %696, %697 : vector<16x128xf32>
    %699 = vector.extract_strided_slice %681 {offsets = [0, 256], sizes = [16, 128], strides = [1, 1]} : vector<16x512xf32> to vector<16x128xf32>
    %700 = math.tanh %699 : vector<16x128xf32>
    %701 = vector.extract_strided_slice %681 {offsets = [0, 384], sizes = [16, 128], strides = [1, 1]} : vector<16x512xf32> to vector<16x128xf32>
    %702 = arith.negf %701 : vector<16x128xf32>
    %703 = math.exp %702 : vector<16x128xf32>
    %cst_255 = arith.constant 1.000000e+00 : f32
    %704 = vector.broadcast %cst_255 : f32 to vector<16x128xf32>
    %705 = arith.addf %704, %703 : vector<16x128xf32>
    %706 = arith.divf %704, %705 : vector<16x128xf32>
    %707 = arith.mulf %698, %670 : vector<16x128xf32>
    %708 = arith.mulf %692, %700 : vector<16x128xf32>
    %709 = arith.addf %707, %708 : vector<16x128xf32>
    %710 = math.tanh %709 : vector<16x128xf32>
    %711 = arith.mulf %706, %710 : vector<16x128xf32>
    %712 = vector.extract_strided_slice %686 {offsets = [0, 0], sizes = [16, 128], strides = [1, 1]} : vector<16x512xf32> to vector<16x128xf32>
    %713 = arith.negf %712 : vector<16x128xf32>
    %714 = math.exp %713 : vector<16x128xf32>
    %cst_256 = arith.constant 1.000000e+00 : f32
    %715 = vector.broadcast %cst_256 : f32 to vector<16x128xf32>
    %716 = arith.addf %715, %714 : vector<16x128xf32>
    %717 = arith.divf %715, %716 : vector<16x128xf32>
    %718 = vector.extract_strided_slice %686 {offsets = [0, 128], sizes = [16, 128], strides = [1, 1]} : vector<16x512xf32> to vector<16x128xf32>
    %719 = arith.negf %718 : vector<16x128xf32>
    %720 = math.exp %719 : vector<16x128xf32>
    %cst_257 = arith.constant 1.000000e+00 : f32
    %721 = vector.broadcast %cst_257 : f32 to vector<16x128xf32>
    %722 = arith.addf %721, %720 : vector<16x128xf32>
    %723 = arith.divf %721, %722 : vector<16x128xf32>
    %724 = vector.extract_strided_slice %686 {offsets = [0, 256], sizes = [16, 128], strides = [1, 1]} : vector<16x512xf32> to vector<16x128xf32>
    %725 = math.tanh %724 : vector<16x128xf32>
    %726 = vector.extract_strided_slice %686 {offsets = [0, 384], sizes = [16, 128], strides = [1, 1]} : vector<16x512xf32> to vector<16x128xf32>
    %727 = arith.negf %726 : vector<16x128xf32>
    %728 = math.exp %727 : vector<16x128xf32>
    %cst_258 = arith.constant 1.000000e+00 : f32
    %729 = vector.broadcast %cst_258 : f32 to vector<16x128xf32>
    %730 = arith.addf %729, %728 : vector<16x128xf32>
    %731 = arith.divf %729, %730 : vector<16x128xf32>
    %732 = arith.mulf %723, %672 : vector<16x128xf32>
    %733 = arith.mulf %717, %725 : vector<16x128xf32>
    %734 = arith.addf %732, %733 : vector<16x128xf32>
    %735 = math.tanh %734 : vector<16x128xf32>
    %736 = arith.mulf %731, %735 : vector<16x128xf32>
    %737 = vector.broadcast %c6_i32 : i32 to vector<16x1xi32>
    %738 = arith.cmpi sgt, %17, %737 : vector<16x1xi32>
    %739 = vector.broadcast %668 : i32 to vector<16x1xi32>
    %740 = arith.cmpi sgt, %17, %739 : vector<16x1xi32>
    %cst_259 = arith.constant 0.000000e+00 : f32
    %741 = vector.shape_cast %738 : vector<16x1xi1> to vector<16x1xi1>
    %742 = vector.broadcast %741 : vector<16x1xi1> to vector<16x128xi1>
    %743 = vector.broadcast %cst_259 : f32 to vector<16x128xf32>
    %744 = arith.select %742, %711, %743 : vector<16x128xi1>, vector<16x128xf32>
    %745 = arith.truncf %744 : vector<16x128xf32> to vector<16x128xbf16>
    %746 = arith.index_cast %c6_i32 : i32 to index
    %c0_260 = arith.constant 0 : index
    %c0_261 = arith.constant 0 : index
    %747 = vector.load %arg7[%746, %c0_260, %c0_261] : memref<8x16x256xbf16, #tpu.memory_space<vmem>>, vector<1x16x128xbf16>
    %748 = vector.shape_cast %747 : vector<1x16x128xbf16> to vector<16x128xbf16>
    %749 = vector.shape_cast %745 : vector<16x128xbf16> to vector<1x16x128xbf16>
    tpu.vector_store %arg7[%746, %c0_260, %c0_261], %749 {strides = array<i32>} : memref<8x16x256xbf16, #tpu.memory_space<vmem>>, vector<1x16x128xbf16>,
    %cst_262 = arith.constant 0.000000e+00 : f32
    %750 = vector.shape_cast %740 : vector<16x1xi1> to vector<16x1xi1>
    %751 = vector.broadcast %750 : vector<16x1xi1> to vector<16x128xi1>
    %752 = vector.broadcast %cst_262 : f32 to vector<16x128xf32>
    %753 = arith.select %751, %736, %752 : vector<16x128xi1>, vector<16x128xf32>
    %754 = arith.truncf %753 : vector<16x128xf32> to vector<16x128xbf16>
    %755 = arith.index_cast %668 : i32 to index
    %c0_263 = arith.constant 0 : index
    %c128_264 = arith.constant 128 : index
    %756 = vector.load %arg7[%755, %c0_263, %c128_264] : memref<8x16x256xbf16, #tpu.memory_space<vmem>>, vector<1x16x128xbf16>
    %757 = vector.shape_cast %756 : vector<1x16x128xbf16> to vector<16x128xbf16>
    %758 = vector.shape_cast %754 : vector<16x128xbf16> to vector<1x16x128xbf16>
    tpu.vector_store %arg7[%755, %c0_263, %c128_264], %758 {strides = array<i32>} : memref<8x16x256xbf16, #tpu.memory_space<vmem>>, vector<1x16x128xbf16>,
    %759 = vector.shape_cast %738 : vector<16x1xi1> to vector<16x1xi1>
    %760 = vector.broadcast %759 : vector<16x1xi1> to vector<16x128xi1>
    %761 = arith.select %760, %711, %669 : vector<16x128xi1>, vector<16x128xf32>
    %c0_265 = arith.constant 0 : index
    %c0_266 = arith.constant 0 : index
    %762 = vector.load %arg10[%c0_265, %c0_266] : memref<16x128xf32, #tpu.memory_space<vmem>>, vector<16x128xf32>
    tpu.vector_store %arg10[%c0_265, %c0_266], %761 {strides = array<i32>} : memref<16x128xf32, #tpu.memory_space<vmem>>, vector<16x128xf32>,
    %763 = vector.shape_cast %738 : vector<16x1xi1> to vector<16x1xi1>
    %764 = vector.broadcast %763 : vector<16x1xi1> to vector<16x128xi1>
    %765 = arith.select %764, %709, %670 : vector<16x128xi1>, vector<16x128xf32>
    %c0_267 = arith.constant 0 : index
    %c0_268 = arith.constant 0 : index
    %766 = vector.load %arg11[%c0_267, %c0_268] : memref<16x128xf32, #tpu.memory_space<vmem>>, vector<16x128xf32>
    tpu.vector_store %arg11[%c0_267, %c0_268], %765 {strides = array<i32>} : memref<16x128xf32, #tpu.memory_space<vmem>>, vector<16x128xf32>,
    %767 = vector.shape_cast %740 : vector<16x1xi1> to vector<16x1xi1>
    %768 = vector.broadcast %767 : vector<16x1xi1> to vector<16x128xi1>
    %769 = arith.select %768, %736, %671 : vector<16x128xi1>, vector<16x128xf32>
    %c0_269 = arith.constant 0 : index
    %c0_270 = arith.constant 0 : index
    %770 = vector.load %arg12[%c0_269, %c0_270] : memref<16x128xf32, #tpu.memory_space<vmem>>, vector<16x128xf32>
    tpu.vector_store %arg12[%c0_269, %c0_270], %769 {strides = array<i32>} : memref<16x128xf32, #tpu.memory_space<vmem>>, vector<16x128xf32>,
    %771 = vector.shape_cast %740 : vector<16x1xi1> to vector<16x1xi1>
    %772 = vector.broadcast %771 : vector<16x1xi1> to vector<16x128xi1>
    %773 = arith.select %772, %734, %672 : vector<16x128xi1>, vector<16x128xf32>
    %c0_271 = arith.constant 0 : index
    %c0_272 = arith.constant 0 : index
    %774 = vector.load %arg13[%c0_271, %c0_272] : memref<16x128xf32, #tpu.memory_space<vmem>>, vector<16x128xf32>
    tpu.vector_store %arg13[%c0_271, %c0_272], %773 {strides = array<i32>} : memref<16x128xf32, #tpu.memory_space<vmem>>, vector<16x128xf32>,
    %c7_i32_273 = arith.constant 7 : i32
    %c7_i32_274 = arith.constant 7 : i32
    %775 = arith.subi %c7_i32_274, %c7_i32_273 : i32
    %c0_275 = arith.constant 0 : index
    %c0_276 = arith.constant 0 : index
    %776 = vector.load %arg10[%c0_275, %c0_276] : memref<16x128xf32, #tpu.memory_space<vmem>>, vector<16x128xf32>
    %c0_277 = arith.constant 0 : index
    %c0_278 = arith.constant 0 : index
    %777 = vector.load %arg11[%c0_277, %c0_278] : memref<16x128xf32, #tpu.memory_space<vmem>>, vector<16x128xf32>
    %c0_279 = arith.constant 0 : index
    %c0_280 = arith.constant 0 : index
    %778 = vector.load %arg12[%c0_279, %c0_280] : memref<16x128xf32, #tpu.memory_space<vmem>>, vector<16x128xf32>
    %c0_281 = arith.constant 0 : index
    %c0_282 = arith.constant 0 : index
    %779 = vector.load %arg13[%c0_281, %c0_282] : memref<16x128xf32, #tpu.memory_space<vmem>>, vector<16x128xf32>
    %780 = arith.truncf %776 : vector<16x128xf32> to vector<16x128xbf16>
    %cst_283 = arith.constant dense<0.000000e+00> : vector<16x512xf32>
    %781 = tpu.matmul %780, %15, %cst_283 {dimension_numbers = #tpu.dot_dimension_numbers<[1], [0], [0], [1], [0, 0, 1, 1], [], []>} : vector<16x128xbf16>, vector<128x512xbf16>, vector<16x512xf32> -> vector<16x512xf32>
    %782 = arith.truncf %778 : vector<16x128xf32> to vector<16x128xbf16>
    %cst_284 = arith.constant dense<0.000000e+00> : vector<16x512xf32>
    %783 = tpu.matmul %782, %16, %cst_284 {dimension_numbers = #tpu.dot_dimension_numbers<[1], [0], [0], [1], [0, 0, 1, 1], [], []>} : vector<16x128xbf16>, vector<128x512xbf16>, vector<16x512xf32> -> vector<16x512xf32>
    %784 = arith.index_cast %c7_i32_273 : i32 to index
    %c0_285 = arith.constant 0 : index
    %c0_286 = arith.constant 0 : index
    %785 = vector.load %arg8[%784, %c0_285, %c0_286] : memref<8x16x512xbf16, #tpu.memory_space<vmem>>, vector<1x16x512xbf16>
    %786 = vector.shape_cast %785 : vector<1x16x512xbf16> to vector<16x512xbf16>
    %787 = arith.extf %786 : vector<16x512xbf16> to vector<16x512xf32>
    %788 = arith.addf %787, %781 : vector<16x512xf32>
    %789 = arith.index_cast %775 : i32 to index
    %c0_287 = arith.constant 0 : index
    %c0_288 = arith.constant 0 : index
    %790 = vector.load %arg9[%789, %c0_287, %c0_288] : memref<8x16x512xbf16, #tpu.memory_space<vmem>>, vector<1x16x512xbf16>
    %791 = vector.shape_cast %790 : vector<1x16x512xbf16> to vector<16x512xbf16>
    %792 = arith.extf %791 : vector<16x512xbf16> to vector<16x512xf32>
    %793 = arith.addf %792, %783 : vector<16x512xf32>
    %794 = vector.extract_strided_slice %788 {offsets = [0, 0], sizes = [16, 128], strides = [1, 1]} : vector<16x512xf32> to vector<16x128xf32>
    %795 = arith.negf %794 : vector<16x128xf32>
    %796 = math.exp %795 : vector<16x128xf32>
    %cst_289 = arith.constant 1.000000e+00 : f32
    %797 = vector.broadcast %cst_289 : f32 to vector<16x128xf32>
    %798 = arith.addf %797, %796 : vector<16x128xf32>
    %799 = arith.divf %797, %798 : vector<16x128xf32>
    %800 = vector.extract_strided_slice %788 {offsets = [0, 128], sizes = [16, 128], strides = [1, 1]} : vector<16x512xf32> to vector<16x128xf32>
    %801 = arith.negf %800 : vector<16x128xf32>
    %802 = math.exp %801 : vector<16x128xf32>
    %cst_290 = arith.constant 1.000000e+00 : f32
    %803 = vector.broadcast %cst_290 : f32 to vector<16x128xf32>
    %804 = arith.addf %803, %802 : vector<16x128xf32>
    %805 = arith.divf %803, %804 : vector<16x128xf32>
    %806 = vector.extract_strided_slice %788 {offsets = [0, 256], sizes = [16, 128], strides = [1, 1]} : vector<16x512xf32> to vector<16x128xf32>
    %807 = math.tanh %806 : vector<16x128xf32>
    %808 = vector.extract_strided_slice %788 {offsets = [0, 384], sizes = [16, 128], strides = [1, 1]} : vector<16x512xf32> to vector<16x128xf32>
    %809 = arith.negf %808 : vector<16x128xf32>
    %810 = math.exp %809 : vector<16x128xf32>
    %cst_291 = arith.constant 1.000000e+00 : f32
    %811 = vector.broadcast %cst_291 : f32 to vector<16x128xf32>
    %812 = arith.addf %811, %810 : vector<16x128xf32>
    %813 = arith.divf %811, %812 : vector<16x128xf32>
    %814 = arith.mulf %805, %777 : vector<16x128xf32>
    %815 = arith.mulf %799, %807 : vector<16x128xf32>
    %816 = arith.addf %814, %815 : vector<16x128xf32>
    %817 = math.tanh %816 : vector<16x128xf32>
    %818 = arith.mulf %813, %817 : vector<16x128xf32>
    %819 = vector.extract_strided_slice %793 {offsets = [0, 0], sizes = [16, 128], strides = [1, 1]} : vector<16x512xf32> to vector<16x128xf32>
    %820 = arith.negf %819 : vector<16x128xf32>
    %821 = math.exp %820 : vector<16x128xf32>
    %cst_292 = arith.constant 1.000000e+00 : f32
    %822 = vector.broadcast %cst_292 : f32 to vector<16x128xf32>
    %823 = arith.addf %822, %821 : vector<16x128xf32>
    %824 = arith.divf %822, %823 : vector<16x128xf32>
    %825 = vector.extract_strided_slice %793 {offsets = [0, 128], sizes = [16, 128], strides = [1, 1]} : vector<16x512xf32> to vector<16x128xf32>
    %826 = arith.negf %825 : vector<16x128xf32>
    %827 = math.exp %826 : vector<16x128xf32>
    %cst_293 = arith.constant 1.000000e+00 : f32
    %828 = vector.broadcast %cst_293 : f32 to vector<16x128xf32>
    %829 = arith.addf %828, %827 : vector<16x128xf32>
    %830 = arith.divf %828, %829 : vector<16x128xf32>
    %831 = vector.extract_strided_slice %793 {offsets = [0, 256], sizes = [16, 128], strides = [1, 1]} : vector<16x512xf32> to vector<16x128xf32>
    %832 = math.tanh %831 : vector<16x128xf32>
    %833 = vector.extract_strided_slice %793 {offsets = [0, 384], sizes = [16, 128], strides = [1, 1]} : vector<16x512xf32> to vector<16x128xf32>
    %834 = arith.negf %833 : vector<16x128xf32>
    %835 = math.exp %834 : vector<16x128xf32>
    %cst_294 = arith.constant 1.000000e+00 : f32
    %836 = vector.broadcast %cst_294 : f32 to vector<16x128xf32>
    %837 = arith.addf %836, %835 : vector<16x128xf32>
    %838 = arith.divf %836, %837 : vector<16x128xf32>
    %839 = arith.mulf %830, %779 : vector<16x128xf32>
    %840 = arith.mulf %824, %832 : vector<16x128xf32>
    %841 = arith.addf %839, %840 : vector<16x128xf32>
    %842 = math.tanh %841 : vector<16x128xf32>
    %843 = arith.mulf %838, %842 : vector<16x128xf32>
    %844 = vector.broadcast %c7_i32_273 : i32 to vector<16x1xi32>
    %845 = arith.cmpi sgt, %17, %844 : vector<16x1xi32>
    %846 = vector.broadcast %775 : i32 to vector<16x1xi32>
    %847 = arith.cmpi sgt, %17, %846 : vector<16x1xi32>
    %cst_295 = arith.constant 0.000000e+00 : f32
    %848 = vector.shape_cast %845 : vector<16x1xi1> to vector<16x1xi1>
    %849 = vector.broadcast %848 : vector<16x1xi1> to vector<16x128xi1>
    %850 = vector.broadcast %cst_295 : f32 to vector<16x128xf32>
    %851 = arith.select %849, %818, %850 : vector<16x128xi1>, vector<16x128xf32>
    %852 = arith.truncf %851 : vector<16x128xf32> to vector<16x128xbf16>
    %853 = arith.index_cast %c7_i32_273 : i32 to index
    %c0_296 = arith.constant 0 : index
    %c0_297 = arith.constant 0 : index
    %854 = vector.load %arg7[%853, %c0_296, %c0_297] : memref<8x16x256xbf16, #tpu.memory_space<vmem>>, vector<1x16x128xbf16>
    %855 = vector.shape_cast %854 : vector<1x16x128xbf16> to vector<16x128xbf16>
    %856 = vector.shape_cast %852 : vector<16x128xbf16> to vector<1x16x128xbf16>
    tpu.vector_store %arg7[%853, %c0_296, %c0_297], %856 {strides = array<i32>} : memref<8x16x256xbf16, #tpu.memory_space<vmem>>, vector<1x16x128xbf16>,
    %cst_298 = arith.constant 0.000000e+00 : f32
    %857 = vector.shape_cast %847 : vector<16x1xi1> to vector<16x1xi1>
    %858 = vector.broadcast %857 : vector<16x1xi1> to vector<16x128xi1>
    %859 = vector.broadcast %cst_298 : f32 to vector<16x128xf32>
    %860 = arith.select %858, %843, %859 : vector<16x128xi1>, vector<16x128xf32>
    %861 = arith.truncf %860 : vector<16x128xf32> to vector<16x128xbf16>
    %862 = arith.index_cast %775 : i32 to index
    %c0_299 = arith.constant 0 : index
    %c128_300 = arith.constant 128 : index
    %863 = vector.load %arg7[%862, %c0_299, %c128_300] : memref<8x16x256xbf16, #tpu.memory_space<vmem>>, vector<1x16x128xbf16>
    %864 = vector.shape_cast %863 : vector<1x16x128xbf16> to vector<16x128xbf16>
    %865 = vector.shape_cast %861 : vector<16x128xbf16> to vector<1x16x128xbf16>
    tpu.vector_store %arg7[%862, %c0_299, %c128_300], %865 {strides = array<i32>} : memref<8x16x256xbf16, #tpu.memory_space<vmem>>, vector<1x16x128xbf16>,
    %866 = vector.shape_cast %845 : vector<16x1xi1> to vector<16x1xi1>
    %867 = vector.broadcast %866 : vector<16x1xi1> to vector<16x128xi1>
    %868 = arith.select %867, %818, %776 : vector<16x128xi1>, vector<16x128xf32>
    %c0_301 = arith.constant 0 : index
    %c0_302 = arith.constant 0 : index
    %869 = vector.load %arg10[%c0_301, %c0_302] : memref<16x128xf32, #tpu.memory_space<vmem>>, vector<16x128xf32>
    tpu.vector_store %arg10[%c0_301, %c0_302], %868 {strides = array<i32>} : memref<16x128xf32, #tpu.memory_space<vmem>>, vector<16x128xf32>,
    %870 = vector.shape_cast %845 : vector<16x1xi1> to vector<16x1xi1>
    %871 = vector.broadcast %870 : vector<16x1xi1> to vector<16x128xi1>
    %872 = arith.select %871, %816, %777 : vector<16x128xi1>, vector<16x128xf32>
    %c0_303 = arith.constant 0 : index
    %c0_304 = arith.constant 0 : index
    %873 = vector.load %arg11[%c0_303, %c0_304] : memref<16x128xf32, #tpu.memory_space<vmem>>, vector<16x128xf32>
    tpu.vector_store %arg11[%c0_303, %c0_304], %872 {strides = array<i32>} : memref<16x128xf32, #tpu.memory_space<vmem>>, vector<16x128xf32>,
    %874 = vector.shape_cast %847 : vector<16x1xi1> to vector<16x1xi1>
    %875 = vector.broadcast %874 : vector<16x1xi1> to vector<16x128xi1>
    %876 = arith.select %875, %843, %778 : vector<16x128xi1>, vector<16x128xf32>
    %c0_305 = arith.constant 0 : index
    %c0_306 = arith.constant 0 : index
    %877 = vector.load %arg12[%c0_305, %c0_306] : memref<16x128xf32, #tpu.memory_space<vmem>>, vector<16x128xf32>
    tpu.vector_store %arg12[%c0_305, %c0_306], %876 {strides = array<i32>} : memref<16x128xf32, #tpu.memory_space<vmem>>, vector<16x128xf32>,
    %878 = vector.shape_cast %847 : vector<16x1xi1> to vector<16x1xi1>
    %879 = vector.broadcast %878 : vector<16x1xi1> to vector<16x128xi1>
    %880 = arith.select %879, %841, %779 : vector<16x128xi1>, vector<16x128xf32>
    %c0_307 = arith.constant 0 : index
    %c0_308 = arith.constant 0 : index
    %881 = vector.load %arg13[%c0_307, %c0_308] : memref<16x128xf32, #tpu.memory_space<vmem>>, vector<16x128xf32>
    tpu.vector_store %arg13[%c0_307, %c0_308], %880 {strides = array<i32>} : memref<16x128xf32, #tpu.memory_space<vmem>>, vector<16x128xf32>,
    %c8_i32 = arith.constant 8 : i32
    return
  }
  func.func @transform_0(%arg0: i32) -> (i32, i32, i32) {
    %c0_i32 = arith.constant 0 : i32
    %c0_i32_0 = arith.constant 0 : i32
    %c0_i32_1 = arith.constant 0 : i32
    return %c0_i32, %arg0, %c0_i32_0 : i32, i32, i32
  }
  func.func @transform_1(%arg0: i32) -> (i32, i32) {
    %c0_i32 = arith.constant 0 : i32
    %c0_i32_0 = arith.constant 0 : i32
    return %arg0, %c0_i32 : i32, i32
  }
  func.func @transform_2(%arg0: i32) -> (i32, i32) {
    %c0_i32 = arith.constant 0 : i32
    %c0_i32_0 = arith.constant 0 : i32
    %c0_i32_1 = arith.constant 0 : i32
    return %c0_i32, %c0_i32_0 : i32, i32
  }
  func.func @transform_3(%arg0: i32) -> (i32, i32) {
    %c0_i32 = arith.constant 0 : i32
    %c0_i32_0 = arith.constant 0 : i32
    %c0_i32_1 = arith.constant 0 : i32
    return %c0_i32, %c0_i32_0 : i32, i32
  }
  func.func @transform_4(%arg0: i32) -> (i32, i32) {
    %c0_i32 = arith.constant 0 : i32
    %c0_i32_0 = arith.constant 0 : i32
    %c0_i32_1 = arith.constant 0 : i32
    return %c0_i32, %c0_i32_0 : i32, i32
  }
  func.func @transform_5(%arg0: i32) -> (i32, i32) {
    %c0_i32 = arith.constant 0 : i32
    %c0_i32_0 = arith.constant 0 : i32
    %c0_i32_1 = arith.constant 0 : i32
    return %c0_i32, %c0_i32_0 : i32, i32
  }
  func.func @transform_6(%arg0: i32) -> (i32, i32, i32) {
    %c0_i32 = arith.constant 0 : i32
    %c0_i32_0 = arith.constant 0 : i32
    %c0_i32_1 = arith.constant 0 : i32
    return %c0_i32, %arg0, %c0_i32_0 : i32, i32, i32
  }
}

</mosaic_0001>

<llo_original>
// kernel: bilstm_forward.1
$region0: #{bilstm_forward.1}
  #allocation0 [shape = 'u32[]', space=smem, size = 0x4, offset = 0x4, fixed_abs, tag = 'smem constant byte address 0x4 - core index']
  #allocation1 [shape = 'u32[144,128]{1,0:T(1,128)}', space=vmem, size = 0x12000, scoped, tag = 'internal scratch']
  #allocation2 [shape = 'bf16[8,16,512]{2,1,0:T(8,128)(2,1)}', space=vmem, size = 0x20000, scoped, tag = 'scratch operand']
  #allocation3 [shape = 'bf16[8,16,512]{2,1,0:T(8,128)(2,1)}', space=vmem, size = 0x20000, scoped, tag = 'scratch operand']
  #allocation4 [shape = 'f32[16,128]{1,0:T(8,128)}', space=vmem, size = 0x2000, scoped, tag = 'scratch operand']
  #allocation5 [shape = 'f32[16,128]{1,0:T(8,128)}', space=vmem, size = 0x2000, scoped, tag = 'scratch operand']
  #allocation6 [shape = 'f32[16,128]{1,0:T(8,128)}', space=vmem, size = 0x2000, scoped, tag = 'scratch operand']
  #allocation7 [shape = 'f32[16,128]{1,0:T(8,128)}', space=vmem, size = 0x2000, scoped, tag = 'scratch operand']
  %s0 = inlined_call_operand.vmem [shape: bf16[8,16,16], index: 0, kind: input, shape index: {}]
  %s1 = inlined_call_operand.vmem [shape: s32[16,1], index: 1, kind: input, shape index: {}]
  %s2 = inlined_call_operand.vmem [shape: bf16[16,1024], index: 2, kind: input, shape index: {}]
  %s3 = inlined_call_operand.vmem [shape: bf16[128,512], index: 3, kind: input, shape index: {}]
  %s4 = inlined_call_operand.vmem [shape: bf16[128,512], index: 4, kind: input, shape index: {}]
  %s5 = inlined_call_operand.vmem [shape: f32[1,1024], index: 5, kind: input, shape index: {}]
  %s6 = inlined_call_operand.vmem [shape: bf16[8,16,256], index: 6, kind: output, shape index: {}]
  %s7 = sld [smem:[#allocation0]]
  $region34: #{bilstm_forward.1} parent=0
    _
  %s9 = ssub.s32 1, %s7
  %s10 = scalar_select 0, %s9, %s7
  // Predicated region
  $region2: #{bilstm_forward.1} parent=0 // pred_check
    _
  $region3: #{bilstm_forward.1} parent=0 // pred_check_branch
    %12 = sbr.rel (0) target = $region5
  $region4: #{bilstm_forward.1} parent=0 // pred_region
    _
  $region5: #{bilstm_forward.1} parent=0 // pred_fallthru
    _
  // Predicated region
  $region6: #{bilstm_forward.1} parent=0 // pred_check
    _
  $region7: #{bilstm_forward.1} parent=0 // pred_check_branch
    %14 = sbr.rel (0) target = $region9
  $region8: #{bilstm_forward.1} parent=0 // pred_region
    _
  $region9: #{bilstm_forward.1} parent=0 // pred_fallthru
    _
  // Predicated region
  $region10: #{bilstm_forward.1} parent=0 // pred_check
    _
  $region11: #{bilstm_forward.1} parent=0 // pred_check_branch
    %16 = sbr.rel (0) target = $region13
  $region12: #{bilstm_forward.1} parent=0 // pred_region
    _
  $region13: #{bilstm_forward.1} parent=0 // pred_fallthru
    _
  // Predicated region
  $region14: #{bilstm_forward.1} parent=0 // pred_check
    _
  $region15: #{bilstm_forward.1} parent=0 // pred_check_branch
    %18 = sbr.rel (0) target = $region17
  $region16: #{bilstm_forward.1} parent=0 // pred_region
    _
  $region17: #{bilstm_forward.1} parent=0 // pred_fallthru
    _
  // Predicated region
  $region18: #{bilstm_forward.1} parent=0 // pred_check
    _
  $region19: #{bilstm_forward.1} parent=0 // pred_check_branch
    %20 = sbr.rel (0) target = $region21
  $region20: #{bilstm_forward.1} parent=0 // pred_region
    _
  $region21: #{bilstm_forward.1} parent=0 // pred_fallthru
    _
  // Predicated region
  $region22: #{bilstm_forward.1} parent=0 // pred_check
    _
  $region23: #{bilstm_forward.1} parent=0 // pred_check_branch
    %22 = sbr.rel (0) target = $region25
  $region24: #{bilstm_forward.1} parent=0 // pred_region
    _
  $region25: #{bilstm_forward.1} parent=0 // pred_fallthru
    _
  %v24 = vld [vmem:[%s0] sm:$0xf]
  %v25 = vld [vmem:[%s0 + $0x4] sm:$0xf]
  %v26 = vld [vmem:[%s0 + $0x8] sm:$0xf]
  %v27 = vld [vmem:[%s0 + $0xc] sm:$0xf]
  %v28 = vld [vmem:[%s0 + $0x10] sm:$0xf]
  %v29 = vld [vmem:[%s0 + $0x14] sm:$0xf]
  %v30 = vld [vmem:[%s0 + $0x18] sm:$0xf]
  %v31 = vld [vmem:[%s0 + $0x1c] sm:$0xf]
  %v32 = vld [vmem:[%s0 + $0x20] sm:$0xf]
  %v33 = vld [vmem:[%s0 + $0x24] sm:$0xf]
  %v34 = vld [vmem:[%s0 + $0x28] sm:$0xf]
  %v35 = vld [vmem:[%s0 + $0x2c] sm:$0xf]
  %v36 = vld [vmem:[%s0 + $0x30] sm:$0xf]
  %v37 = vld [vmem:[%s0 + $0x34] sm:$0xf]
  %v38 = vld [vmem:[%s0 + $0x38] sm:$0xf]
  %v39 = vld [vmem:[%s0 + $0x3c] sm:$0xf]
  %v40 = vld [vmem:[%s2] sm:$0xff]
  %v41 = vld [vmem:[%s2 + $0x8] sm:$0xff]
  %v42 = vld [vmem:[%s2 + $0x10] sm:$0xff]
  %v43 = vld [vmem:[%s2 + $0x18] sm:$0xff]
  %v44 = vld [vmem:[%s2 + $0x20] sm:$0xff]
  %v45 = vld [vmem:[%s2 + $0x28] sm:$0xff]
  %v46 = vld [vmem:[%s2 + $0x30] sm:$0xff]
  %v47 = vld [vmem:[%s2 + $0x38] sm:$0xff]
  %v48 = vld [vmem:[%s5] sm:$0xff]
  %v50 = vlaneseq
  %v51 = vshrl.u32 %v50, 7
  %v52 = vsub.s32 0, %v51
  %v53 = vrot.slane %v48, %v52
  %v54 = vlaneseq
  %v55 = vshrl.u32 %v54, 7
  %v56 = vsub.s32 1, %v55
  %v57 = vrot.slane %v48, %v56
  %v58 = vlaneseq
  %v59 = vshrl.u32 %v58, 7
  %v60 = vsub.s32 2, %v59
  %v61 = vrot.slane %v48, %v60
  %v62 = vlaneseq
  %v63 = vshrl.u32 %v62, 7
  %v64 = vsub.s32 3, %v63
  %v65 = vrot.slane %v48, %v64
  %v66 = vlaneseq
  %v67 = vshrl.u32 %v66, 7
  %v68 = vsub.s32 4, %v67
  %v69 = vrot.slane %v48, %v68
  %v70 = vlaneseq
  %v71 = vshrl.u32 %v70, 7
  %v72 = vsub.s32 5, %v71
  %v73 = vrot.slane %v48, %v72
  %v74 = vlaneseq
  %v75 = vshrl.u32 %v74, 7
  %v76 = vsub.s32 6, %v75
  %v77 = vrot.slane %v48, %v76
  %v78 = vlaneseq
  %v79 = vshrl.u32 %v78, 7
  %v80 = vsub.s32 7, %v79
  %v81 = vrot.slane %v48, %v80
  %v106 = vunpack.c.l.b16 %v24
  %v107 = vunpack.c.l.b16 %v25
  %v108 = vunpack.c.l.b16 %v26
  %v109 = vunpack.c.l.b16 %v27
  %v110 = vunpack.c.l.b16 %v28
  %v111 = vunpack.c.l.b16 %v29
  %v112 = vunpack.c.l.b16 %v30
  %v113 = vunpack.c.l.b16 %v31
  %v114 = vunpack.c.l.b16 %v32
  %v115 = vunpack.c.l.b16 %v33
  %v116 = vunpack.c.l.b16 %v34
  %v117 = vunpack.c.l.b16 %v35
  %v118 = vunpack.c.l.b16 %v36
  %v119 = vunpack.c.l.b16 %v37
  %v120 = vunpack.c.l.b16 %v38
  %v121 = vunpack.c.l.b16 %v39
  %v122 = vpack.c.b16 %v107, %v106
  %v123 = vpack.c.b16 %v109, %v108
  %v124 = vpack.c.b16 %v111, %v110
  %v125 = vpack.c.b16 %v113, %v112
  %v126 = vpack.c.b16 %v115, %v114
  %v127 = vpack.c.b16 %v117, %v116
  %v128 = vpack.c.b16 %v119, %v118
  %v129 = vpack.c.b16 %v121, %v120
  %v138 = vunpack.c.l.b16 %v40
  %v139 = vunpack.c.h.b16 %v40
  %v140 = vunpack.c.l.b16 %v41
  %v141 = vunpack.c.h.b16 %v41
  %v142 = vunpack.c.l.b16 %v42
  %v143 = vunpack.c.h.b16 %v42
  %v144 = vunpack.c.l.b16 %v43
  %v145 = vunpack.c.h.b16 %v43
  %v146 = vunpack.c.l.b16 %v44
  %v147 = vunpack.c.h.b16 %v44
  %v148 = vunpack.c.l.b16 %v45
  %v149 = vunpack.c.h.b16 %v45
  %v150 = vunpack.c.l.b16 %v46
  %v151 = vunpack.c.h.b16 %v46
  %v152 = vunpack.c.l.b16 %v47
  %v153 = vunpack.c.h.b16 %v47
  %v154 = vpack.c.b16 %v146, %v138
  %v155 = vpack.c.b16 %v147, %v139
  %v156 = vpack.c.b16 %v148, %v140
  %v157 = vpack.c.b16 %v149, %v141
  %v158 = vpack.c.b16 %v150, %v142
  %v159 = vpack.c.b16 %v151, %v143
  %v160 = vpack.c.b16 %v152, %v144
  %v161 = vpack.c.b16 %v153, %v145
  %vm170 = vcmask 130048
  %v172 = vsel %vm170, %v122, 0
  %v175 = vsel %vm170, %v123, 0
  %v178 = vsel %vm170, %v124, 0
  %v181 = vsel %vm170, %v125, 0
  %v184 = vsel %vm170, %v126, 0
  %v187 = vsel %vm170, %v127, 0
  %v190 = vsel %vm170, %v128, 0
  %v193 = vsel %vm170, %v129, 0
  %195 = vmatprep.subr.bf16.mxu0 0
  %196 = vmatpush1.bf16.msra.mxu0 0
  %197 = vmatprep.subr.bf16.mxu0 0
  %198 = vmatpush1.bf16.msra.mxu0 0
  %199 = vmatprep.subr.bf16.mxu0 0
  %200 = vmatpush1.bf16.msra.mxu0 0
  %201 = vmatprep.subr.bf16.mxu0 0
  %202 = vmatpush1.bf16.msra.mxu0 0
  %203 = vmatprep.subr.bf16.mxu0 0
  %204 = vmatpush1.bf16.msra.mxu0 0
  %205 = vmatprep.subr.bf16.mxu0 0
  %206 = vmatpush1.bf16.msra.mxu0 0
  %207 = vmatprep.subr.bf16.mxu0 0
  %208 = vmatpush1.bf16.msra.mxu0 0
  %209 = vmatprep.subr.bf16.mxu0 %v155
  %210 = vmatpush1.bf16.msra.mxu0 %v154
  %211 = vmatprep.subr.bf16.mxu0 0
  %212 = vmatpush2.bf16.msra.mxu0 0
  %213 = vmatprep.subr.bf16.mxu0 0
  %214 = vmatpush2.bf16.msra.mxu0 0
  %215 = vmatprep.subr.bf16.mxu0 0
  %216 = vmatpush2.bf16.msra.mxu0 0
  %217 = vmatprep.subr.bf16.mxu0 0
  %218 = vmatpush2.bf16.msra.mxu0 0
  %219 = vmatprep.subr.bf16.mxu0 0
  %220 = vmatpush2.bf16.msra.mxu0 0
  %221 = vmatprep.subr.bf16.mxu0 0
  %222 = vmatpush2.bf16.msra.mxu0 0
  %223 = vmatprep.subr.bf16.mxu0 0
  %224 = vmatpush2.bf16.msra.mxu0 0
  %225 = vmatprep.subr.bf16.mxu0 0
  %226 = vmatpush2.bf16.msra.mxu0 0
  %227 = vmatprep.mubr.bf16.mxu0 0
  %228 = vmatmul.mubr.bf16.gmra.mxu0 %v172
  %v229 = vpop.f32.mrf.mxu0
  %v230 = vadd.f32 %v53, %v229
  %v231 = vpop.f32.mrf.mxu0
  %v232 = vadd.f32 %v57, %v231
  %v233 = vpop.f32.mrf.mxu0
  %v234 = vadd.f32 %v53, %v233
  %v235 = vpop.f32.mrf.mxu0
  %v236 = vadd.f32 %v57, %v235
  %237 = vmatprep.mubr.bf16.mxu0 0
  %238 = vmatmul.mubr.bf16.gmra.mxu0 %v175
  %v239 = vpop.f32.mrf.mxu0
  %v240 = vadd.f32 %v53, %v239
  %v241 = vpop.f32.mrf.mxu0
  %v242 = vadd.f32 %v57, %v241
  %v243 = vpop.f32.mrf.mxu0
  %v244 = vadd.f32 %v53, %v243
  %v245 = vpop.f32.mrf.mxu0
  %v246 = vadd.f32 %v57, %v245
  %247 = vmatprep.mubr.bf16.mxu0 0
  %248 = vmatmul.mubr.bf16.gmra.mxu0 %v178
  %v249 = vpop.f32.mrf.mxu0
  %v250 = vadd.f32 %v53, %v249
  %v251 = vpop.f32.mrf.mxu0
  %v252 = vadd.f32 %v57, %v251
  %v253 = vpop.f32.mrf.mxu0
  %v254 = vadd.f32 %v53, %v253
  %v255 = vpop.f32.mrf.mxu0
  %v256 = vadd.f32 %v57, %v255
  %257 = vmatprep.mubr.bf16.mxu0 0
  %258 = vmatmul.mubr.bf16.gmra.mxu0 %v181
  %v259 = vpop.f32.mrf.mxu0
  %v260 = vadd.f32 %v53, %v259
  %v261 = vpop.f32.mrf.mxu0
  %v262 = vadd.f32 %v57, %v261
  %v263 = vpop.f32.mrf.mxu0
  %v264 = vadd.f32 %v53, %v263
  %v265 = vpop.f32.mrf.mxu0
  %v266 = vadd.f32 %v57, %v265
  %267 = vmatprep.mubr.bf16.mxu0 0
  %268 = vmatmul.mubr.bf16.gmra.mxu0 %v184
  %v269 = vpop.f32.mrf.mxu0
  %v270 = vadd.f32 %v53, %v269
  %v271 = vpop.f32.mrf.mxu0
  %v272 = vadd.f32 %v57, %v271
  %v273 = vpop.f32.mrf.mxu0
  %v274 = vadd.f32 %v53, %v273
  %v275 = vpop.f32.mrf.mxu0
  %v276 = vadd.f32 %v57, %v275
  %277 = vmatprep.mubr.bf16.mxu0 0
  %278 = vmatmul.mubr.bf16.gmra.mxu0 %v187
  %v279 = vpop.f32.mrf.mxu0
  %v280 = vadd.f32 %v53, %v279
  %v281 = vpop.f32.mrf.mxu0
  %v282 = vadd.f32 %v57, %v281
  %v283 = vpop.f32.mrf.mxu0
  %v284 = vadd.f32 %v53, %v283
  %v285 = vpop.f32.mrf.mxu0
  %v286 = vadd.f32 %v57, %v285
  %287 = vmatprep.mubr.bf16.mxu0 0
  %288 = vmatmul.mubr.bf16.gmra.mxu0 %v190
  %v289 = vpop.f32.mrf.mxu0
  %v290 = vadd.f32 %v53, %v289
  %v291 = vpop.f32.mrf.mxu0
  %v292 = vadd.f32 %v57, %v291
  %v293 = vpop.f32.mrf.mxu0
  %v294 = vadd.f32 %v53, %v293
  %v295 = vpop.f32.mrf.mxu0
  %v296 = vadd.f32 %v57, %v295
  %297 = vmatprep.mubr.bf16.mxu0 0
  %298 = vmatmul.mubr.bf16.gmra.mxu0 %v193
  %v299 = vpop.f32.mrf.mxu0
  %v300 = vadd.f32 %v53, %v299
  %v301 = vpop.f32.mrf.mxu0
  %v302 = vadd.f32 %v57, %v301
  %v303 = vpop.f32.mrf.mxu0
  %v304 = vadd.f32 %v53, %v303
  %v305 = vpop.f32.mrf.mxu0
  %v306 = vadd.f32 %v57, %v305
  %307 = vdwg.mxu0
  %308 = vmatprep.subr.bf16.mxu0 0
  %309 = vmatpush1.bf16.msra.mxu0 0
  %310 = vmatprep.subr.bf16.mxu0 0
  %311 = vmatpush1.bf16.msra.mxu0 0
  %312 = vmatprep.subr.bf16.mxu0 0
  %313 = vmatpush1.bf16.msra.mxu0 0
  %314 = vmatprep.subr.bf16.mxu0 0
  %315 = vmatpush1.bf16.msra.mxu0 0
  %316 = vmatprep.subr.bf16.mxu0 0
  %317 = vmatpush1.bf16.msra.mxu0 0
  %318 = vmatprep.subr.bf16.mxu0 0
  %319 = vmatpush1.bf16.msra.mxu0 0
  %320 = vmatprep.subr.bf16.mxu0 0
  %321 = vmatpush1.bf16.msra.mxu0 0
  %322 = vmatprep.subr.bf16.mxu0 %v157
  %323 = vmatpush1.bf16.msra.mxu0 %v156
  %324 = vmatprep.subr.bf16.mxu0 0
  %325 = vmatpush2.bf16.msra.mxu0 0
  %326 = vmatprep.subr.bf16.mxu0 0
  %327 = vmatpush2.bf16.msra.mxu0 0
  %328 = vmatprep.subr.bf16.mxu0 0
  %329 = vmatpush2.bf16.msra.mxu0 0
  %330 = vmatprep.subr.bf16.mxu0 0
  %331 = vmatpush2.bf16.msra.mxu0 0
  %332 = vmatprep.subr.bf16.mxu0 0
  %333 = vmatpush2.bf16.msra.mxu0 0
  %334 = vmatprep.subr.bf16.mxu0 0
  %335 = vmatpush2.bf16.msra.mxu0 0
  %336 = vmatprep.subr.bf16.mxu0 0
  %337 = vmatpush2.bf16.msra.mxu0 0
  %338 = vmatprep.subr.bf16.mxu0 0
  %339 = vmatpush2.bf16.msra.mxu0 0
  %340 = vmatprep.mubr.bf16.mxu0 0
  %341 = vmatmul.mubr.bf16.gmra.mxu0 %v172
  %v342 = vpop.f32.mrf.mxu0
  %v343 = vadd.f32 %v61, %v342
  %v344 = vpop.f32.mrf.mxu0
  %v345 = vadd.f32 %v65, %v344
  %v346 = vpop.f32.mrf.mxu0
  %v347 = vadd.f32 %v61, %v346
  %v348 = vpop.f32.mrf.mxu0
  %v349 = vadd.f32 %v65, %v348
  %350 = vmatprep.mubr.bf16.mxu0 0
  %351 = vmatmul.mubr.bf16.gmra.mxu0 %v175
  %v352 = vpop.f32.mrf.mxu0
  %v353 = vadd.f32 %v61, %v352
  %v354 = vpop.f32.mrf.mxu0
  %v355 = vadd.f32 %v65, %v354
  %v356 = vpop.f32.mrf.mxu0
  %v357 = vadd.f32 %v61, %v356
  %v358 = vpop.f32.mrf.mxu0
  %v359 = vadd.f32 %v65, %v358
  %360 = vmatprep.mubr.bf16.mxu0 0
  %361 = vmatmul.mubr.bf16.gmra.mxu0 %v178
  %v362 = vpop.f32.mrf.mxu0
  %v363 = vadd.f32 %v61, %v362
  %v364 = vpop.f32.mrf.mxu0
  %v365 = vadd.f32 %v65, %v364
  %v366 = vpop.f32.mrf.mxu0
  %v367 = vadd.f32 %v61, %v366
  %v368 = vpop.f32.mrf.mxu0
  %v369 = vadd.f32 %v65, %v368
  %370 = vmatprep.mubr.bf16.mxu0 0
  %371 = vmatmul.mubr.bf16.gmra.mxu0 %v181
  %v372 = vpop.f32.mrf.mxu0
  %v373 = vadd.f32 %v61, %v372
  %v374 = vpop.f32.mrf.mxu0
  %v375 = vadd.f32 %v65, %v374
  %v376 = vpop.f32.mrf.mxu0
  %v377 = vadd.f32 %v61, %v376
  %v378 = vpop.f32.mrf.mxu0
  %v379 = vadd.f32 %v65, %v378
  %380 = vmatprep.mubr.bf16.mxu0 0
  %381 = vmatmul.mubr.bf16.gmra.mxu0 %v184
  %v382 = vpop.f32.mrf.mxu0
  %v383 = vadd.f32 %v61, %v382
  %v384 = vpop.f32.mrf.mxu0
  %v385 = vadd.f32 %v65, %v384
  %v386 = vpop.f32.mrf.mxu0
  %v387 = vadd.f32 %v61, %v386
  %v388 = vpop.f32.mrf.mxu0
  %v389 = vadd.f32 %v65, %v388
  %390 = vmatprep.mubr.bf16.mxu0 0
  %391 = vmatmul.mubr.bf16.gmra.mxu0 %v187
  %v392 = vpop.f32.mrf.mxu0
  %v393 = vadd.f32 %v61, %v392
  %v394 = vpop.f32.mrf.mxu0
  %v395 = vadd.f32 %v65, %v394
  %v396 = vpop.f32.mrf.mxu0
  %v397 = vadd.f32 %v61, %v396
  %v398 = vpop.f32.mrf.mxu0
  %v399 = vadd.f32 %v65, %v398
  %400 = vmatprep.mubr.bf16.mxu0 0
  %401 = vmatmul.mubr.bf16.gmra.mxu0 %v190
  %v402 = vpop.f32.mrf.mxu0
  %v403 = vadd.f32 %v61, %v402
  %v404 = vpop.f32.mrf.mxu0
  %v405 = vadd.f32 %v65, %v404
  %v406 = vpop.f32.mrf.mxu0
  %v407 = vadd.f32 %v61, %v406
  %v408 = vpop.f32.mrf.mxu0
  %v409 = vadd.f32 %v65, %v408
  %410 = vmatprep.mubr.bf16.mxu0 0
  %411 = vmatmul.mubr.bf16.gmra.mxu0 %v193
  %v412 = vpop.f32.mrf.mxu0
  %v413 = vadd.f32 %v61, %v412
  %v414 = vpop.f32.mrf.mxu0
  %v415 = vadd.f32 %v65, %v414
  %v416 = vpop.f32.mrf.mxu0
  %v417 = vadd.f32 %v61, %v416
  %v418 = vpop.f32.mrf.mxu0
  %v419 = vadd.f32 %v65, %v418
  %420 = vdwg.mxu0
  %421 = vmatprep.subr.bf16.mxu0 0
  %422 = vmatpush1.bf16.msra.mxu0 0
  %423 = vmatprep.subr.bf16.mxu0 0
  %424 = vmatpush1.bf16.msra.mxu0 0
  %425 = vmatprep.subr.bf16.mxu0 0
  %426 = vmatpush1.bf16.msra.mxu0 0
  %427 = vmatprep.subr.bf16.mxu0 0
  %428 = vmatpush1.bf16.msra.mxu0 0
  %429 = vmatprep.subr.bf16.mxu0 0
  %430 = vmatpush1.bf16.msra.mxu0 0
  %431 = vmatprep.subr.bf16.mxu0 0
  %432 = vmatpush1.bf16.msra.mxu0 0
  %433 = vmatprep.subr.bf16.mxu0 0
  %434 = vmatpush1.bf16.msra.mxu0 0
  %435 = vmatprep.subr.bf16.mxu0 %v159
  %436 = vmatpush1.bf16.msra.mxu0 %v158
  %437 = vmatprep.subr.bf16.mxu0 0
  %438 = vmatpush2.bf16.msra.mxu0 0
  %439 = vmatprep.subr.bf16.mxu0 0
  %440 = vmatpush2.bf16.msra.mxu0 0
  %441 = vmatprep.subr.bf16.mxu0 0
  %442 = vmatpush2.bf16.msra.mxu0 0
  %443 = vmatprep.subr.bf16.mxu0 0
  %444 = vmatpush2.bf16.msra.mxu0 0
  %445 = vmatprep.subr.bf16.mxu0 0
  %446 = vmatpush2.bf16.msra.mxu0 0
  %447 = vmatprep.subr.bf16.mxu0 0
  %448 = vmatpush2.bf16.msra.mxu0 0
  %449 = vmatprep.subr.bf16.mxu0 0
  %450 = vmatpush2.bf16.msra.mxu0 0
  %451 = vmatprep.subr.bf16.mxu0 0
  %452 = vmatpush2.bf16.msra.mxu0 0
  %453 = vmatprep.mubr.bf16.mxu0 0
  %454 = vmatmul.mubr.bf16.gmra.mxu0 %v172
  %v455 = vpop.f32.mrf.mxu0
  %v456 = vadd.f32 %v69, %v455
  %v457 = vpop.f32.mrf.mxu0
  %v458 = vadd.f32 %v73, %v457
  %v459 = vpop.f32.mrf.mxu0
  %v460 = vadd.f32 %v69, %v459
  %v461 = vpop.f32.mrf.mxu0
  %v462 = vadd.f32 %v73, %v461
  %463 = vmatprep.mubr.bf16.mxu0 0
  %464 = vmatmul.mubr.bf16.gmra.mxu0 %v175
  %v465 = vpop.f32.mrf.mxu0
  %v466 = vadd.f32 %v69, %v465
  %v467 = vpop.f32.mrf.mxu0
  %v468 = vadd.f32 %v73, %v467
  %v469 = vpop.f32.mrf.mxu0
  %v470 = vadd.f32 %v69, %v469
  %v471 = vpop.f32.mrf.mxu0
  %v472 = vadd.f32 %v73, %v471
  %473 = vmatprep.mubr.bf16.mxu0 0
  %474 = vmatmul.mubr.bf16.gmra.mxu0 %v178
  %v475 = vpop.f32.mrf.mxu0
  %v476 = vadd.f32 %v69, %v475
  %v477 = vpop.f32.mrf.mxu0
  %v478 = vadd.f32 %v73, %v477
  %v479 = vpop.f32.mrf.mxu0
  %v480 = vadd.f32 %v69, %v479
  %v481 = vpop.f32.mrf.mxu0
  %v482 = vadd.f32 %v73, %v481
  %483 = vmatprep.mubr.bf16.mxu0 0
  %484 = vmatmul.mubr.bf16.gmra.mxu0 %v181
  %v485 = vpop.f32.mrf.mxu0
  %v486 = vadd.f32 %v69, %v485
  %v487 = vpop.f32.mrf.mxu0
  %v488 = vadd.f32 %v73, %v487
  %v489 = vpop.f32.mrf.mxu0
  %v490 = vadd.f32 %v69, %v489
  %v491 = vpop.f32.mrf.mxu0
  %v492 = vadd.f32 %v73, %v491
  %493 = vmatprep.mubr.bf16.mxu0 0
  %494 = vmatmul.mubr.bf16.gmra.mxu0 %v184
  %v495 = vpop.f32.mrf.mxu0
  %v496 = vadd.f32 %v69, %v495
  %v497 = vpop.f32.mrf.mxu0
  %v498 = vadd.f32 %v73, %v497
  %v499 = vpop.f32.mrf.mxu0
  %v500 = vadd.f32 %v69, %v499
  %v501 = vpop.f32.mrf.mxu0
  %v502 = vadd.f32 %v73, %v501
  %503 = vmatprep.mubr.bf16.mxu0 0
  %504 = vmatmul.mubr.bf16.gmra.mxu0 %v187
  %v505 = vpop.f32.mrf.mxu0
  %v506 = vadd.f32 %v69, %v505
  %v507 = vpop.f32.mrf.mxu0
  %v508 = vadd.f32 %v73, %v507
  %v509 = vpop.f32.mrf.mxu0
  %v510 = vadd.f32 %v69, %v509
  %v511 = vpop.f32.mrf.mxu0
  %v512 = vadd.f32 %v73, %v511
  %513 = vmatprep.mubr.bf16.mxu0 0
  %514 = vmatmul.mubr.bf16.gmra.mxu0 %v190
  %v515 = vpop.f32.mrf.mxu0
  %v516 = vadd.f32 %v69, %v515
  %v517 = vpop.f32.mrf.mxu0
  %v518 = vadd.f32 %v73, %v517
  %v519 = vpop.f32.mrf.mxu0
  %v520 = vadd.f32 %v69, %v519
  %v521 = vpop.f32.mrf.mxu0
  %v522 = vadd.f32 %v73, %v521
  %523 = vmatprep.mubr.bf16.mxu0 0
  %524 = vmatmul.mubr.bf16.gmra.mxu0 %v193
  %v525 = vpop.f32.mrf.mxu0
  %v526 = vadd.f32 %v69, %v525
  %v527 = vpop.f32.mrf.mxu0
  %v528 = vadd.f32 %v73, %v527
  %v529 = vpop.f32.mrf.mxu0
  %v530 = vadd.f32 %v69, %v529
  %v531 = vpop.f32.mrf.mxu0
  %v532 = vadd.f32 %v73, %v531
  %533 = vdwg.mxu0
  %534 = vmatprep.subr.bf16.mxu0 0
  %535 = vmatpush1.bf16.msra.mxu0 0
  %536 = vmatprep.subr.bf16.mxu0 0
  %537 = vmatpush1.bf16.msra.mxu0 0
  %538 = vmatprep.subr.bf16.mxu0 0
  %539 = vmatpush1.bf16.msra.mxu0 0
  %540 = vmatprep.subr.bf16.mxu0 0
  %541 = vmatpush1.bf16.msra.mxu0 0
  %542 = vmatprep.subr.bf16.mxu0 0
  %543 = vmatpush1.bf16.msra.mxu0 0
  %544 = vmatprep.subr.bf16.mxu0 0
  %545 = vmatpush1.bf16.msra.mxu0 0
  %546 = vmatprep.subr.bf16.mxu0 0
  %547 = vmatpush1.bf16.msra.mxu0 0
  %548 = vmatprep.subr.bf16.mxu0 %v161
  %549 = vmatpush1.bf16.msra.mxu0 %v160
  %550 = vmatprep.subr.bf16.mxu0 0
  %551 = vmatpush2.bf16.msra.mxu0 0
  %552 = vmatprep.subr.bf16.mxu0 0
  %553 = vmatpush2.bf16.msra.mxu0 0
  %554 = vmatprep.subr.bf16.mxu0 0
  %555 = vmatpush2.bf16.msra.mxu0 0
  %556 = vmatprep.subr.bf16.mxu0 0
  %557 = vmatpush2.bf16.msra.mxu0 0
  %558 = vmatprep.subr.bf16.mxu0 0
  %559 = vmatpush2.bf16.msra.mxu0 0
  %560 = vmatprep.subr.bf16.mxu0 0
  %561 = vmatpush2.bf16.msra.mxu0 0
  %562 = vmatprep.subr.bf16.mxu0 0
  %563 = vmatpush2.bf16.msra.mxu0 0
  %564 = vmatprep.subr.bf16.mxu0 0
  %565 = vmatpush2.bf16.msra.mxu0 0
  %566 = vmatprep.mubr.bf16.mxu0 0
  %567 = vmatmul.mubr.bf16.gmra.mxu0 %v172
  %v568 = vpop.f32.mrf.mxu0
  %v569 = vadd.f32 %v77, %v568
  %v570 = vpop.f32.mrf.mxu0
  %v571 = vadd.f32 %v81, %v570
  %v572 = vpop.f32.mrf.mxu0
  %v573 = vadd.f32 %v77, %v572
  %v574 = vpop.f32.mrf.mxu0
  %v575 = vadd.f32 %v81, %v574
  %576 = vmatprep.mubr.bf16.mxu0 0
  %577 = vmatmul.mubr.bf16.gmra.mxu0 %v175
  %v578 = vpop.f32.mrf.mxu0
  %v579 = vadd.f32 %v77, %v578
  %v580 = vpop.f32.mrf.mxu0
  %v581 = vadd.f32 %v81, %v580
  %v582 = vpop.f32.mrf.mxu0
  %v583 = vadd.f32 %v77, %v582
  %v584 = vpop.f32.mrf.mxu0
  %v585 = vadd.f32 %v81, %v584
  %586 = vmatprep.mubr.bf16.mxu0 0
  %587 = vmatmul.mubr.bf16.gmra.mxu0 %v178
  %v588 = vpop.f32.mrf.mxu0
  %v589 = vadd.f32 %v77, %v588
  %v590 = vpop.f32.mrf.mxu0
  %v591 = vadd.f32 %v81, %v590
  %v592 = vpop.f32.mrf.mxu0
  %v593 = vadd.f32 %v77, %v592
  %v594 = vpop.f32.mrf.mxu0
  %v595 = vadd.f32 %v81, %v594
  %596 = vmatprep.mubr.bf16.mxu0 0
  %597 = vmatmul.mubr.bf16.gmra.mxu0 %v181
  %v598 = vpop.f32.mrf.mxu0
  %v599 = vadd.f32 %v77, %v598
  %v600 = vpop.f32.mrf.mxu0
  %v601 = vadd.f32 %v81, %v600
  %v602 = vpop.f32.mrf.mxu0
  %v603 = vadd.f32 %v77, %v602
  %v604 = vpop.f32.mrf.mxu0
  %v605 = vadd.f32 %v81, %v604
  %606 = vmatprep.mubr.bf16.mxu0 0
  %607 = vmatmul.mubr.bf16.gmra.mxu0 %v184
  %v608 = vpop.f32.mrf.mxu0
  %v609 = vadd.f32 %v77, %v608
  %v610 = vpop.f32.mrf.mxu0
  %v611 = vadd.f32 %v81, %v610
  %v612 = vpop.f32.mrf.mxu0
  %v613 = vadd.f32 %v77, %v612
  %v614 = vpop.f32.mrf.mxu0
  %v615 = vadd.f32 %v81, %v614
  %616 = vmatprep.mubr.bf16.mxu0 0
  %617 = vmatmul.mubr.bf16.gmra.mxu0 %v187
  %v618 = vpop.f32.mrf.mxu0
  %v619 = vadd.f32 %v77, %v618
  %v620 = vpop.f32.mrf.mxu0
  %v621 = vadd.f32 %v81, %v620
  %v622 = vpop.f32.mrf.mxu0
  %v623 = vadd.f32 %v77, %v622
  %v624 = vpop.f32.mrf.mxu0
  %v625 = vadd.f32 %v81, %v624
  %626 = vmatprep.mubr.bf16.mxu0 0
  %627 = vmatmul.mubr.bf16.gmra.mxu0 %v190
  %v628 = vpop.f32.mrf.mxu0
  %v629 = vadd.f32 %v77, %v628
  %v630 = vpop.f32.mrf.mxu0
  %v631 = vadd.f32 %v81, %v630
  %v632 = vpop.f32.mrf.mxu0
  %v633 = vadd.f32 %v77, %v632
  %v634 = vpop.f32.mrf.mxu0
  %v635 = vadd.f32 %v81, %v634
  %636 = vmatprep.mubr.bf16.mxu0 0
  %637 = vmatmul.mubr.bf16.gmra.mxu0 %v193
  %v638 = vpop.f32.mrf.mxu0
  %v639 = vadd.f32 %v77, %v638
  %v640 = vpop.f32.mrf.mxu0
  %v641 = vadd.f32 %v81, %v640
  %v642 = vpop.f32.mrf.mxu0
  %v643 = vadd.f32 %v77, %v642
  %v644 = vpop.f32.mrf.mxu0
  %v645 = vadd.f32 %v81, %v644
  %646 = vdwg.mxu0
  %v647 = vpack.c.bf16 %v234, %v230
  %v648 = vpack.c.bf16 %v236, %v232
  %v649 = vpack.c.bf16 %v347, %v343
  %v650 = vpack.c.bf16 %v349, %v345
  %v651 = vpack.c.bf16 %v244, %v240
  %v652 = vpack.c.bf16 %v246, %v242
  %v653 = vpack.c.bf16 %v357, %v353
  %v654 = vpack.c.bf16 %v359, %v355
  %v655 = vpack.c.bf16 %v254, %v250
  %v656 = vpack.c.bf16 %v256, %v252
  %v657 = vpack.c.bf16 %v367, %v363
  %v658 = vpack.c.bf16 %v369, %v365
  %v659 = vpack.c.bf16 %v264, %v260
  %v660 = vpack.c.bf16 %v266, %v262
  %v661 = vpack.c.bf16 %v377, %v373
  %v662 = vpack.c.bf16 %v379, %v375
  %v663 = vpack.c.bf16 %v274, %v270
  %v664 = vpack.c.bf16 %v276, %v272
  %v665 = vpack.c.bf16 %v387, %v383
  %v666 = vpack.c.bf16 %v389, %v385
  %v667 = vpack.c.bf16 %v284, %v280
  %v668 = vpack.c.bf16 %v286, %v282
  %v669 = vpack.c.bf16 %v397, %v393
  %v670 = vpack.c.bf16 %v399, %v395
  %v671 = vpack.c.bf16 %v294, %v290
  %v672 = vpack.c.bf16 %v296, %v292
  %v673 = vpack.c.bf16 %v407, %v403
  %v674 = vpack.c.bf16 %v409, %v405
  %v675 = vpack.c.bf16 %v304, %v300
  %v676 = vpack.c.bf16 %v306, %v302
  %v677 = vpack.c.bf16 %v417, %v413
  %v678 = vpack.c.bf16 %v419, %v415
  %v711 = vunpack.c.l.b16 %v647
  %v712 = vunpack.c.l.b16 %v648
  %v713 = vunpack.c.l.b16 %v649
  %v714 = vunpack.c.l.b16 %v650
  %v715 = vunpack.c.h.b16 %v647
  %v716 = vunpack.c.h.b16 %v648
  %v717 = vunpack.c.h.b16 %v649
  %v718 = vunpack.c.h.b16 %v650
  %v719 = vunpack.c.l.b16 %v651
  %v720 = vunpack.c.l.b16 %v652
  %v721 = vunpack.c.l.b16 %v653
  %v722 = vunpack.c.l.b16 %v654
  %v723 = vunpack.c.h.b16 %v651
  %v724 = vunpack.c.h.b16 %v652
  %v725 = vunpack.c.h.b16 %v653
  %v726 = vunpack.c.h.b16 %v654
  %v727 = vunpack.c.l.b16 %v655
  %v728 = vunpack.c.l.b16 %v656
  %v729 = vunpack.c.l.b16 %v657
  %v730 = vunpack.c.l.b16 %v658
  %v731 = vunpack.c.h.b16 %v655
  %v732 = vunpack.c.h.b16 %v656
  %v733 = vunpack.c.h.b16 %v657
  %v734 = vunpack.c.h.b16 %v658
  %v735 = vunpack.c.l.b16 %v659
  %v736 = vunpack.c.l.b16 %v660
  %v737 = vunpack.c.l.b16 %v661
  %v738 = vunpack.c.l.b16 %v662
  %v739 = vunpack.c.h.b16 %v659
  %v740 = vunpack.c.h.b16 %v660
  %v741 = vunpack.c.h.b16 %v661
  %v742 = vunpack.c.h.b16 %v662
  %v743 = vunpack.c.l.b16 %v663
  %v744 = vunpack.c.l.b16 %v664
  %v745 = vunpack.c.l.b16 %v665
  %v746 = vunpack.c.l.b16 %v666
  %v747 = vunpack.c.h.b16 %v663
  %v748 = vunpack.c.h.b16 %v664
  %v749 = vunpack.c.h.b16 %v665
  %v750 = vunpack.c.h.b16 %v666
  %v751 = vunpack.c.l.b16 %v667
  %v752 = vunpack.c.l.b16 %v668
  %v753 = vunpack.c.l.b16 %v669
  %v754 = vunpack.c.l.b16 %v670
  %v755 = vunpack.c.h.b16 %v667
  %v756 = vunpack.c.h.b16 %v668
  %v757 = vunpack.c.h.b16 %v669
  %v758 = vunpack.c.h.b16 %v670
  %v759 = vunpack.c.l.b16 %v671
  %v760 = vunpack.c.l.b16 %v672
  %v761 = vunpack.c.l.b16 %v673
  %v762 = vunpack.c.l.b16 %v674
  %v763 = vunpack.c.h.b16 %v671
  %v764 = vunpack.c.h.b16 %v672
  %v765 = vunpack.c.h.b16 %v673
  %v766 = vunpack.c.h.b16 %v674
  %v767 = vunpack.c.l.b16 %v675
  %v768 = vunpack.c.l.b16 %v676
  %v769 = vunpack.c.l.b16 %v677
  %v770 = vunpack.c.l.b16 %v678
  %v771 = vunpack.c.h.b16 %v675
  %v772 = vunpack.c.h.b16 %v676
  %v773 = vunpack.c.h.b16 %v677
  %v774 = vunpack.c.h.b16 %v678
  %v775 = vpack.c.b16 %v712, %v711
  %v776 = vpack.c.b16 %v714, %v713
  %v777 = vpack.c.b16 %v716, %v715
  %v778 = vpack.c.b16 %v718, %v717
  %v779 = vpack.c.b16 %v720, %v719
  %v780 = vpack.c.b16 %v722, %v721
  %v781 = vpack.c.b16 %v724, %v723
  %v782 = vpack.c.b16 %v726, %v725
  %v783 = vpack.c.b16 %v728, %v727
  %v784 = vpack.c.b16 %v730, %v729
  %v785 = vpack.c.b16 %v732, %v731
  %v786 = vpack.c.b16 %v734, %v733
  %v787 = vpack.c.b16 %v736, %v735
  %v788 = vpack.c.b16 %v738, %v737
  %v789 = vpack.c.b16 %v740, %v739
  %v790 = vpack.c.b16 %v742, %v741
  %v791 = vpack.c.b16 %v744, %v743
  %v792 = vpack.c.b16 %v746, %v745
  %v793 = vpack.c.b16 %v748, %v747
  %v794 = vpack.c.b16 %v750, %v749
  %v795 = vpack.c.b16 %v752, %v751
  %v796 = vpack.c.b16 %v754, %v753
  %v797 = vpack.c.b16 %v756, %v755
  %v798 = vpack.c.b16 %v758, %v757
  %v799 = vpack.c.b16 %v760, %v759
  %v800 = vpack.c.b16 %v762, %v761
  %v801 = vpack.c.b16 %v764, %v763
  %v802 = vpack.c.b16 %v766, %v765
  %v803 = vpack.c.b16 %v768, %v767
  %v804 = vpack.c.b16 %v770, %v769
  %v805 = vpack.c.b16 %v772, %v771
  %v806 = vpack.c.b16 %v774, %v773
  %839 = vst [vmem:[#allocation2] sm:$0xff] %v775
  %840 = vst [vmem:[#allocation2 + $0x8] sm:$0xff] %v776
  %841 = vst [vmem:[#allocation2 + $0x10] sm:$0xff] %v777
  %842 = vst [vmem:[#allocation2 + $0x18] sm:$0xff] %v778
  %843 = vst [vmem:[#allocation2 + $0x20] sm:$0xff] %v779
  %844 = vst [vmem:[#allocation2 + $0x28] sm:$0xff] %v780
  %845 = vst [vmem:[#allocation2 + $0x30] sm:$0xff] %v781
  %846 = vst [vmem:[#allocation2 + $0x38] sm:$0xff] %v782
  %847 = vst [vmem:[#allocation2 + $0x40] sm:$0xff] %v783
  %848 = vst [vmem:[#allocation2 + $0x48] sm:$0xff] %v784
  %849 = vst [vmem:[#allocation2 + $0x50] sm:$0xff] %v785
  %850 = vst [vmem:[#allocation2 + $0x58] sm:$0xff] %v786
  %851 = vst [vmem:[#allocation2 + $0x60] sm:$0xff] %v787
  %852 = vst [vmem:[#allocation2 + $0x68] sm:$0xff] %v788
  %853 = vst [vmem:[#allocation2 + $0x70] sm:$0xff] %v789
  %854 = vst [vmem:[#allocation2 + $0x78] sm:$0xff] %v790
  %855 = vst [vmem:[#allocation2 + $0x80] sm:$0xff] %v791
  %856 = vst [vmem:[#allocation2 + $0x88] sm:$0xff] %v792
  %857 = vst [vmem:[#allocation2 + $0x90] sm:$0xff] %v793
  %858 = vst [vmem:[#allocation2 + $0x98] sm:$0xff] %v794
  %859 = vst [vmem:[#allocation2 + $0xa0] sm:$0xff] %v795
  %860 = vst [vmem:[#allocation2 + $0xa8] sm:$0xff] %v796
  %861 = vst [vmem:[#allocation2 + $0xb0] sm:$0xff] %v797
  %862 = vst [vmem:[#allocation2 + $0xb8] sm:$0xff] %v798
  %863 = vst [vmem:[#allocation2 + $0xc0] sm:$0xff] %v799
  %864 = vst [vmem:[#allocation2 + $0xc8] sm:$0xff] %v800
  %865 = vst [vmem:[#allocation2 + $0xd0] sm:$0xff] %v801
  %866 = vst [vmem:[#allocation2 + $0xd8] sm:$0xff] %v802
  %867 = vst [vmem:[#allocation2 + $0xe0] sm:$0xff] %v803
  %868 = vst [vmem:[#allocation2 + $0xe8] sm:$0xff] %v804
  %869 = vst [vmem:[#allocation2 + $0xf0] sm:$0xff] %v805
  %870 = vst [vmem:[#allocation2 + $0xf8] sm:$0xff] %v806
  %v871 = vpack.c.bf16 %v460, %v456
  %v872 = vpack.c.bf16 %v462, %v458
  %v873 = vpack.c.bf16 %v573, %v569
  %v874 = vpack.c.bf16 %v575, %v571
  %v875 = vpack.c.bf16 %v470, %v466
  %v876 = vpack.c.bf16 %v472, %v468
  %v877 = vpack.c.bf16 %v583, %v579
  %v878 = vpack.c.bf16 %v585, %v581
  %v879 = vpack.c.bf16 %v480, %v476
  %v880 = vpack.c.bf16 %v482, %v478
  %v881 = vpack.c.bf16 %v593, %v589
  %v882 = vpack.c.bf16 %v595, %v591
  %v883 = vpack.c.bf16 %v490, %v486
  %v884 = vpack.c.bf16 %v492, %v488
  %v885 = vpack.c.bf16 %v603, %v599
  %v886 = vpack.c.bf16 %v605, %v601
  %v887 = vpack.c.bf16 %v500, %v496
  %v888 = vpack.c.bf16 %v502, %v498
  %v889 = vpack.c.bf16 %v613, %v609
  %v890 = vpack.c.bf16 %v615, %v611
  %v891 = vpack.c.bf16 %v510, %v506
  %v892 = vpack.c.bf16 %v512, %v508
  %v893 = vpack.c.bf16 %v623, %v619
  %v894 = vpack.c.bf16 %v625, %v621
  %v895 = vpack.c.bf16 %v520, %v516
  %v896 = vpack.c.bf16 %v522, %v518
  %v897 = vpack.c.bf16 %v633, %v629
  %v898 = vpack.c.bf16 %v635, %v631
  %v899 = vpack.c.bf16 %v530, %v526
  %v900 = vpack.c.bf16 %v532, %v528
  %v901 = vpack.c.bf16 %v643, %v639
  %v902 = vpack.c.bf16 %v645, %v641
  %v935 = vunpack.c.l.b16 %v871
  %v936 = vunpack.c.l.b16 %v872
  %v937 = vunpack.c.l.b16 %v873
  %v938 = vunpack.c.l.b16 %v874
  %v939 = vunpack.c.h.b16 %v871
  %v940 = vunpack.c.h.b16 %v872
  %v941 = vunpack.c.h.b16 %v873
  %v942 = vunpack.c.h.b16 %v874
  %v943 = vunpack.c.l.b16 %v875
  %v944 = vunpack.c.l.b16 %v876
  %v945 = vunpack.c.l.b16 %v877
  %v946 = vunpack.c.l.b16 %v878
  %v947 = vunpack.c.h.b16 %v875
  %v948 = vunpack.c.h.b16 %v876
  %v949 = vunpack.c.h.b16 %v877
  %v950 = vunpack.c.h.b16 %v878
  %v951 = vunpack.c.l.b16 %v879
  %v952 = vunpack.c.l.b16 %v880
  %v953 = vunpack.c.l.b16 %v881
  %v954 = vunpack.c.l.b16 %v882
  %v955 = vunpack.c.h.b16 %v879
  %v956 = vunpack.c.h.b16 %v880
  %v957 = vunpack.c.h.b16 %v881
  %v958 = vunpack.c.h.b16 %v882
  %v959 = vunpack.c.l.b16 %v883
  %v960 = vunpack.c.l.b16 %v884
  %v961 = vunpack.c.l.b16 %v885
  %v962 = vunpack.c.l.b16 %v886
  %v963 = vunpack.c.h.b16 %v883
  %v964 = vunpack.c.h.b16 %v884
  %v965 = vunpack.c.h.b16 %v885
  %v966 = vunpack.c.h.b16 %v886
  %v967 = vunpack.c.l.b16 %v887
  %v968 = vunpack.c.l.b16 %v888
  %v969 = vunpack.c.l.b16 %v889
  %v970 = vunpack.c.l.b16 %v890
  %v971 = vunpack.c.h.b16 %v887
  %v972 = vunpack.c.h.b16 %v888
  %v973 = vunpack.c.h.b16 %v889
  %v974 = vunpack.c.h.b16 %v890
  %v975 = vunpack.c.l.b16 %v891
  %v976 = vunpack.c.l.b16 %v892
  %v977 = vunpack.c.l.b16 %v893
  %v978 = vunpack.c.l.b16 %v894
  %v979 = vunpack.c.h.b16 %v891
  %v980 = vunpack.c.h.b16 %v892
  %v981 = vunpack.c.h.b16 %v893
  %v982 = vunpack.c.h.b16 %v894
  %v983 = vunpack.c.l.b16 %v895
  %v984 = vunpack.c.l.b16 %v896
  %v985 = vunpack.c.l.b16 %v897
  %v986 = vunpack.c.l.b16 %v898
  %v987 = vunpack.c.h.b16 %v895
  %v988 = vunpack.c.h.b16 %v896
  %v989 = vunpack.c.h.b16 %v897
  %v990 = vunpack.c.h.b16 %v898
  %v991 = vunpack.c.l.b16 %v899
  %v992 = vunpack.c.l.b16 %v900
  %v993 = vunpack.c.l.b16 %v901
  %v994 = vunpack.c.l.b16 %v902
  %v995 = vunpack.c.h.b16 %v899
  %v996 = vunpack.c.h.b16 %v900
  %v997 = vunpack.c.h.b16 %v901
  %v998 = vunpack.c.h.b16 %v902
  %v999 = vpack.c.b16 %v936, %v935
  %v1000 = vpack.c.b16 %v938, %v937
  %v1001 = vpack.c.b16 %v940, %v939
  %v1002 = vpack.c.b16 %v942, %v941
  %v1003 = vpack.c.b16 %v944, %v943
  %v1004 = vpack.c.b16 %v946, %v945
  %v1005 = vpack.c.b16 %v948, %v947
  %v1006 = vpack.c.b16 %v950, %v949
  %v1007 = vpack.c.b16 %v952, %v951
  %v1008 = vpack.c.b16 %v954, %v953
  %v1009 = vpack.c.b16 %v956, %v955
  %v1010 = vpack.c.b16 %v958, %v957
  %v1011 = vpack.c.b16 %v960, %v959
  %v1012 = vpack.c.b16 %v962, %v961
  %v1013 = vpack.c.b16 %v964, %v963
  %v1014 = vpack.c.b16 %v966, %v965
  %v1015 = vpack.c.b16 %v968, %v967
  %v1016 = vpack.c.b16 %v970, %v969
  %v1017 = vpack.c.b16 %v972, %v971
  %v1018 = vpack.c.b16 %v974, %v973
  %v1019 = vpack.c.b16 %v976, %v975
  %v1020 = vpack.c.b16 %v978, %v977
  %v1021 = vpack.c.b16 %v980, %v979
  %v1022 = vpack.c.b16 %v982, %v981
  %v1023 = vpack.c.b16 %v984, %v983
  %v1024 = vpack.c.b16 %v986, %v985
  %v1025 = vpack.c.b16 %v988, %v987
  %v1026 = vpack.c.b16 %v990, %v989
  %v1027 = vpack.c.b16 %v992, %v991
  %v1028 = vpack.c.b16 %v994, %v993
  %v1029 = vpack.c.b16 %v996, %v995
  %v1030 = vpack.c.b16 %v998, %v997
  %1063 = vst [vmem:[#allocation3] sm:$0xff] %v999
  %1064 = vst [vmem:[#allocation3 + $0x8] sm:$0xff] %v1000
  %1065 = vst [vmem:[#allocation3 + $0x10] sm:$0xff] %v1001
  %1066 = vst [vmem:[#allocation3 + $0x18] sm:$0xff] %v1002
  %1067 = vst [vmem:[#allocation3 + $0x20] sm:$0xff] %v1003
  %1068 = vst [vmem:[#allocation3 + $0x28] sm:$0xff] %v1004
  %1069 = vst [vmem:[#allocation3 + $0x30] sm:$0xff] %v1005
  %1070 = vst [vmem:[#allocation3 + $0x38] sm:$0xff] %v1006
  %1071 = vst [vmem:[#allocation3 + $0x40] sm:$0xff] %v1007
  %1072 = vst [vmem:[#allocation3 + $0x48] sm:$0xff] %v1008
  %1073 = vst [vmem:[#allocation3 + $0x50] sm:$0xff] %v1009
  %1074 = vst [vmem:[#allocation3 + $0x58] sm:$0xff] %v1010
  %1075 = vst [vmem:[#allocation3 + $0x60] sm:$0xff] %v1011
  %1076 = vst [vmem:[#allocation3 + $0x68] sm:$0xff] %v1012
  %1077 = vst [vmem:[#allocation3 + $0x70] sm:$0xff] %v1013
  %1078 = vst [vmem:[#allocation3 + $0x78] sm:$0xff] %v1014
  %1079 = vst [vmem:[#allocation3 + $0x80] sm:$0xff] %v1015
  %1080 = vst [vmem:[#allocation3 + $0x88] sm:$0xff] %v1016
  %1081 = vst [vmem:[#allocation3 + $0x90] sm:$0xff] %v1017
  %1082 = vst [vmem:[#allocation3 + $0x98] sm:$0xff] %v1018
  %1083 = vst [vmem:[#allocation3 + $0xa0] sm:$0xff] %v1019
  %1084 = vst [vmem:[#allocation3 + $0xa8] sm:$0xff] %v1020
  %1085 = vst [vmem:[#allocation3 + $0xb0] sm:$0xff] %v1021
  %1086 = vst [vmem:[#allocation3 + $0xb8] sm:$0xff] %v1022
  %1087 = vst [vmem:[#allocation3 + $0xc0] sm:$0xff] %v1023
  %1088 = vst [vmem:[#allocation3 + $0xc8] sm:$0xff] %v1024
  %1089 = vst [vmem:[#allocation3 + $0xd0] sm:$0xff] %v1025
  %1090 = vst [vmem:[#allocation3 + $0xd8] sm:$0xff] %v1026
  %1091 = vst [vmem:[#allocation3 + $0xe0] sm:$0xff] %v1027
  %1092 = vst [vmem:[#allocation3 + $0xe8] sm:$0xff] %v1028
  %1093 = vst [vmem:[#allocation3 + $0xf0] sm:$0xff] %v1029
  %1094 = vst [vmem:[#allocation3 + $0xf8] sm:$0xff] %v1030
  %v1095 = vld [vmem:[%s3] sm:$0xff]
  %v1096 = vld [vmem:[%s3 + $0x8] sm:$0xff]
  %v1097 = vld [vmem:[%s3 + $0x10] sm:$0xff]
  %v1098 = vld [vmem:[%s3 + $0x18] sm:$0xff]
  %v1099 = vld [vmem:[%s3 + $0x20] sm:$0xff]
  %v1100 = vld [vmem:[%s3 + $0x28] sm:$0xff]
  %v1101 = vld [vmem:[%s3 + $0x30] sm:$0xff]
  %v1102 = vld [vmem:[%s3 + $0x38] sm:$0xff]
  %v1103 = vld [vmem:[%s3 + $0x40] sm:$0xff]
  %v1104 = vld [vmem:[%s3 + $0x48] sm:$0xff]
  %v1105 = vld [vmem:[%s3 + $0x50] sm:$0xff]
  %v1106 = vld [vmem:[%s3 + $0x58] sm:$0xff]
  %v1107 = vld [vmem:[%s3 + $0x60] sm:$0xff]
  %v1108 = vld [vmem:[%s3 + $0x68] sm:$0xff]
  %v1109 = vld [vmem:[%s3 + $0x70] sm:$0xff]
  %v1110 = vld [vmem:[%s3 + $0x78] sm:$0xff]
  %v1111 = vld [vmem:[%s3 + $0x80] sm:$0xff]
  %v1112 = vld [vmem:[%s3 + $0x88] sm:$0xff]
  %v1113 = vld [vmem:[%s3 + $0x90] sm:$0xff]
  %v1114 = vld [vmem:[%s3 + $0x98] sm:$0xff]
  %v1115 = vld [vmem:[%s3 + $0xa0] sm:$0xff]
  %v1116 = vld [vmem:[%s3 + $0xa8] sm:$0xff]
  %v1117 = vld [vmem:[%s3 + $0xb0] sm:$0xff]
  %v1118 = vld [vmem:[%s3 + $0xb8] sm:$0xff]
  %v1119 = vld [vmem:[%s3 + $0xc0] sm:$0xff]
  %v1120 = vld [vmem:[%s3 + $0xc8] sm:$0xff]
  %v1121 = vld [vmem:[%s3 + $0xd0] sm:$0xff]
  %v1122 = vld [vmem:[%s3 + $0xd8] sm:$0xff]
  %v1123 = vld [vmem:[%s3 + $0xe0] sm:$0xff]
  %v1124 = vld [vmem:[%s3 + $0xe8] sm:$0xff]
  %v1125 = vld [vmem:[%s3 + $0xf0] sm:$0xff]
  %v1126 = vld [vmem:[%s3 + $0xf8] sm:$0xff]
  %v1127 = vld [vmem:[%s4] sm:$0xff]
  %v1128 = vld [vmem:[%s4 + $0x8] sm:$0xff]
  %v1129 = vld [vmem:[%s4 + $0x10] sm:$0xff]
  %v1130 = vld [vmem:[%s4 + $0x18] sm:$0xff]
  %v1131 = vld [vmem:[%s4 + $0x20] sm:$0xff]
  %v1132 = vld [vmem:[%s4 + $0x28] sm:$0xff]
  %v1133 = vld [vmem:[%s4 + $0x30] sm:$0xff]
  %v1134 = vld [vmem:[%s4 + $0x38] sm:$0xff]
  %v1135 = vld [vmem:[%s4 + $0x40] sm:$0xff]
  %v1136 = vld [vmem:[%s4 + $0x48] sm:$0xff]
  %v1137 = vld [vmem:[%s4 + $0x50] sm:$0xff]
  %v1138 = vld [vmem:[%s4 + $0x58] sm:$0xff]
  %v1139 = vld [vmem:[%s4 + $0x60] sm:$0xff]
  %v1140 = vld [vmem:[%s4 + $0x68] sm:$0xff]
  %v1141 = vld [vmem:[%s4 + $0x70] sm:$0xff]
  %v1142 = vld [vmem:[%s4 + $0x78] sm:$0xff]
  %v1143 = vld [vmem:[%s4 + $0x80] sm:$0xff]
  %v1144 = vld [vmem:[%s4 + $0x88] sm:$0xff]
  %v1145 = vld [vmem:[%s4 + $0x90] sm:$0xff]
  %v1146 = vld [vmem:[%s4 + $0x98] sm:$0xff]
  %v1147 = vld [vmem:[%s4 + $0xa0] sm:$0xff]
  %v1148 = vld [vmem:[%s4 + $0xa8] sm:$0xff]
  %v1149 = vld [vmem:[%s4 + $0xb0] sm:$0xff]
  %v1150 = vld [vmem:[%s4 + $0xb8] sm:$0xff]
  %v1151 = vld [vmem:[%s4 + $0xc0] sm:$0xff]
  %v1152 = vld [vmem:[%s4 + $0xc8] sm:$0xff]
  %v1153 = vld [vmem:[%s4 + $0xd0] sm:$0xff]
  %v1154 = vld [vmem:[%s4 + $0xd8] sm:$0xff]
  %v1155 = vld [vmem:[%s4 + $0xe0] sm:$0xff]
  %v1156 = vld [vmem:[%s4 + $0xe8] sm:$0xff]
  %v1157 = vld [vmem:[%s4 + $0xf0] sm:$0xff]
  %v1158 = vld [vmem:[%s4 + $0xf8] sm:$0xff]
  %v1159 = vld [vmem:[%s1] sm:$0xff]
  %v1160 = vld [vmem:[%s1 + $0x8] sm:$0xff]
  %1161 = vst [vmem:[#allocation4] sm:$0xff] 0.0
  %1162 = vst [vmem:[#allocation4 + $0x8] sm:$0xff] 0.0
  %1163 = vst [vmem:[#allocation5] sm:$0xff] 0.0
  %1164 = vst [vmem:[#allocation5 + $0x8] sm:$0xff] 0.0
  %1165 = vst [vmem:[#allocation6] sm:$0xff] 0.0
  %1166 = vst [vmem:[#allocation6 + $0x8] sm:$0xff] 0.0
  %1167 = vst [vmem:[#allocation7] sm:$0xff] 0.0
  %1168 = vst [vmem:[#allocation7 + $0x8] sm:$0xff] 0.0
  %v1169 = vld [vmem:[#allocation4] sm:$0xff]
  %v1170 = vld [vmem:[#allocation4 + $0x8] sm:$0xff]
  %v1171 = vld [vmem:[#allocation5] sm:$0xff]
  %v1172 = vld [vmem:[#allocation5 + $0x8] sm:$0xff]
  %v1173 = vld [vmem:[#allocation6] sm:$0xff]
  %v1174 = vld [vmem:[#allocation6 + $0x8] sm:$0xff]
  %v1175 = vld [vmem:[#allocation7] sm:$0xff]
  %v1176 = vld [vmem:[#allocation7 + $0x8] sm:$0xff]
  %v1177 = vpack.c.bf16 %v1170, %v1169
  %v1210 = vunpack.c.l.b16 %v1095
  %v1211 = vunpack.c.h.b16 %v1095
  %v1212 = vunpack.c.l.b16 %v1096
  %v1213 = vunpack.c.h.b16 %v1096
  %v1214 = vunpack.c.l.b16 %v1097
  %v1215 = vunpack.c.h.b16 %v1097
  %v1216 = vunpack.c.l.b16 %v1098
  %v1217 = vunpack.c.h.b16 %v1098
  %v1218 = vunpack.c.l.b16 %v1099
  %v1219 = vunpack.c.h.b16 %v1099
  %v1220 = vunpack.c.l.b16 %v1100
  %v1221 = vunpack.c.h.b16 %v1100
  %v1222 = vunpack.c.l.b16 %v1101
  %v1223 = vunpack.c.h.b16 %v1101
  %v1224 = vunpack.c.l.b16 %v1102
  %v1225 = vunpack.c.h.b16 %v1102
  %v1226 = vunpack.c.l.b16 %v1103
  %v1227 = vunpack.c.h.b16 %v1103
  %v1228 = vunpack.c.l.b16 %v1104
  %v1229 = vunpack.c.h.b16 %v1104
  %v1230 = vunpack.c.l.b16 %v1105
  %v1231 = vunpack.c.h.b16 %v1105
  %v1232 = vunpack.c.l.b16 %v1106
  %v1233 = vunpack.c.h.b16 %v1106
  %v1234 = vunpack.c.l.b16 %v1107
  %v1235 = vunpack.c.h.b16 %v1107
  %v1236 = vunpack.c.l.b16 %v1108
  %v1237 = vunpack.c.h.b16 %v1108
  %v1238 = vunpack.c.l.b16 %v1109
  %v1239 = vunpack.c.h.b16 %v1109
  %v1240 = vunpack.c.l.b16 %v1110
  %v1241 = vunpack.c.h.b16 %v1110
  %v1242 = vunpack.c.l.b16 %v1111
  %v1243 = vunpack.c.h.b16 %v1111
  %v1244 = vunpack.c.l.b16 %v1112
  %v1245 = vunpack.c.h.b16 %v1112
  %v1246 = vunpack.c.l.b16 %v1113
  %v1247 = vunpack.c.h.b16 %v1113
  %v1248 = vunpack.c.l.b16 %v1114
  %v1249 = vunpack.c.h.b16 %v1114
  %v1250 = vunpack.c.l.b16 %v1115
  %v1251 = vunpack.c.h.b16 %v1115
  %v1252 = vunpack.c.l.b16 %v1116
  %v1253 = vunpack.c.h.b16 %v1116
  %v1254 = vunpack.c.l.b16 %v1117
  %v1255 = vunpack.c.h.b16 %v1117
  %v1256 = vunpack.c.l.b16 %v1118
  %v1257 = vunpack.c.h.b16 %v1118
  %v1258 = vunpack.c.l.b16 %v1119
  %v1259 = vunpack.c.h.b16 %v1119
  %v1260 = vunpack.c.l.b16 %v1120
  %v1261 = vunpack.c.h.b16 %v1120
  %v1262 = vunpack.c.l.b16 %v1121
  %v1263 = vunpack.c.h.b16 %v1121
  %v1264 = vunpack.c.l.b16 %v1122
  %v1265 = vunpack.c.h.b16 %v1122
  %v1266 = vunpack.c.l.b16 %v1123
  %v1267 = vunpack.c.h.b16 %v1123
  %v1268 = vunpack.c.l.b16 %v1124
  %v1269 = vunpack.c.h.b16 %v1124
  %v1270 = vunpack.c.l.b16 %v1125
  %v1271 = vunpack.c.h.b16 %v1125
  %v1272 = vunpack.c.l.b16 %v1126
  %v1273 = vunpack.c.h.b16 %v1126
  %v1274 = vpack.c.b16 %v1214, %v1210
  %v1275 = vpack.c.b16 %v1215, %v1211
  %v1276 = vpack.c.b16 %v1216, %v1212
  %v1277 = vpack.c.b16 %v1217, %v1213
  %v1278 = vpack.c.b16 %v1222, %v1218
  %v1279 = vpack.c.b16 %v1223, %v1219
  %v1280 = vpack.c.b16 %v1224, %v1220
  %v1281 = vpack.c.b16 %v1225, %v1221
  %v1282 = vpack.c.b16 %v1230, %v1226
  %v1283 = vpack.c.b16 %v1231, %v1227
  %v1284 = vpack.c.b16 %v1232, %v1228
  %v1285 = vpack.c.b16 %v1233, %v1229
  %v1286 = vpack.c.b16 %v1238, %v1234
  %v1287 = vpack.c.b16 %v1239, %v1235
  %v1288 = vpack.c.b16 %v1240, %v1236
  %v1289 = vpack.c.b16 %v1241, %v1237
  %v1290 = vpack.c.b16 %v1246, %v1242
  %v1291 = vpack.c.b16 %v1247, %v1243
  %v1292 = vpack.c.b16 %v1248, %v1244
  %v1293 = vpack.c.b16 %v1249, %v1245
  %v1294 = vpack.c.b16 %v1254, %v1250
  %v1295 = vpack.c.b16 %v1255, %v1251
  %v1296 = vpack.c.b16 %v1256, %v1252
  %v1297 = vpack.c.b16 %v1257, %v1253
  %v1298 = vpack.c.b16 %v1262, %v1258
  %v1299 = vpack.c.b16 %v1263, %v1259
  %v1300 = vpack.c.b16 %v1264, %v1260
  %v1301 = vpack.c.b16 %v1265, %v1261
  %v1302 = vpack.c.b16 %v1270, %v1266
  %v1303 = vpack.c.b16 %v1271, %v1267
  %v1304 = vpack.c.b16 %v1272, %v1268
  %v1305 = vpack.c.b16 %v1273, %v1269
  %1338 = vmatprep.subr.bf16.mxu0 %v1303
  %1339 = vmatpush1.bf16.msra.mxu0 %v1302
  %1340 = vmatprep.subr.bf16.mxu0 %v1299
  %1341 = vmatpush1.bf16.msra.mxu0 %v1298
  %1342 = vmatprep.subr.bf16.mxu0 %v1295
  %1343 = vmatpush1.bf16.msra.mxu0 %v1294
  %1344 = vmatprep.subr.bf16.mxu0 %v1291
  %1345 = vmatpush1.bf16.msra.mxu0 %v1290
  %1346 = vmatprep.subr.bf16.mxu0 %v1287
  %1347 = vmatpush1.bf16.msra.mxu0 %v1286
  %1348 = vmatprep.subr.bf16.mxu0 %v1283
  %1349 = vmatpush1.bf16.msra.mxu0 %v1282
  %1350 = vmatprep.subr.bf16.mxu0 %v1279
  %1351 = vmatpush1.bf16.msra.mxu0 %v1278
  %1352 = vmatprep.subr.bf16.mxu0 %v1275
  %1353 = vmatpush1.bf16.msra.mxu0 %v1274
  %1354 = vmatprep.subr.bf16.mxu0 0
  %1355 = vmatpush2.bf16.msra.mxu0 0
  %1356 = vmatprep.subr.bf16.mxu0 0
  %1357 = vmatpush2.bf16.msra.mxu0 0
  %1358 = vmatprep.subr.bf16.mxu0 0
  %1359 = vmatpush2.bf16.msra.mxu0 0
  %1360 = vmatprep.subr.bf16.mxu0 0
  %1361 = vmatpush2.bf16.msra.mxu0 0
  %1362 = vmatprep.subr.bf16.mxu0 0
  %1363 = vmatpush2.bf16.msra.mxu0 0
  %1364 = vmatprep.subr.bf16.mxu0 0
  %1365 = vmatpush2.bf16.msra.mxu0 0
  %1366 = vmatprep.subr.bf16.mxu0 0
  %1367 = vmatpush2.bf16.msra.mxu0 0
  %1368 = vmatprep.subr.bf16.mxu0 0
  %1369 = vmatpush2.bf16.msra.mxu0 0
  %1370 = vmatprep.mubr.bf16.mxu0 0
  %1371 = vmatmul.mubr.bf16.gmra.mxu0 %v1177
  %v1372 = vpop.f32.mrf.mxu0
  %v1373 = vadd.f32 0.0, %v1372
  %v1374 = vpop.f32.mrf.mxu0
  %v1375 = vadd.f32 0.0, %v1374
  %v1376 = vpop.f32.mrf.mxu0
  %v1377 = vadd.f32 0.0, %v1376
  %v1378 = vpop.f32.mrf.mxu0
  %v1379 = vadd.f32 0.0, %v1378
  %1380 = vdwg.mxu0
  %1381 = vmatprep.subr.bf16.mxu0 %v1305
  %1382 = vmatpush1.bf16.msra.mxu0 %v1304
  %1383 = vmatprep.subr.bf16.mxu0 %v1301
  %1384 = vmatpush1.bf16.msra.mxu0 %v1300
  %1385 = vmatprep.subr.bf16.mxu0 %v1297
  %1386 = vmatpush1.bf16.msra.mxu0 %v1296
  %1387 = vmatprep.subr.bf16.mxu0 %v1293
  %1388 = vmatpush1.bf16.msra.mxu0 %v1292
  %1389 = vmatprep.subr.bf16.mxu0 %v1289
  %1390 = vmatpush1.bf16.msra.mxu0 %v1288
  %1391 = vmatprep.subr.bf16.mxu0 %v1285
  %1392 = vmatpush1.bf16.msra.mxu0 %v1284
  %1393 = vmatprep.subr.bf16.mxu0 %v1281
  %1394 = vmatpush1.bf16.msra.mxu0 %v1280
  %1395 = vmatprep.subr.bf16.mxu0 %v1277
  %1396 = vmatpush1.bf16.msra.mxu0 %v1276
  %1397 = vmatprep.subr.bf16.mxu0 0
  %1398 = vmatpush2.bf16.msra.mxu0 0
  %1399 = vmatprep.subr.bf16.mxu0 0
  %1400 = vmatpush2.bf16.msra.mxu0 0
  %1401 = vmatprep.subr.bf16.mxu0 0
  %1402 = vmatpush2.bf16.msra.mxu0 0
  %1403 = vmatprep.subr.bf16.mxu0 0
  %1404 = vmatpush2.bf16.msra.mxu0 0
  %1405 = vmatprep.subr.bf16.mxu0 0
  %1406 = vmatpush2.bf16.msra.mxu0 0
  %1407 = vmatprep.subr.bf16.mxu0 0
  %1408 = vmatpush2.bf16.msra.mxu0 0
  %1409 = vmatprep.subr.bf16.mxu0 0
  %1410 = vmatpush2.bf16.msra.mxu0 0
  %1411 = vmatprep.subr.bf16.mxu0 0
  %1412 = vmatpush2.bf16.msra.mxu0 0
  %1413 = vmatprep.mubr.bf16.mxu0 0
  %1414 = vmatmul.mubr.bf16.gmra.mxu0 %v1177
  %v1415 = vpop.f32.mrf.mxu0
  %v1416 = vadd.f32 0.0, %v1415
  %v1417 = vpop.f32.mrf.mxu0
  %v1418 = vadd.f32 0.0, %v1417
  %v1419 = vpop.f32.mrf.mxu0
  %v1420 = vadd.f32 0.0, %v1419
  %v1421 = vpop.f32.mrf.mxu0
  %v1422 = vadd.f32 0.0, %v1421
  %1423 = vdwg.mxu0
  %v1424 = vpack.c.bf16 %v1174, %v1173
  %v1457 = vunpack.c.l.b16 %v1127
  %v1458 = vunpack.c.h.b16 %v1127
  %v1459 = vunpack.c.l.b16 %v1128
  %v1460 = vunpack.c.h.b16 %v1128
  %v1461 = vunpack.c.l.b16 %v1129
  %v1462 = vunpack.c.h.b16 %v1129
  %v1463 = vunpack.c.l.b16 %v1130
  %v1464 = vunpack.c.h.b16 %v1130
  %v1465 = vunpack.c.l.b16 %v1131
  %v1466 = vunpack.c.h.b16 %v1131
  %v1467 = vunpack.c.l.b16 %v1132
  %v1468 = vunpack.c.h.b16 %v1132
  %v1469 = vunpack.c.l.b16 %v1133
  %v1470 = vunpack.c.h.b16 %v1133
  %v1471 = vunpack.c.l.b16 %v1134
  %v1472 = vunpack.c.h.b16 %v1134
  %v1473 = vunpack.c.l.b16 %v1135
  %v1474 = vunpack.c.h.b16 %v1135
  %v1475 = vunpack.c.l.b16 %v1136
  %v1476 = vunpack.c.h.b16 %v1136
  %v1477 = vunpack.c.l.b16 %v1137
  %v1478 = vunpack.c.h.b16 %v1137
  %v1479 = vunpack.c.l.b16 %v1138
  %v1480 = vunpack.c.h.b16 %v1138
  %v1481 = vunpack.c.l.b16 %v1139
  %v1482 = vunpack.c.h.b16 %v1139
  %v1483 = vunpack.c.l.b16 %v1140
  %v1484 = vunpack.c.h.b16 %v1140
  %v1485 = vunpack.c.l.b16 %v1141
  %v1486 = vunpack.c.h.b16 %v1141
  %v1487 = vunpack.c.l.b16 %v1142
  %v1488 = vunpack.c.h.b16 %v1142
  %v1489 = vunpack.c.l.b16 %v1143
  %v1490 = vunpack.c.h.b16 %v1143
  %v1491 = vunpack.c.l.b16 %v1144
  %v1492 = vunpack.c.h.b16 %v1144
  %v1493 = vunpack.c.l.b16 %v1145
  %v1494 = vunpack.c.h.b16 %v1145
  %v1495 = vunpack.c.l.b16 %v1146
  %v1496 = vunpack.c.h.b16 %v1146
  %v1497 = vunpack.c.l.b16 %v1147
  %v1498 = vunpack.c.h.b16 %v1147
  %v1499 = vunpack.c.l.b16 %v1148
  %v1500 = vunpack.c.h.b16 %v1148
  %v1501 = vunpack.c.l.b16 %v1149
  %v1502 = vunpack.c.h.b16 %v1149
  %v1503 = vunpack.c.l.b16 %v1150
  %v1504 = vunpack.c.h.b16 %v1150
  %v1505 = vunpack.c.l.b16 %v1151
  %v1506 = vunpack.c.h.b16 %v1151
  %v1507 = vunpack.c.l.b16 %v1152
  %v1508 = vunpack.c.h.b16 %v1152
  %v1509 = vunpack.c.l.b16 %v1153
  %v1510 = vunpack.c.h.b16 %v1153
  %v1511 = vunpack.c.l.b16 %v1154
  %v1512 = vunpack.c.h.b16 %v1154
  %v1513 = vunpack.c.l.b16 %v1155
  %v1514 = vunpack.c.h.b16 %v1155
  %v1515 = vunpack.c.l.b16 %v1156
  %v1516 = vunpack.c.h.b16 %v1156
  %v1517 = vunpack.c.l.b16 %v1157
  %v1518 = vunpack.c.h.b16 %v1157
  %v1519 = vunpack.c.l.b16 %v1158
  %v1520 = vunpack.c.h.b16 %v1158
  %v1521 = vpack.c.b16 %v1461, %v1457
  %v1522 = vpack.c.b16 %v1462, %v1458
  %v1523 = vpack.c.b16 %v1463, %v1459
  %v1524 = vpack.c.b16 %v1464, %v1460
  %v1525 = vpack.c.b16 %v1469, %v1465
  %v1526 = vpack.c.b16 %v1470, %v1466
  %v1527 = vpack.c.b16 %v1471, %v1467
  %v1528 = vpack.c.b16 %v1472, %v1468
  %v1529 = vpack.c.b16 %v1477, %v1473
  %v1530 = vpack.c.b16 %v1478, %v1474
  %v1531 = vpack.c.b16 %v1479, %v1475
  %v1532 = vpack.c.b16 %v1480, %v1476
  %v1533 = vpack.c.b16 %v1485, %v1481
  %v1534 = vpack.c.b16 %v1486, %v1482
  %v1535 = vpack.c.b16 %v1487, %v1483
  %v1536 = vpack.c.b16 %v1488, %v1484
  %v1537 = vpack.c.b16 %v1493, %v1489
  %v1538 = vpack.c.b16 %v1494, %v1490
  %v1539 = vpack.c.b16 %v1495, %v1491
  %v1540 = vpack.c.b16 %v1496, %v1492
  %v1541 = vpack.c.b16 %v1501, %v1497
  %v1542 = vpack.c.b16 %v1502, %v1498
  %v1543 = vpack.c.b16 %v1503, %v1499
  %v1544 = vpack.c.b16 %v1504, %v1500
  %v1545 = vpack.c.b16 %v1509, %v1505
  %v1546 = vpack.c.b16 %v1510, %v1506
  %v1547 = vpack.c.b16 %v1511, %v1507
  %v1548 = vpack.c.b16 %v1512, %v1508
  %v1549 = vpack.c.b16 %v1517, %v1513
  %v1550 = vpack.c.b16 %v1518, %v1514
  %v1551 = vpack.c.b16 %v1519, %v1515
  %v1552 = vpack.c.b16 %v1520, %v1516
  %1585 = vmatprep.subr.bf16.mxu0 %v1550
  %1586 = vmatpush1.bf16.msra.mxu0 %v1549
  %1587 = vmatprep.subr.bf16.mxu0 %v1546
  %1588 = vmatpush1.bf16.msra.mxu0 %v1545
  %1589 = vmatprep.subr.bf16.mxu0 %v1542
  %1590 = vmatpush1.bf16.msra.mxu0 %v1541
  %1591 = vmatprep.subr.bf16.mxu0 %v1538
  %1592 = vmatpush1.bf16.msra.mxu0 %v1537
  %1593 = vmatprep.subr.bf16.mxu0 %v1534
  %1594 = vmatpush1.bf16.msra.mxu0 %v1533
  %1595 = vmatprep.subr.bf16.mxu0 %v1530
  %1596 = vmatpush1.bf16.msra.mxu0 %v1529
  %1597 = vmatprep.subr.bf16.mxu0 %v1526
  %1598 = vmatpush1.bf16.msra.mxu0 %v1525
  %1599 = vmatprep.subr.bf16.mxu0 %v1522
  %1600 = vmatpush1.bf16.msra.mxu0 %v1521
  %1601 = vmatprep.subr.bf16.mxu0 0
  %1602 = vmatpush2.bf16.msra.mxu0 0
  %1603 = vmatprep.subr.bf16.mxu0 0
  %1604 = vmatpush2.bf16.msra.mxu0 0
  %1605 = vmatprep.subr.bf16.mxu0 0
  %1606 = vmatpush2.bf16.msra.mxu0 0
  %1607 = vmatprep.subr.bf16.mxu0 0
  %1608 = vmatpush2.bf16.msra.mxu0 0
  %1609 = vmatprep.subr.bf16.mxu0 0
  %1610 = vmatpush2.bf16.msra.mxu0 0
  %1611 = vmatprep.subr.bf16.mxu0 0
  %1612 = vmatpush2.bf16.msra.mxu0 0
  %1613 = vmatprep.subr.bf16.mxu0 0
  %1614 = vmatpush2.bf16.msra.mxu0 0
  %1615 = vmatprep.subr.bf16.mxu0 0
  %1616 = vmatpush2.bf16.msra.mxu0 0
  %1617 = vmatprep.mubr.bf16.mxu0 0
  %1618 = vmatmul.mubr.bf16.gmra.mxu0 %v1424
  %v1619 = vpop.f32.mrf.mxu0
  %v1620 = vadd.f32 0.0, %v1619
  %v1621 = vpop.f32.mrf.mxu0
  %v1622 = vadd.f32 0.0, %v1621
  %v1623 = vpop.f32.mrf.mxu0
  %v1624 = vadd.f32 0.0, %v1623
  %v1625 = vpop.f32.mrf.mxu0
  %v1626 = vadd.f32 0.0, %v1625
  %1627 = vdwg.mxu0
  %1628 = vmatprep.subr.bf16.mxu0 %v1552
  %1629 = vmatpush1.bf16.msra.mxu0 %v1551
  %1630 = vmatprep.subr.bf16.mxu0 %v1548
  %1631 = vmatpush1.bf16.msra.mxu0 %v1547
  %1632 = vmatprep.subr.bf16.mxu0 %v1544
  %1633 = vmatpush1.bf16.msra.mxu0 %v1543
  %1634 = vmatprep.subr.bf16.mxu0 %v1540
  %1635 = vmatpush1.bf16.msra.mxu0 %v1539
  %1636 = vmatprep.subr.bf16.mxu0 %v1536
  %1637 = vmatpush1.bf16.msra.mxu0 %v1535
  %1638 = vmatprep.subr.bf16.mxu0 %v1532
  %1639 = vmatpush1.bf16.msra.mxu0 %v1531
  %1640 = vmatprep.subr.bf16.mxu0 %v1528
  %1641 = vmatpush1.bf16.msra.mxu0 %v1527
  %1642 = vmatprep.subr.bf16.mxu0 %v1524
  %1643 = vmatpush1.bf16.msra.mxu0 %v1523
  %1644 = vmatprep.subr.bf16.mxu0 0
  %1645 = vmatpush2.bf16.msra.mxu0 0
  %1646 = vmatprep.subr.bf16.mxu0 0
  %1647 = vmatpush2.bf16.msra.mxu0 0
  %1648 = vmatprep.subr.bf16.mxu0 0
  %1649 = vmatpush2.bf16.msra.mxu0 0
  %1650 = vmatprep.subr.bf16.mxu0 0
  %1651 = vmatpush2.bf16.msra.mxu0 0
  %1652 = vmatprep.subr.bf16.mxu0 0
  %1653 = vmatpush2.bf16.msra.mxu0 0
  %1654 = vmatprep.subr.bf16.mxu0 0
  %1655 = vmatpush2.bf16.msra.mxu0 0
  %1656 = vmatprep.subr.bf16.mxu0 0
  %1657 = vmatpush2.bf16.msra.mxu0 0
  %1658 = vmatprep.subr.bf16.mxu0 0
  %1659 = vmatpush2.bf16.msra.mxu0 0
  %1660 = vmatprep.mubr.bf16.mxu0 0
  %1661 = vmatmul.mubr.bf16.gmra.mxu0 %v1424
  %v1662 = vpop.f32.mrf.mxu0
  %v1663 = vadd.f32 0.0, %v1662
  %v1664 = vpop.f32.mrf.mxu0
  %v1665 = vadd.f32 0.0, %v1664
  %v1666 = vpop.f32.mrf.mxu0
  %v1667 = vadd.f32 0.0, %v1666
  %v1668 = vpop.f32.mrf.mxu0
  %v1669 = vadd.f32 0.0, %v1668
  %1670 = vdwg.mxu0
  %v1671 = vld [vmem:[#allocation2] sm:$0xff]
  %v1672 = vld [vmem:[#allocation2 + $0x8] sm:$0xff]
  %v1673 = vld [vmem:[#allocation2 + $0x10] sm:$0xff]
  %v1674 = vld [vmem:[#allocation2 + $0x18] sm:$0xff]
  %v1675 = vunpack.c.l.bf16 %v1671
  %v1676 = vunpack.c.h.bf16 %v1671
  %v1677 = vunpack.c.l.bf16 %v1672
  %v1678 = vunpack.c.h.bf16 %v1672
  %v1679 = vunpack.c.l.bf16 %v1673
  %v1680 = vunpack.c.h.bf16 %v1673
  %v1681 = vunpack.c.l.bf16 %v1674
  %v1682 = vunpack.c.h.bf16 %v1674
  %v1683 = vadd.f32 %v1675, %v1373
  %v1684 = vadd.f32 %v1676, %v1375
  %v1685 = vadd.f32 %v1677, %v1416
  %v1686 = vadd.f32 %v1678, %v1418
  %v1687 = vadd.f32 %v1679, %v1377
  %v1688 = vadd.f32 %v1680, %v1379
  %v1689 = vadd.f32 %v1681, %v1420
  %v1690 = vadd.f32 %v1682, %v1422
  %s1691 = scalar_lea.vmem [#allocation3], 224
  %v1692 = vld [vmem:[%s1691] sm:$0xff]
  %v1693 = vld [vmem:[%s1691 + $0x8] sm:$0xff]
  %v1694 = vld [vmem:[%s1691 + $0x10] sm:$0xff]
  %v1695 = vld [vmem:[%s1691 + $0x18] sm:$0xff]
  %v1696 = vunpack.c.l.bf16 %v1692
  %v1697 = vunpack.c.h.bf16 %v1692
  %v1698 = vunpack.c.l.bf16 %v1693
  %v1699 = vunpack.c.h.bf16 %v1693
  %v1700 = vunpack.c.l.bf16 %v1694
  %v1701 = vunpack.c.h.bf16 %v1694
  %v1702 = vunpack.c.l.bf16 %v1695
  %v1703 = vunpack.c.h.bf16 %v1695
  %v1704 = vadd.f32 %v1696, %v1620
  %v1705 = vadd.f32 %v1697, %v1622
  %v1706 = vadd.f32 %v1698, %v1663
  %v1707 = vadd.f32 %v1699, %v1665
  %v1708 = vadd.f32 %v1700, %v1624
  %v1709 = vadd.f32 %v1701, %v1626
  %v1710 = vadd.f32 %v1702, %v1667
  %v1711 = vadd.f32 %v1703, %v1669
  %v1712 = vxor.u32 %v1683, 2147483648
  %v1713 = vxor.u32 %v1687, 2147483648
  %v1714 = vmul.f32 %v1712, 1.442695
  %v1715 = vpow.pop %v1714
  %v1716 = vmul.f32 %v1713, 1.442695
  %v1717 = vpow.pop %v1716
  %v1718 = vadd.f32 %v1715, 1.0
  %v1719 = vadd.f32 %v1717, 1.0
  %v1720 = vrcp.pop %v1718
  %v1721 = vmul.f32 1.0, %v1720
  %v1722 = vrcp.pop %v1719
  %v1723 = vmul.f32 1.0, %v1722
  %v1724 = vxor.u32 %v1684, 2147483648
  %v1725 = vxor.u32 %v1688, 2147483648
  %v1726 = vmul.f32 %v1724, 1.442695
  %v1727 = vpow.pop %v1726
  %v1728 = vmul.f32 %v1725, 1.442695
  %v1729 = vpow.pop %v1728
  %v1730 = vadd.f32 %v1727, 1.0
  %v1731 = vadd.f32 %v1729, 1.0
  %v1732 = vrcp.pop %v1730
  %v1733 = vmul.f32 1.0, %v1732
  %v1734 = vrcp.pop %v1731
  %v1735 = vmul.f32 1.0, %v1734
  %v1736 = vtanh.pop %v1685
  %v1737 = vtanh.pop %v1689
  %v1738 = vxor.u32 %v1686, 2147483648
  %v1739 = vxor.u32 %v1690, 2147483648
  %v1740 = vmul.f32 %v1738, 1.442695
  %v1741 = vpow.pop %v1740
  %v1742 = vmul.f32 %v1739, 1.442695
  %v1743 = vpow.pop %v1742
  %v1744 = vadd.f32 %v1741, 1.0
  %v1745 = vadd.f32 %v1743, 1.0
  %v1746 = vrcp.pop %v1744
  %v1747 = vmul.f32 1.0, %v1746
  %v1748 = vrcp.pop %v1745
  %v1749 = vmul.f32 1.0, %v1748
  %v1750 = vmul.f32 %v1733, %v1171
  %v1751 = vmul.f32 %v1735, %v1172
  %v1752 = vmul.f32 %v1721, %v1736
  %v1753 = vmul.f32 %v1723, %v1737
  %v1754 = vadd.f32 %v1750, %v1752
  %v1755 = vadd.f32 %v1751, %v1753
  %v1756 = vtanh.pop %v1754
  %v1757 = vtanh.pop %v1755
  %v1758 = vmul.f32 %v1747, %v1756
  %v1759 = vmul.f32 %v1749, %v1757
  %v1760 = vxor.u32 %v1704, 2147483648
  %v1761 = vxor.u32 %v1708, 2147483648
  %v1762 = vmul.f32 %v1760, 1.442695
  %v1763 = vpow.pop %v1762
  %v1764 = vmul.f32 %v1761, 1.442695
  %v1765 = vpow.pop %v1764
  %v1766 = vadd.f32 %v1763, 1.0
  %v1767 = vadd.f32 %v1765, 1.0
  %v1768 = vrcp.pop %v1766
  %v1769 = vmul.f32 1.0, %v1768
  %v1770 = vrcp.pop %v1767
  %v1771 = vmul.f32 1.0, %v1770
  %v1772 = vxor.u32 %v1705, 2147483648
  %v1773 = vxor.u32 %v1709, 2147483648
  %v1774 = vmul.f32 %v1772, 1.442695
  %v1775 = vpow.pop %v1774
  %v1776 = vmul.f32 %v1773, 1.442695
  %v1777 = vpow.pop %v1776
  %v1778 = vadd.f32 %v1775, 1.0
  %v1779 = vadd.f32 %v1777, 1.0
  %v1780 = vrcp.pop %v1778
  %v1781 = vmul.f32 1.0, %v1780
  %v1782 = vrcp.pop %v1779
  %v1783 = vmul.f32 1.0, %v1782
  %v1784 = vtanh.pop %v1706
  %v1785 = vtanh.pop %v1710
  %v1786 = vxor.u32 %v1707, 2147483648
  %v1787 = vxor.u32 %v1711, 2147483648
  %v1788 = vmul.f32 %v1786, 1.442695
  %v1789 = vpow.pop %v1788
  %v1790 = vmul.f32 %v1787, 1.442695
  %v1791 = vpow.pop %v1790
  %v1792 = vadd.f32 %v1789, 1.0
  %v1793 = vadd.f32 %v1791, 1.0
  %v1794 = vrcp.pop %v1792
  %v1795 = vmul.f32 1.0, %v1794
  %v1796 = vrcp.pop %v1793
  %v1797 = vmul.f32 1.0, %v1796
  %v1798 = vmul.f32 %v1781, %v1175
  %v1799 = vmul.f32 %v1783, %v1176
  %v1800 = vmul.f32 %v1769, %v1784
  %v1801 = vmul.f32 %v1771, %v1785
  %v1802 = vadd.f32 %v1798, %v1800
  %v1803 = vadd.f32 %v1799, %v1801
  %v1804 = vtanh.pop %v1802
  %v1805 = vtanh.pop %v1803
  %v1806 = vmul.f32 %v1795, %v1804
  %v1807 = vmul.f32 %v1797, %v1805
  %vm1808 = vcmp.gt.s32.totalorder %v1159, 0
  %vm1809 = vcmp.gt.s32.totalorder %v1160, 0
  %vm1810 = vcmp.gt.s32.totalorder %v1159, 7
  %vm1811 = vcmp.gt.s32.totalorder %v1160, 7
  %v1812 = vsel %vm1808, 1, 0
  %v1813 = vsel %vm1809, 1, 0
  %1814 = vset.pattern.permute.xlu0 0
  %1815 = vperm.xlu0 %1814, %v1812
  %v1816 = vpop.permute.xlu0 %1815
  %1817 = vset.pattern.permute.xlu0 0
  %1818 = vperm.xlu0 %1817, %v1813
  %v1819 = vpop.permute.xlu0 %1818
  %vm1820 = vcmp.eq.s32.totalorder %v1816, 1
  %vm1821 = vcmp.eq.s32.totalorder %v1819, 1
  %v1822 = vsel %vm1820, %v1758, 0.0
  %v1823 = vsel %vm1821, %v1759, 0.0
  %v1824 = vpack.c.bf16 %v1823, %v1822
  %v1826 = vunpack.c.l.b16 %v1824
  %v1827 = vunpack.c.h.b16 %v1824
  %v1828 = vpack.c.b16 %v1826, %v1826
  %v1829 = vpack.c.b16 %v1827, %v1827
  %1832 = vst [vmem:[%s6] sm:$0xf] %v1828
  %1833 = vst [vmem:[%s6 + $0x8] sm:$0xf] %v1829
  %v1834 = vsel %vm1810, 1, 0
  %v1835 = vsel %vm1811, 1, 0
  %1836 = vset.pattern.permute.xlu0 0
  %1837 = vperm.xlu0 %1836, %v1834
  %v1838 = vpop.permute.xlu0 %1837
  %1839 = vset.pattern.permute.xlu0 0
  %1840 = vperm.xlu0 %1839, %v1835
  %v1841 = vpop.permute.xlu0 %1840
  %vm1842 = vcmp.eq.s32.totalorder %v1838, 1
  %vm1843 = vcmp.eq.s32.totalorder %v1841, 1
  %v1844 = vsel %vm1842, %v1806, 0.0
  %v1845 = vsel %vm1843, %v1807, 0.0
  %v1846 = vpack.c.bf16 %v1845, %v1844
  %v1848 = vunpack.c.l.b16 %v1846
  %v1849 = vunpack.c.h.b16 %v1846
  %v1850 = vpack.c.b16 %v1848, %v1848
  %v1851 = vpack.c.b16 %v1849, %v1849
  %s1854 = scalar_lea.vmem %s6, 112
  %1855 = vst [vmem:[%s1854 + $0x4] sm:$0xf] %v1850
  %1856 = vst [vmem:[%s1854 + $0xc] sm:$0xf] %v1851
  %v1857 = vsel %vm1820, %v1758, %v1169
  %v1858 = vsel %vm1821, %v1759, %v1170
  %1859 = vst [vmem:[#allocation4] sm:$0xff] %v1857
  %1860 = vst [vmem:[#allocation4 + $0x8] sm:$0xff] %v1858
  %v1861 = vsel %vm1820, %v1754, %v1171
  %v1862 = vsel %vm1821, %v1755, %v1172
  %1863 = vst [vmem:[#allocation5] sm:$0xff] %v1861
  %1864 = vst [vmem:[#allocation5 + $0x8] sm:$0xff] %v1862
  %v1865 = vsel %vm1842, %v1806, %v1173
  %v1866 = vsel %vm1843, %v1807, %v1174
  %1867 = vst [vmem:[#allocation6] sm:$0xff] %v1865
  %1868 = vst [vmem:[#allocation6 + $0x8] sm:$0xff] %v1866
  %v1869 = vsel %vm1842, %v1802, %v1175
  %v1870 = vsel %vm1843, %v1803, %v1176
  %1871 = vst [vmem:[#allocation7] sm:$0xff] %v1869
  %1872 = vst [vmem:[#allocation7 + $0x8] sm:$0xff] %v1870
  %v1873 = vld [vmem:[#allocation4] sm:$0xff]
  %v1874 = vld [vmem:[#allocation4 + $0x8] sm:$0xff]
  %v1875 = vld [vmem:[#allocation5] sm:$0xff]
  %v1876 = vld [vmem:[#allocation5 + $0x8] sm:$0xff]
  %v1877 = vld [vmem:[#allocation6] sm:$0xff]
  %v1878 = vld [vmem:[#allocation6 + $0x8] sm:$0xff]
  %v1879 = vld [vmem:[#allocation7] sm:$0xff]
  %v1880 = vld [vmem:[#allocation7 + $0x8] sm:$0xff]
  %v1881 = vpack.c.bf16 %v1874, %v1873
  %1882 = vmatprep.subr.bf16.mxu0 %v1303
  %1883 = vmatpush1.bf16.msra.mxu0 %v1302
  %1884 = vmatprep.subr.bf16.mxu0 %v1299
  %1885 = vmatpush1.bf16.msra.mxu0 %v1298
  %1886 = vmatprep.subr.bf16.mxu0 %v1295
  %1887 = vmatpush1.bf16.msra.mxu0 %v1294
  %1888 = vmatprep.subr.bf16.mxu0 %v1291
  %1889 = vmatpush1.bf16.msra.mxu0 %v1290
  %1890 = vmatprep.subr.bf16.mxu0 %v1287
  %1891 = vmatpush1.bf16.msra.mxu0 %v1286
  %1892 = vmatprep.subr.bf16.mxu0 %v1283
  %1893 = vmatpush1.bf16.msra.mxu0 %v1282
  %1894 = vmatprep.subr.bf16.mxu0 %v1279
  %1895 = vmatpush1.bf16.msra.mxu0 %v1278
  %1896 = vmatprep.subr.bf16.mxu0 %v1275
  %1897 = vmatpush1.bf16.msra.mxu0 %v1274
  %1898 = vmatprep.subr.bf16.mxu0 0
  %1899 = vmatpush2.bf16.msra.mxu0 0
  %1900 = vmatprep.subr.bf16.mxu0 0
  %1901 = vmatpush2.bf16.msra.mxu0 0
  %1902 = vmatprep.subr.bf16.mxu0 0
  %1903 = vmatpush2.bf16.msra.mxu0 0
  %1904 = vmatprep.subr.bf16.mxu0 0
  %1905 = vmatpush2.bf16.msra.mxu0 0
  %1906 = vmatprep.subr.bf16.mxu0 0
  %1907 = vmatpush2.bf16.msra.mxu0 0
  %1908 = vmatprep.subr.bf16.mxu0 0
  %1909 = vmatpush2.bf16.msra.mxu0 0
  %1910 = vmatprep.subr.bf16.mxu0 0
  %1911 = vmatpush2.bf16.msra.mxu0 0
  %1912 = vmatprep.subr.bf16.mxu0 0
  %1913 = vmatpush2.bf16.msra.mxu0 0
  %1914 = vmatprep.mubr.bf16.mxu0 0
  %1915 = vmatmul.mubr.bf16.gmra.mxu0 %v1881
  %v1916 = vpop.f32.mrf.mxu0
  %v1917 = vadd.f32 0.0, %v1916
  %v1918 = vpop.f32.mrf.mxu0
  %v1919 = vadd.f32 0.0, %v1918
  %v1920 = vpop.f32.mrf.mxu0
  %v1921 = vadd.f32 0.0, %v1920
  %v1922 = vpop.f32.mrf.mxu0
  %v1923 = vadd.f32 0.0, %v1922
  %1924 = vdwg.mxu0
  %1925 = vmatprep.subr.bf16.mxu0 %v1305
  %1926 = vmatpush1.bf16.msra.mxu0 %v1304
  %1927 = vmatprep.subr.bf16.mxu0 %v1301
  %1928 = vmatpush1.bf16.msra.mxu0 %v1300
  %1929 = vmatprep.subr.bf16.mxu0 %v1297
  %1930 = vmatpush1.bf16.msra.mxu0 %v1296
  %1931 = vmatprep.subr.bf16.mxu0 %v1293
  %1932 = vmatpush1.bf16.msra.mxu0 %v1292
  %1933 = vmatprep.subr.bf16.mxu0 %v1289
  %1934 = vmatpush1.bf16.msra.mxu0 %v1288
  %1935 = vmatprep.subr.bf16.mxu0 %v1285
  %1936 = vmatpush1.bf16.msra.mxu0 %v1284
  %1937 = vmatprep.subr.bf16.mxu0 %v1281
  %1938 = vmatpush1.bf16.msra.mxu0 %v1280
  %1939 = vmatprep.subr.bf16.mxu0 %v1277
  %1940 = vmatpush1.bf16.msra.mxu0 %v1276
  %1941 = vmatprep.subr.bf16.mxu0 0
  %1942 = vmatpush2.bf16.msra.mxu0 0
  %1943 = vmatprep.subr.bf16.mxu0 0
  %1944 = vmatpush2.bf16.msra.mxu0 0
  %1945 = vmatprep.subr.bf16.mxu0 0
  %1946 = vmatpush2.bf16.msra.mxu0 0
  %1947 = vmatprep.subr.bf16.mxu0 0
  %1948 = vmatpush2.bf16.msra.mxu0 0
  %1949 = vmatprep.subr.bf16.mxu0 0
  %1950 = vmatpush2.bf16.msra.mxu0 0
  %1951 = vmatprep.subr.bf16.mxu0 0
  %1952 = vmatpush2.bf16.msra.mxu0 0
  %1953 = vmatprep.subr.bf16.mxu0 0
  %1954 = vmatpush2.bf16.msra.mxu0 0
  %1955 = vmatprep.subr.bf16.mxu0 0
  %1956 = vmatpush2.bf16.msra.mxu0 0
  %1957 = vmatprep.mubr.bf16.mxu0 0
  %1958 = vmatmul.mubr.bf16.gmra.mxu0 %v1881
  %v1959 = vpop.f32.mrf.mxu0
  %v1960 = vadd.f32 0.0, %v1959
  %v1961 = vpop.f32.mrf.mxu0
  %v1962 = vadd.f32 0.0, %v1961
  %v1963 = vpop.f32.mrf.mxu0
  %v1964 = vadd.f32 0.0, %v1963
  %v1965 = vpop.f32.mrf.mxu0
  %v1966 = vadd.f32 0.0, %v1965
  %1967 = vdwg.mxu0
  %v1968 = vpack.c.bf16 %v1878, %v1877
  %1969 = vmatprep.subr.bf16.mxu0 %v1550
  %1970 = vmatpush1.bf16.msra.mxu0 %v1549
  %1971 = vmatprep.subr.bf16.mxu0 %v1546
  %1972 = vmatpush1.bf16.msra.mxu0 %v1545
  %1973 = vmatprep.subr.bf16.mxu0 %v1542
  %1974 = vmatpush1.bf16.msra.mxu0 %v1541
  %1975 = vmatprep.subr.bf16.mxu0 %v1538
  %1976 = vmatpush1.bf16.msra.mxu0 %v1537
  %1977 = vmatprep.subr.bf16.mxu0 %v1534
  %1978 = vmatpush1.bf16.msra.mxu0 %v1533
  %1979 = vmatprep.subr.bf16.mxu0 %v1530
  %1980 = vmatpush1.bf16.msra.mxu0 %v1529
  %1981 = vmatprep.subr.bf16.mxu0 %v1526
  %1982 = vmatpush1.bf16.msra.mxu0 %v1525
  %1983 = vmatprep.subr.bf16.mxu0 %v1522
  %1984 = vmatpush1.bf16.msra.mxu0 %v1521
  %1985 = vmatprep.subr.bf16.mxu0 0
  %1986 = vmatpush2.bf16.msra.mxu0 0
  %1987 = vmatprep.subr.bf16.mxu0 0
  %1988 = vmatpush2.bf16.msra.mxu0 0
  %1989 = vmatprep.subr.bf16.mxu0 0
  %1990 = vmatpush2.bf16.msra.mxu0 0
  %1991 = vmatprep.subr.bf16.mxu0 0
  %1992 = vmatpush2.bf16.msra.mxu0 0
  %1993 = vmatprep.subr.bf16.mxu0 0
  %1994 = vmatpush2.bf16.msra.mxu0 0
  %1995 = vmatprep.subr.bf16.mxu0 0
  %1996 = vmatpush2.bf16.msra.mxu0 0
  %1997 = vmatprep.subr.bf16.mxu0 0
  %1998 = vmatpush2.bf16.msra.mxu0 0
  %1999 = vmatprep.subr.bf16.mxu0 0
  %2000 = vmatpush2.bf16.msra.mxu0 0
  %2001 = vmatprep.mubr.bf16.mxu0 0
  %2002 = vmatmul.mubr.bf16.gmra.mxu0 %v1968
  %v2003 = vpop.f32.mrf.mxu0
  %v2004 = vadd.f32 0.0, %v2003
  %v2005 = vpop.f32.mrf.mxu0
  %v2006 = vadd.f32 0.0, %v2005
  %v2007 = vpop.f32.mrf.mxu0
  %v2008 = vadd.f32 0.0, %v2007
  %v2009 = vpop.f32.mrf.mxu0
  %v2010 = vadd.f32 0.0, %v2009
  %2011 = vdwg.mxu0
  %2012 = vmatprep.subr.bf16.mxu0 %v1552
  %2013 = vmatpush1.bf16.msra.mxu0 %v1551
  %2014 = vmatprep.subr.bf16.mxu0 %v1548
  %2015 = vmatpush1.bf16.msra.mxu0 %v1547
  %2016 = vmatprep.subr.bf16.mxu0 %v1544
  %2017 = vmatpush1.bf16.msra.mxu0 %v1543
  %2018 = vmatprep.subr.bf16.mxu0 %v1540
  %2019 = vmatpush1.bf16.msra.mxu0 %v1539
  %2020 = vmatprep.subr.bf16.mxu0 %v1536
  %2021 = vmatpush1.bf16.msra.mxu0 %v1535
  %2022 = vmatprep.subr.bf16.mxu0 %v1532
  %2023 = vmatpush1.bf16.msra.mxu0 %v1531
  %2024 = vmatprep.subr.bf16.mxu0 %v1528
  %2025 = vmatpush1.bf16.msra.mxu0 %v1527
  %2026 = vmatprep.subr.bf16.mxu0 %v1524
  %2027 = vmatpush1.bf16.msra.mxu0 %v1523
  %2028 = vmatprep.subr.bf16.mxu0 0
  %2029 = vmatpush2.bf16.msra.mxu0 0
  %2030 = vmatprep.subr.bf16.mxu0 0
  %2031 = vmatpush2.bf16.msra.mxu0 0
  %2032 = vmatprep.subr.bf16.mxu0 0
  %2033 = vmatpush2.bf16.msra.mxu0 0
  %2034 = vmatprep.subr.bf16.mxu0 0
  %2035 = vmatpush2.bf16.msra.mxu0 0
  %2036 = vmatprep.subr.bf16.mxu0 0
  %2037 = vmatpush2.bf16.msra.mxu0 0
  %2038 = vmatprep.subr.bf16.mxu0 0
  %2039 = vmatpush2.bf16.msra.mxu0 0
  %2040 = vmatprep.subr.bf16.mxu0 0
  %2041 = vmatpush2.bf16.msra.mxu0 0
  %2042 = vmatprep.subr.bf16.mxu0 0
  %2043 = vmatpush2.bf16.msra.mxu0 0
  %2044 = vmatprep.mubr.bf16.mxu0 0
  %2045 = vmatmul.mubr.bf16.gmra.mxu0 %v1968
  %v2046 = vpop.f32.mrf.mxu0
  %v2047 = vadd.f32 0.0, %v2046
  %v2048 = vpop.f32.mrf.mxu0
  %v2049 = vadd.f32 0.0, %v2048
  %v2050 = vpop.f32.mrf.mxu0
  %v2051 = vadd.f32 0.0, %v2050
  %v2052 = vpop.f32.mrf.mxu0
  %v2053 = vadd.f32 0.0, %v2052
  %2054 = vdwg.mxu0
  %s2055 = scalar_lea.vmem [#allocation2], 32
  %v2056 = vld [vmem:[%s2055] sm:$0xff]
  %v2057 = vld [vmem:[%s2055 + $0x8] sm:$0xff]
  %v2058 = vld [vmem:[%s2055 + $0x10] sm:$0xff]
  %v2059 = vld [vmem:[%s2055 + $0x18] sm:$0xff]
  %v2060 = vunpack.c.l.bf16 %v2056
  %v2061 = vunpack.c.h.bf16 %v2056
  %v2062 = vunpack.c.l.bf16 %v2057
  %v2063 = vunpack.c.h.bf16 %v2057
  %v2064 = vunpack.c.l.bf16 %v2058
  %v2065 = vunpack.c.h.bf16 %v2058
  %v2066 = vunpack.c.l.bf16 %v2059
  %v2067 = vunpack.c.h.bf16 %v2059
  %v2068 = vadd.f32 %v2060, %v1917
  %v2069 = vadd.f32 %v2061, %v1919
  %v2070 = vadd.f32 %v2062, %v1960
  %v2071 = vadd.f32 %v2063, %v1962
  %v2072 = vadd.f32 %v2064, %v1921
  %v2073 = vadd.f32 %v2065, %v1923
  %v2074 = vadd.f32 %v2066, %v1964
  %v2075 = vadd.f32 %v2067, %v1966
  %s2076 = scalar_lea.vmem [#allocation3], 192
  %v2077 = vld [vmem:[%s2076] sm:$0xff]
  %v2078 = vld [vmem:[%s2076 + $0x8] sm:$0xff]
  %v2079 = vld [vmem:[%s2076 + $0x10] sm:$0xff]
  %v2080 = vld [vmem:[%s2076 + $0x18] sm:$0xff]
  %v2081 = vunpack.c.l.bf16 %v2077
  %v2082 = vunpack.c.h.bf16 %v2077
  %v2083 = vunpack.c.l.bf16 %v2078
  %v2084 = vunpack.c.h.bf16 %v2078
  %v2085 = vunpack.c.l.bf16 %v2079
  %v2086 = vunpack.c.h.bf16 %v2079
  %v2087 = vunpack.c.l.bf16 %v2080
  %v2088 = vunpack.c.h.bf16 %v2080
  %v2089 = vadd.f32 %v2081, %v2004
  %v2090 = vadd.f32 %v2082, %v2006
  %v2091 = vadd.f32 %v2083, %v2047
  %v2092 = vadd.f32 %v2084, %v2049
  %v2093 = vadd.f32 %v2085, %v2008
  %v2094 = vadd.f32 %v2086, %v2010
  %v2095 = vadd.f32 %v2087, %v2051
  %v2096 = vadd.f32 %v2088, %v2053
  %v2097 = vxor.u32 %v2068, 2147483648
  %v2098 = vxor.u32 %v2072, 2147483648
  %v2099 = vmul.f32 %v2097, 1.442695
  %v2100 = vpow.pop %v2099
  %v2101 = vmul.f32 %v2098, 1.442695
  %v2102 = vpow.pop %v2101
  %v2103 = vadd.f32 %v2100, 1.0
  %v2104 = vadd.f32 %v2102, 1.0
  %v2105 = vrcp.pop %v2103
  %v2106 = vmul.f32 1.0, %v2105
  %v2107 = vrcp.pop %v2104
  %v2108 = vmul.f32 1.0, %v2107
  %v2109 = vxor.u32 %v2069, 2147483648
  %v2110 = vxor.u32 %v2073, 2147483648
  %v2111 = vmul.f32 %v2109, 1.442695
  %v2112 = vpow.pop %v2111
  %v2113 = vmul.f32 %v2110, 1.442695
  %v2114 = vpow.pop %v2113
  %v2115 = vadd.f32 %v2112, 1.0
  %v2116 = vadd.f32 %v2114, 1.0
  %v2117 = vrcp.pop %v2115
  %v2118 = vmul.f32 1.0, %v2117
  %v2119 = vrcp.pop %v2116
  %v2120 = vmul.f32 1.0, %v2119
  %v2121 = vtanh.pop %v2070
  %v2122 = vtanh.pop %v2074
  %v2123 = vxor.u32 %v2071, 2147483648
  %v2124 = vxor.u32 %v2075, 2147483648
  %v2125 = vmul.f32 %v2123, 1.442695
  %v2126 = vpow.pop %v2125
  %v2127 = vmul.f32 %v2124, 1.442695
  %v2128 = vpow.pop %v2127
  %v2129 = vadd.f32 %v2126, 1.0
  %v2130 = vadd.f32 %v2128, 1.0
  %v2131 = vrcp.pop %v2129
  %v2132 = vmul.f32 1.0, %v2131
  %v2133 = vrcp.pop %v2130
  %v2134 = vmul.f32 1.0, %v2133
  %v2135 = vmul.f32 %v2118, %v1875
  %v2136 = vmul.f32 %v2120, %v1876
  %v2137 = vmul.f32 %v2106, %v2121
  %v2138 = vmul.f32 %v2108, %v2122
  %v2139 = vadd.f32 %v2135, %v2137
  %v2140 = vadd.f32 %v2136, %v2138
  %v2141 = vtanh.pop %v2139
  %v2142 = vtanh.pop %v2140
  %v2143 = vmul.f32 %v2132, %v2141
  %v2144 = vmul.f32 %v2134, %v2142
  %v2145 = vxor.u32 %v2089, 2147483648
  %v2146 = vxor.u32 %v2093, 2147483648
  %v2147 = vmul.f32 %v2145, 1.442695
  %v2148 = vpow.pop %v2147
  %v2149 = vmul.f32 %v2146, 1.442695
  %v2150 = vpow.pop %v2149
  %v2151 = vadd.f32 %v2148, 1.0
  %v2152 = vadd.f32 %v2150, 1.0
  %v2153 = vrcp.pop %v2151
  %v2154 = vmul.f32 1.0, %v2153
  %v2155 = vrcp.pop %v2152
  %v2156 = vmul.f32 1.0, %v2155
  %v2157 = vxor.u32 %v2090, 2147483648
  %v2158 = vxor.u32 %v2094, 2147483648
  %v2159 = vmul.f32 %v2157, 1.442695
  %v2160 = vpow.pop %v2159
  %v2161 = vmul.f32 %v2158, 1.442695
  %v2162 = vpow.pop %v2161
  %v2163 = vadd.f32 %v2160, 1.0
  %v2164 = vadd.f32 %v2162, 1.0
  %v2165 = vrcp.pop %v2163
  %v2166 = vmul.f32 1.0, %v2165
  %v2167 = vrcp.pop %v2164
  %v2168 = vmul.f32 1.0, %v2167
  %v2169 = vtanh.pop %v2091
  %v2170 = vtanh.pop %v2095
  %v2171 = vxor.u32 %v2092, 2147483648
  %v2172 = vxor.u32 %v2096, 2147483648
  %v2173 = vmul.f32 %v2171, 1.442695
  %v2174 = vpow.pop %v2173
  %v2175 = vmul.f32 %v2172, 1.442695
  %v2176 = vpow.pop %v2175
  %v2177 = vadd.f32 %v2174, 1.0
  %v2178 = vadd.f32 %v2176, 1.0
  %v2179 = vrcp.pop %v2177
  %v2180 = vmul.f32 1.0, %v2179
  %v2181 = vrcp.pop %v2178
  %v2182 = vmul.f32 1.0, %v2181
  %v2183 = vmul.f32 %v2166, %v1879
  %v2184 = vmul.f32 %v2168, %v1880
  %v2185 = vmul.f32 %v2154, %v2169
  %v2186 = vmul.f32 %v2156, %v2170
  %v2187 = vadd.f32 %v2183, %v2185
  %v2188 = vadd.f32 %v2184, %v2186
  %v2189 = vtanh.pop %v2187
  %v2190 = vtanh.pop %v2188
  %v2191 = vmul.f32 %v2180, %v2189
  %v2192 = vmul.f32 %v2182, %v2190
  %vm2193 = vcmp.gt.s32.totalorder %v1159, 1
  %vm2194 = vcmp.gt.s32.totalorder %v1160, 1
  %vm2195 = vcmp.gt.s32.totalorder %v1159, 6
  %vm2196 = vcmp.gt.s32.totalorder %v1160, 6
  %v2197 = vsel %vm2193, 1, 0
  %v2198 = vsel %vm2194, 1, 0
  %2199 = vset.pattern.permute.xlu0 0
  %2200 = vperm.xlu0 %2199, %v2197
  %v2201 = vpop.permute.xlu0 %2200
  %2202 = vset.pattern.permute.xlu0 0
  %2203 = vperm.xlu0 %2202, %v2198
  %v2204 = vpop.permute.xlu0 %2203
  %vm2205 = vcmp.eq.s32.totalorder %v2201, 1
  %vm2206 = vcmp.eq.s32.totalorder %v2204, 1
  %v2207 = vsel %vm2205, %v2143, 0.0
  %v2208 = vsel %vm2206, %v2144, 0.0
  %v2209 = vpack.c.bf16 %v2208, %v2207
  %v2211 = vunpack.c.l.b16 %v2209
  %v2212 = vunpack.c.h.b16 %v2209
  %v2213 = vpack.c.b16 %v2211, %v2211
  %v2214 = vpack.c.b16 %v2212, %v2212
  %s2217 = scalar_lea.vmem %s6, 16
  %2218 = vst [vmem:[%s2217] sm:$0xf] %v2213
  %2219 = vst [vmem:[%s2217 + $0x8] sm:$0xf] %v2214
  %v2220 = vsel %vm2195, 1, 0
  %v2221 = vsel %vm2196, 1, 0
  %2222 = vset.pattern.permute.xlu0 0
  %2223 = vperm.xlu0 %2222, %v2220
  %v2224 = vpop.permute.xlu0 %2223
  %2225 = vset.pattern.permute.xlu0 0
  %2226 = vperm.xlu0 %2225, %v2221
  %v2227 = vpop.permute.xlu0 %2226
  %vm2228 = vcmp.eq.s32.totalorder %v2224, 1
  %vm2229 = vcmp.eq.s32.totalorder %v2227, 1
  %v2230 = vsel %vm2228, %v2191, 0.0
  %v2231 = vsel %vm2229, %v2192, 0.0
  %v2232 = vpack.c.bf16 %v2231, %v2230
  %v2234 = vunpack.c.l.b16 %v2232
  %v2235 = vunpack.c.h.b16 %v2232
  %v2236 = vpack.c.b16 %v2234, %v2234
  %v2237 = vpack.c.b16 %v2235, %v2235
  %s2240 = scalar_lea.vmem %s6, 96
  %2241 = vst [vmem:[%s2240 + $0x4] sm:$0xf] %v2236
  %2242 = vst [vmem:[%s2240 + $0xc] sm:$0xf] %v2237
  %v2243 = vsel %vm2205, %v2143, %v1873
  %v2244 = vsel %vm2206, %v2144, %v1874
  %2245 = vst [vmem:[#allocation4] sm:$0xff] %v2243
  %2246 = vst [vmem:[#allocation4 + $0x8] sm:$0xff] %v2244
  %v2247 = vsel %vm2205, %v2139, %v1875
  %v2248 = vsel %vm2206, %v2140, %v1876
  %2249 = vst [vmem:[#allocation5] sm:$0xff] %v2247
  %2250 = vst [vmem:[#allocation5 + $0x8] sm:$0xff] %v2248
  %v2251 = vsel %vm2228, %v2191, %v1877
  %v2252 = vsel %vm2229, %v2192, %v1878
  %2253 = vst [vmem:[#allocation6] sm:$0xff] %v2251
  %2254 = vst [vmem:[#allocation6 + $0x8] sm:$0xff] %v2252
  %v2255 = vsel %vm2228, %v2187, %v1879
  %v2256 = vsel %vm2229, %v2188, %v1880
  %2257 = vst [vmem:[#allocation7] sm:$0xff] %v2255
  %2258 = vst [vmem:[#allocation7 + $0x8] sm:$0xff] %v2256
  %v2259 = vld [vmem:[#allocation4] sm:$0xff]
  %v2260 = vld [vmem:[#allocation4 + $0x8] sm:$0xff]
  %v2261 = vld [vmem:[#allocation5] sm:$0xff]
  %v2262 = vld [vmem:[#allocation5 + $0x8] sm:$0xff]
  %v2263 = vld [vmem:[#allocation6] sm:$0xff]
  %v2264 = vld [vmem:[#allocation6 + $0x8] sm:$0xff]
  %v2265 = vld [vmem:[#allocation7] sm:$0xff]
  %v2266 = vld [vmem:[#allocation7 + $0x8] sm:$0xff]
  %v2267 = vpack.c.bf16 %v2260, %v2259
  %2268 = vmatprep.subr.bf16.mxu0 %v1303
  %2269 = vmatpush1.bf16.msra.mxu0 %v1302
  %2270 = vmatprep.subr.bf16.mxu0 %v1299
  %2271 = vmatpush1.bf16.msra.mxu0 %v1298
  %2272 = vmatprep.subr.bf16.mxu0 %v1295
  %2273 = vmatpush1.bf16.msra.mxu0 %v1294
  %2274 = vmatprep.subr.bf16.mxu0 %v1291
  %2275 = vmatpush1.bf16.msra.mxu0 %v1290
  %2276 = vmatprep.subr.bf16.mxu0 %v1287
  %2277 = vmatpush1.bf16.msra.mxu0 %v1286
  %2278 = vmatprep.subr.bf16.mxu0 %v1283
  %2279 = vmatpush1.bf16.msra.mxu0 %v1282
  %2280 = vmatprep.subr.bf16.mxu0 %v1279
  %2281 = vmatpush1.bf16.msra.mxu0 %v1278
  %2282 = vmatprep.subr.bf16.mxu0 %v1275
  %2283 = vmatpush1.bf16.msra.mxu0 %v1274
  %2284 = vmatprep.subr.bf16.mxu0 0
  %2285 = vmatpush2.bf16.msra.mxu0 0
  %2286 = vmatprep.subr.bf16.mxu0 0
  %2287 = vmatpush2.bf16.msra.mxu0 0
  %2288 = vmatprep.subr.bf16.mxu0 0
  %2289 = vmatpush2.bf16.msra.mxu0 0
  %2290 = vmatprep.subr.bf16.mxu0 0
  %2291 = vmatpush2.bf16.msra.mxu0 0
  %2292 = vmatprep.subr.bf16.mxu0 0
  %2293 = vmatpush2.bf16.msra.mxu0 0
  %2294 = vmatprep.subr.bf16.mxu0 0
  %2295 = vmatpush2.bf16.msra.mxu0 0
  %2296 = vmatprep.subr.bf16.mxu0 0
  %2297 = vmatpush2.bf16.msra.mxu0 0
  %2298 = vmatprep.subr.bf16.mxu0 0
  %2299 = vmatpush2.bf16.msra.mxu0 0
  %2300 = vmatprep.mubr.bf16.mxu0 0
  %2301 = vmatmul.mubr.bf16.gmra.mxu0 %v2267
  %v2302 = vpop.f32.mrf.mxu0
  %v2303 = vadd.f32 0.0, %v2302
  %v2304 = vpop.f32.mrf.mxu0
  %v2305 = vadd.f32 0.0, %v2304
  %v2306 = vpop.f32.mrf.mxu0
  %v2307 = vadd.f32 0.0, %v2306
  %v2308 = vpop.f32.mrf.mxu0
  %v2309 = vadd.f32 0.0, %v2308
  %2310 = vdwg.mxu0
  %2311 = vmatprep.subr.bf16.mxu0 %v1305
  %2312 = vmatpush1.bf16.msra.mxu0 %v1304
  %2313 = vmatprep.subr.bf16.mxu0 %v1301
  %2314 = vmatpush1.bf16.msra.mxu0 %v1300
  %2315 = vmatprep.subr.bf16.mxu0 %v1297
  %2316 = vmatpush1.bf16.msra.mxu0 %v1296
  %2317 = vmatprep.subr.bf16.mxu0 %v1293
  %2318 = vmatpush1.bf16.msra.mxu0 %v1292
  %2319 = vmatprep.subr.bf16.mxu0 %v1289
  %2320 = vmatpush1.bf16.msra.mxu0 %v1288
  %2321 = vmatprep.subr.bf16.mxu0 %v1285
  %2322 = vmatpush1.bf16.msra.mxu0 %v1284
  %2323 = vmatprep.subr.bf16.mxu0 %v1281
  %2324 = vmatpush1.bf16.msra.mxu0 %v1280
  %2325 = vmatprep.subr.bf16.mxu0 %v1277
  %2326 = vmatpush1.bf16.msra.mxu0 %v1276
  %2327 = vmatprep.subr.bf16.mxu0 0
  %2328 = vmatpush2.bf16.msra.mxu0 0
  %2329 = vmatprep.subr.bf16.mxu0 0
  %2330 = vmatpush2.bf16.msra.mxu0 0
  %2331 = vmatprep.subr.bf16.mxu0 0
  %2332 = vmatpush2.bf16.msra.mxu0 0
  %2333 = vmatprep.subr.bf16.mxu0 0
  %2334 = vmatpush2.bf16.msra.mxu0 0
  %2335 = vmatprep.subr.bf16.mxu0 0
  %2336 = vmatpush2.bf16.msra.mxu0 0
  %2337 = vmatprep.subr.bf16.mxu0 0
  %2338 = vmatpush2.bf16.msra.mxu0 0
  %2339 = vmatprep.subr.bf16.mxu0 0
  %2340 = vmatpush2.bf16.msra.mxu0 0
  %2341 = vmatprep.subr.bf16.mxu0 0
  %2342 = vmatpush2.bf16.msra.mxu0 0
  %2343 = vmatprep.mubr.bf16.mxu0 0
  %2344 = vmatmul.mubr.bf16.gmra.mxu0 %v2267
  %v2345 = vpop.f32.mrf.mxu0
  %v2346 = vadd.f32 0.0, %v2345
  %v2347 = vpop.f32.mrf.mxu0
  %v2348 = vadd.f32 0.0, %v2347
  %v2349 = vpop.f32.mrf.mxu0
  %v2350 = vadd.f32 0.0, %v2349
  %v2351 = vpop.f32.mrf.mxu0
  %v2352 = vadd.f32 0.0, %v2351
  %2353 = vdwg.mxu0
  %v2354 = vpack.c.bf16 %v2264, %v2263
  %2355 = vmatprep.subr.bf16.mxu0 %v1550
  %2356 = vmatpush1.bf16.msra.mxu0 %v1549
  %2357 = vmatprep.subr.bf16.mxu0 %v1546
  %2358 = vmatpush1.bf16.msra.mxu0 %v1545
  %2359 = vmatprep.subr.bf16.mxu0 %v1542
  %2360 = vmatpush1.bf16.msra.mxu0 %v1541
  %2361 = vmatprep.subr.bf16.mxu0 %v1538
  %2362 = vmatpush1.bf16.msra.mxu0 %v1537
  %2363 = vmatprep.subr.bf16.mxu0 %v1534
  %2364 = vmatpush1.bf16.msra.mxu0 %v1533
  %2365 = vmatprep.subr.bf16.mxu0 %v1530
  %2366 = vmatpush1.bf16.msra.mxu0 %v1529
  %2367 = vmatprep.subr.bf16.mxu0 %v1526
  %2368 = vmatpush1.bf16.msra.mxu0 %v1525
  %2369 = vmatprep.subr.bf16.mxu0 %v1522
  %2370 = vmatpush1.bf16.msra.mxu0 %v1521
  %2371 = vmatprep.subr.bf16.mxu0 0
  %2372 = vmatpush2.bf16.msra.mxu0 0
  %2373 = vmatprep.subr.bf16.mxu0 0
  %2374 = vmatpush2.bf16.msra.mxu0 0
  %2375 = vmatprep.subr.bf16.mxu0 0
  %2376 = vmatpush2.bf16.msra.mxu0 0
  %2377 = vmatprep.subr.bf16.mxu0 0
  %2378 = vmatpush2.bf16.msra.mxu0 0
  %2379 = vmatprep.subr.bf16.mxu0 0
  %2380 = vmatpush2.bf16.msra.mxu0 0
  %2381 = vmatprep.subr.bf16.mxu0 0
  %2382 = vmatpush2.bf16.msra.mxu0 0
  %2383 = vmatprep.subr.bf16.mxu0 0
  %2384 = vmatpush2.bf16.msra.mxu0 0
  %2385 = vmatprep.subr.bf16.mxu0 0
  %2386 = vmatpush2.bf16.msra.mxu0 0
  %2387 = vmatprep.mubr.bf16.mxu0 0
  %2388 = vmatmul.mubr.bf16.gmra.mxu0 %v2354
  %v2389 = vpop.f32.mrf.mxu0
  %v2390 = vadd.f32 0.0, %v2389
  %v2391 = vpop.f32.mrf.mxu0
  %v2392 = vadd.f32 0.0, %v2391
  %v2393 = vpop.f32.mrf.mxu0
  %v2394 = vadd.f32 0.0, %v2393
  %v2395 = vpop.f32.mrf.mxu0
  %v2396 = vadd.f32 0.0, %v2395
  %2397 = vdwg.mxu0
  %2398 = vmatprep.subr.bf16.mxu0 %v1552
  %2399 = vmatpush1.bf16.msra.mxu0 %v1551
  %2400 = vmatprep.subr.bf16.mxu0 %v1548
  %2401 = vmatpush1.bf16.msra.mxu0 %v1547
  %2402 = vmatprep.subr.bf16.mxu0 %v1544
  %2403 = vmatpush1.bf16.msra.mxu0 %v1543
  %2404 = vmatprep.subr.bf16.mxu0 %v1540
  %2405 = vmatpush1.bf16.msra.mxu0 %v1539
  %2406 = vmatprep.subr.bf16.mxu0 %v1536
  %2407 = vmatpush1.bf16.msra.mxu0 %v1535
  %2408 = vmatprep.subr.bf16.mxu0 %v1532
  %2409 = vmatpush1.bf16.msra.mxu0 %v1531
  %2410 = vmatprep.subr.bf16.mxu0 %v1528
  %2411 = vmatpush1.bf16.msra.mxu0 %v1527
  %2412 = vmatprep.subr.bf16.mxu0 %v1524
  %2413 = vmatpush1.bf16.msra.mxu0 %v1523
  %2414 = vmatprep.subr.bf16.mxu0 0
  %2415 = vmatpush2.bf16.msra.mxu0 0
  %2416 = vmatprep.subr.bf16.mxu0 0
  %2417 = vmatpush2.bf16.msra.mxu0 0
  %2418 = vmatprep.subr.bf16.mxu0 0
  %2419 = vmatpush2.bf16.msra.mxu0 0
  %2420 = vmatprep.subr.bf16.mxu0 0
  %2421 = vmatpush2.bf16.msra.mxu0 0
  %2422 = vmatprep.subr.bf16.mxu0 0
  %2423 = vmatpush2.bf16.msra.mxu0 0
  %2424 = vmatprep.subr.bf16.mxu0 0
  %2425 = vmatpush2.bf16.msra.mxu0 0
  %2426 = vmatprep.subr.bf16.mxu0 0
  %2427 = vmatpush2.bf16.msra.mxu0 0
  %2428 = vmatprep.subr.bf16.mxu0 0
  %2429 = vmatpush2.bf16.msra.mxu0 0
  %2430 = vmatprep.mubr.bf16.mxu0 0
  %2431 = vmatmul.mubr.bf16.gmra.mxu0 %v2354
  %v2432 = vpop.f32.mrf.mxu0
  %v2433 = vadd.f32 0.0, %v2432
  %v2434 = vpop.f32.mrf.mxu0
  %v2435 = vadd.f32 0.0, %v2434
  %v2436 = vpop.f32.mrf.mxu0
  %v2437 = vadd.f32 0.0, %v2436
  %v2438 = vpop.f32.mrf.mxu0
  %v2439 = vadd.f32 0.0, %v2438
  %2440 = vdwg.mxu0
  %s2441 = scalar_lea.vmem [#allocation2], 64
  %v2442 = vld [vmem:[%s2441] sm:$0xff]
  %v2443 = vld [vmem:[%s2441 + $0x8] sm:$0xff]
  %v2444 = vld [vmem:[%s2441 + $0x10] sm:$0xff]
  %v2445 = vld [vmem:[%s2441 + $0x18] sm:$0xff]
  %v2446 = vunpack.c.l.bf16 %v2442
  %v2447 = vunpack.c.h.bf16 %v2442
  %v2448 = vunpack.c.l.bf16 %v2443
  %v2449 = vunpack.c.h.bf16 %v2443
  %v2450 = vunpack.c.l.bf16 %v2444
  %v2451 = vunpack.c.h.bf16 %v2444
  %v2452 = vunpack.c.l.bf16 %v2445
  %v2453 = vunpack.c.h.bf16 %v2445
  %v2454 = vadd.f32 %v2446, %v2303
  %v2455 = vadd.f32 %v2447, %v2305
  %v2456 = vadd.f32 %v2448, %v2346
  %v2457 = vadd.f32 %v2449, %v2348
  %v2458 = vadd.f32 %v2450, %v2307
  %v2459 = vadd.f32 %v2451, %v2309
  %v2460 = vadd.f32 %v2452, %v2350
  %v2461 = vadd.f32 %v2453, %v2352
  %s2462 = scalar_lea.vmem [#allocation3], 160
  %v2463 = vld [vmem:[%s2462] sm:$0xff]
  %v2464 = vld [vmem:[%s2462 + $0x8] sm:$0xff]
  %v2465 = vld [vmem:[%s2462 + $0x10] sm:$0xff]
  %v2466 = vld [vmem:[%s2462 + $0x18] sm:$0xff]
  %v2467 = vunpack.c.l.bf16 %v2463
  %v2468 = vunpack.c.h.bf16 %v2463
  %v2469 = vunpack.c.l.bf16 %v2464
  %v2470 = vunpack.c.h.bf16 %v2464
  %v2471 = vunpack.c.l.bf16 %v2465
  %v2472 = vunpack.c.h.bf16 %v2465
  %v2473 = vunpack.c.l.bf16 %v2466
  %v2474 = vunpack.c.h.bf16 %v2466
  %v2475 = vadd.f32 %v2467, %v2390
  %v2476 = vadd.f32 %v2468, %v2392
  %v2477 = vadd.f32 %v2469, %v2433
  %v2478 = vadd.f32 %v2470, %v2435
  %v2479 = vadd.f32 %v2471, %v2394
  %v2480 = vadd.f32 %v2472, %v2396
  %v2481 = vadd.f32 %v2473, %v2437
  %v2482 = vadd.f32 %v2474, %v2439
  %v2483 = vxor.u32 %v2454, 2147483648
  %v2484 = vxor.u32 %v2458, 2147483648
  %v2485 = vmul.f32 %v2483, 1.442695
  %v2486 = vpow.pop %v2485
  %v2487 = vmul.f32 %v2484, 1.442695
  %v2488 = vpow.pop %v2487
  %v2489 = vadd.f32 %v2486, 1.0
  %v2490 = vadd.f32 %v2488, 1.0
  %v2491 = vrcp.pop %v2489
  %v2492 = vmul.f32 1.0, %v2491
  %v2493 = vrcp.pop %v2490
  %v2494 = vmul.f32 1.0, %v2493
  %v2495 = vxor.u32 %v2455, 2147483648
  %v2496 = vxor.u32 %v2459, 2147483648
  %v2497 = vmul.f32 %v2495, 1.442695
  %v2498 = vpow.pop %v2497
  %v2499 = vmul.f32 %v2496, 1.442695
  %v2500 = vpow.pop %v2499
  %v2501 = vadd.f32 %v2498, 1.0
  %v2502 = vadd.f32 %v2500, 1.0
  %v2503 = vrcp.pop %v2501
  %v2504 = vmul.f32 1.0, %v2503
  %v2505 = vrcp.pop %v2502
  %v2506 = vmul.f32 1.0, %v2505
  %v2507 = vtanh.pop %v2456
  %v2508 = vtanh.pop %v2460
  %v2509 = vxor.u32 %v2457, 2147483648
  %v2510 = vxor.u32 %v2461, 2147483648
  %v2511 = vmul.f32 %v2509, 1.442695
  %v2512 = vpow.pop %v2511
  %v2513 = vmul.f32 %v2510, 1.442695
  %v2514 = vpow.pop %v2513
  %v2515 = vadd.f32 %v2512, 1.0
  %v2516 = vadd.f32 %v2514, 1.0
  %v2517 = vrcp.pop %v2515
  %v2518 = vmul.f32 1.0, %v2517
  %v2519 = vrcp.pop %v2516
  %v2520 = vmul.f32 1.0, %v2519
  %v2521 = vmul.f32 %v2504, %v2261
  %v2522 = vmul.f32 %v2506, %v2262
  %v2523 = vmul.f32 %v2492, %v2507
  %v2524 = vmul.f32 %v2494, %v2508
  %v2525 = vadd.f32 %v2521, %v2523
  %v2526 = vadd.f32 %v2522, %v2524
  %v2527 = vtanh.pop %v2525
  %v2528 = vtanh.pop %v2526
  %v2529 = vmul.f32 %v2518, %v2527
  %v2530 = vmul.f32 %v2520, %v2528
  %v2531 = vxor.u32 %v2475, 2147483648
  %v2532 = vxor.u32 %v2479, 2147483648
  %v2533 = vmul.f32 %v2531, 1.442695
  %v2534 = vpow.pop %v2533
  %v2535 = vmul.f32 %v2532, 1.442695
  %v2536 = vpow.pop %v2535
  %v2537 = vadd.f32 %v2534, 1.0
  %v2538 = vadd.f32 %v2536, 1.0
  %v2539 = vrcp.pop %v2537
  %v2540 = vmul.f32 1.0, %v2539
  %v2541 = vrcp.pop %v2538
  %v2542 = vmul.f32 1.0, %v2541
  %v2543 = vxor.u32 %v2476, 2147483648
  %v2544 = vxor.u32 %v2480, 2147483648
  %v2545 = vmul.f32 %v2543, 1.442695
  %v2546 = vpow.pop %v2545
  %v2547 = vmul.f32 %v2544, 1.442695
  %v2548 = vpow.pop %v2547
  %v2549 = vadd.f32 %v2546, 1.0
  %v2550 = vadd.f32 %v2548, 1.0
  %v2551 = vrcp.pop %v2549
  %v2552 = vmul.f32 1.0, %v2551
  %v2553 = vrcp.pop %v2550
  %v2554 = vmul.f32 1.0, %v2553
  %v2555 = vtanh.pop %v2477
  %v2556 = vtanh.pop %v2481
  %v2557 = vxor.u32 %v2478, 2147483648
  %v2558 = vxor.u32 %v2482, 2147483648
  %v2559 = vmul.f32 %v2557, 1.442695
  %v2560 = vpow.pop %v2559
  %v2561 = vmul.f32 %v2558, 1.442695
  %v2562 = vpow.pop %v2561
  %v2563 = vadd.f32 %v2560, 1.0
  %v2564 = vadd.f32 %v2562, 1.0
  %v2565 = vrcp.pop %v2563
  %v2566 = vmul.f32 1.0, %v2565
  %v2567 = vrcp.pop %v2564
  %v2568 = vmul.f32 1.0, %v2567
  %v2569 = vmul.f32 %v2552, %v2265
  %v2570 = vmul.f32 %v2554, %v2266
  %v2571 = vmul.f32 %v2540, %v2555
  %v2572 = vmul.f32 %v2542, %v2556
  %v2573 = vadd.f32 %v2569, %v2571
  %v2574 = vadd.f32 %v2570, %v2572
  %v2575 = vtanh.pop %v2573
  %v2576 = vtanh.pop %v2574
  %v2577 = vmul.f32 %v2566, %v2575
  %v2578 = vmul.f32 %v2568, %v2576
  %vm2579 = vcmp.gt.s32.totalorder %v1159, 2
  %vm2580 = vcmp.gt.s32.totalorder %v1160, 2
  %vm2581 = vcmp.gt.s32.totalorder %v1159, 5
  %vm2582 = vcmp.gt.s32.totalorder %v1160, 5
  %v2583 = vsel %vm2579, 1, 0
  %v2584 = vsel %vm2580, 1, 0
  %2585 = vset.pattern.permute.xlu0 0
  %2586 = vperm.xlu0 %2585, %v2583
  %v2587 = vpop.permute.xlu0 %2586
  %2588 = vset.pattern.permute.xlu0 0
  %2589 = vperm.xlu0 %2588, %v2584
  %v2590 = vpop.permute.xlu0 %2589
  %vm2591 = vcmp.eq.s32.totalorder %v2587, 1
  %vm2592 = vcmp.eq.s32.totalorder %v2590, 1
  %v2593 = vsel %vm2591, %v2529, 0.0
  %v2594 = vsel %vm2592, %v2530, 0.0
  %v2595 = vpack.c.bf16 %v2594, %v2593
  %v2597 = vunpack.c.l.b16 %v2595
  %v2598 = vunpack.c.h.b16 %v2595
  %v2599 = vpack.c.b16 %v2597, %v2597
  %v2600 = vpack.c.b16 %v2598, %v2598
  %s2603 = scalar_lea.vmem %s6, 32
  %2604 = vst [vmem:[%s2603] sm:$0xf] %v2599
  %2605 = vst [vmem:[%s2603 + $0x8] sm:$0xf] %v2600
  %v2606 = vsel %vm2581, 1, 0
  %v2607 = vsel %vm2582, 1, 0
  %2608 = vset.pattern.permute.xlu0 0
  %2609 = vperm.xlu0 %2608, %v2606
  %v2610 = vpop.permute.xlu0 %2609
  %2611 = vset.pattern.permute.xlu0 0
  %2612 = vperm.xlu0 %2611, %v2607
  %v2613 = vpop.permute.xlu0 %2612
  %vm2614 = vcmp.eq.s32.totalorder %v2610, 1
  %vm2615 = vcmp.eq.s32.totalorder %v2613, 1
  %v2616 = vsel %vm2614, %v2577, 0.0
  %v2617 = vsel %vm2615, %v2578, 0.0
  %v2618 = vpack.c.bf16 %v2617, %v2616
  %v2620 = vunpack.c.l.b16 %v2618
  %v2621 = vunpack.c.h.b16 %v2618
  %v2622 = vpack.c.b16 %v2620, %v2620
  %v2623 = vpack.c.b16 %v2621, %v2621
  %s2626 = scalar_lea.vmem %s6, 80
  %2627 = vst [vmem:[%s2626 + $0x4] sm:$0xf] %v2622
  %2628 = vst [vmem:[%s2626 + $0xc] sm:$0xf] %v2623
  %v2629 = vsel %vm2591, %v2529, %v2259
  %v2630 = vsel %vm2592, %v2530, %v2260
  %2631 = vst [vmem:[#allocation4] sm:$0xff] %v2629
  %2632 = vst [vmem:[#allocation4 + $0x8] sm:$0xff] %v2630
  %v2633 = vsel %vm2591, %v2525, %v2261
  %v2634 = vsel %vm2592, %v2526, %v2262
  %2635 = vst [vmem:[#allocation5] sm:$0xff] %v2633
  %2636 = vst [vmem:[#allocation5 + $0x8] sm:$0xff] %v2634
  %v2637 = vsel %vm2614, %v2577, %v2263
  %v2638 = vsel %vm2615, %v2578, %v2264
  %2639 = vst [vmem:[#allocation6] sm:$0xff] %v2637
  %2640 = vst [vmem:[#allocation6 + $0x8] sm:$0xff] %v2638
  %v2641 = vsel %vm2614, %v2573, %v2265
  %v2642 = vsel %vm2615, %v2574, %v2266
  %2643 = vst [vmem:[#allocation7] sm:$0xff] %v2641
  %2644 = vst [vmem:[#allocation7 + $0x8] sm:$0xff] %v2642
  %v2645 = vld [vmem:[#allocation4] sm:$0xff]
  %v2646 = vld [vmem:[#allocation4 + $0x8] sm:$0xff]
  %v2647 = vld [vmem:[#allocation5] sm:$0xff]
  %v2648 = vld [vmem:[#allocation5 + $0x8] sm:$0xff]
  %v2649 = vld [vmem:[#allocation6] sm:$0xff]
  %v2650 = vld [vmem:[#allocation6 + $0x8] sm:$0xff]
  %v2651 = vld [vmem:[#allocation7] sm:$0xff]
  %v2652 = vld [vmem:[#allocation7 + $0x8] sm:$0xff]
  %v2653 = vpack.c.bf16 %v2646, %v2645
  %2654 = vmatprep.subr.bf16.mxu0 %v1303
  %2655 = vmatpush1.bf16.msra.mxu0 %v1302
  %2656 = vmatprep.subr.bf16.mxu0 %v1299
  %2657 = vmatpush1.bf16.msra.mxu0 %v1298
  %2658 = vmatprep.subr.bf16.mxu0 %v1295
  %2659 = vmatpush1.bf16.msra.mxu0 %v1294
  %2660 = vmatprep.subr.bf16.mxu0 %v1291
  %2661 = vmatpush1.bf16.msra.mxu0 %v1290
  %2662 = vmatprep.subr.bf16.mxu0 %v1287
  %2663 = vmatpush1.bf16.msra.mxu0 %v1286
  %2664 = vmatprep.subr.bf16.mxu0 %v1283
  %2665 = vmatpush1.bf16.msra.mxu0 %v1282
  %2666 = vmatprep.subr.bf16.mxu0 %v1279
  %2667 = vmatpush1.bf16.msra.mxu0 %v1278
  %2668 = vmatprep.subr.bf16.mxu0 %v1275
  %2669 = vmatpush1.bf16.msra.mxu0 %v1274
  %2670 = vmatprep.subr.bf16.mxu0 0
  %2671 = vmatpush2.bf16.msra.mxu0 0
  %2672 = vmatprep.subr.bf16.mxu0 0
  %2673 = vmatpush2.bf16.msra.mxu0 0
  %2674 = vmatprep.subr.bf16.mxu0 0
  %2675 = vmatpush2.bf16.msra.mxu0 0
  %2676 = vmatprep.subr.bf16.mxu0 0
  %2677 = vmatpush2.bf16.msra.mxu0 0
  %2678 = vmatprep.subr.bf16.mxu0 0
  %2679 = vmatpush2.bf16.msra.mxu0 0
  %2680 = vmatprep.subr.bf16.mxu0 0
  %2681 = vmatpush2.bf16.msra.mxu0 0
  %2682 = vmatprep.subr.bf16.mxu0 0
  %2683 = vmatpush2.bf16.msra.mxu0 0
  %2684 = vmatprep.subr.bf16.mxu0 0
  %2685 = vmatpush2.bf16.msra.mxu0 0
  %2686 = vmatprep.mubr.bf16.mxu0 0
  %2687 = vmatmul.mubr.bf16.gmra.mxu0 %v2653
  %v2688 = vpop.f32.mrf.mxu0
  %v2689 = vadd.f32 0.0, %v2688
  %v2690 = vpop.f32.mrf.mxu0
  %v2691 = vadd.f32 0.0, %v2690
  %v2692 = vpop.f32.mrf.mxu0
  %v2693 = vadd.f32 0.0, %v2692
  %v2694 = vpop.f32.mrf.mxu0
  %v2695 = vadd.f32 0.0, %v2694
  %2696 = vdwg.mxu0
  %2697 = vmatprep.subr.bf16.mxu0 %v1305
  %2698 = vmatpush1.bf16.msra.mxu0 %v1304
  %2699 = vmatprep.subr.bf16.mxu0 %v1301
  %2700 = vmatpush1.bf16.msra.mxu0 %v1300
  %2701 = vmatprep.subr.bf16.mxu0 %v1297
  %2702 = vmatpush1.bf16.msra.mxu0 %v1296
  %2703 = vmatprep.subr.bf16.mxu0 %v1293
  %2704 = vmatpush1.bf16.msra.mxu0 %v1292
  %2705 = vmatprep.subr.bf16.mxu0 %v1289
  %2706 = vmatpush1.bf16.msra.mxu0 %v1288
  %2707 = vmatprep.subr.bf16.mxu0 %v1285
  %2708 = vmatpush1.bf16.msra.mxu0 %v1284
  %2709 = vmatprep.subr.bf16.mxu0 %v1281
  %2710 = vmatpush1.bf16.msra.mxu0 %v1280
  %2711 = vmatprep.subr.bf16.mxu0 %v1277
  %2712 = vmatpush1.bf16.msra.mxu0 %v1276
  %2713 = vmatprep.subr.bf16.mxu0 0
  %2714 = vmatpush2.bf16.msra.mxu0 0
  %2715 = vmatprep.subr.bf16.mxu0 0
  %2716 = vmatpush2.bf16.msra.mxu0 0
  %2717 = vmatprep.subr.bf16.mxu0 0
  %2718 = vmatpush2.bf16.msra.mxu0 0
  %2719 = vmatprep.subr.bf16.mxu0 0
  %2720 = vmatpush2.bf16.msra.mxu0 0
  %2721 = vmatprep.subr.bf16.mxu0 0
  %2722 = vmatpush2.bf16.msra.mxu0 0
  %2723 = vmatprep.subr.bf16.mxu0 0
  %2724 = vmatpush2.bf16.msra.mxu0 0
  %2725 = vmatprep.subr.bf16.mxu0 0
  %2726 = vmatpush2.bf16.msra.mxu0 0
  %2727 = vmatprep.subr.bf16.mxu0 0
  %2728 = vmatpush2.bf16.msra.mxu0 0
  %2729 = vmatprep.mubr.bf16.mxu0 0
  %2730 = vmatmul.mubr.bf16.gmra.mxu0 %v2653
  %v2731 = vpop.f32.mrf.mxu0
  %v2732 = vadd.f32 0.0, %v2731
  %v2733 = vpop.f32.mrf.mxu0
  %v2734 = vadd.f32 0.0, %v2733
  %v2735 = vpop.f32.mrf.mxu0
  %v2736 = vadd.f32 0.0, %v2735
  %v2737 = vpop.f32.mrf.mxu0
  %v2738 = vadd.f32 0.0, %v2737
  %2739 = vdwg.mxu0
  %v2740 = vpack.c.bf16 %v2650, %v2649
  %2741 = vmatprep.subr.bf16.mxu0 %v1550
  %2742 = vmatpush1.bf16.msra.mxu0 %v1549
  %2743 = vmatprep.subr.bf16.mxu0 %v1546
  %2744 = vmatpush1.bf16.msra.mxu0 %v1545
  %2745 = vmatprep.subr.bf16.mxu0 %v1542
  %2746 = vmatpush1.bf16.msra.mxu0 %v1541
  %2747 = vmatprep.subr.bf16.mxu0 %v1538
  %2748 = vmatpush1.bf16.msra.mxu0 %v1537
  %2749 = vmatprep.subr.bf16.mxu0 %v1534
  %2750 = vmatpush1.bf16.msra.mxu0 %v1533
  %2751 = vmatprep.subr.bf16.mxu0 %v1530
  %2752 = vmatpush1.bf16.msra.mxu0 %v1529
  %2753 = vmatprep.subr.bf16.mxu0 %v1526
  %2754 = vmatpush1.bf16.msra.mxu0 %v1525
  %2755 = vmatprep.subr.bf16.mxu0 %v1522
  %2756 = vmatpush1.bf16.msra.mxu0 %v1521
  %2757 = vmatprep.subr.bf16.mxu0 0
  %2758 = vmatpush2.bf16.msra.mxu0 0
  %2759 = vmatprep.subr.bf16.mxu0 0
  %2760 = vmatpush2.bf16.msra.mxu0 0
  %2761 = vmatprep.subr.bf16.mxu0 0
  %2762 = vmatpush2.bf16.msra.mxu0 0
  %2763 = vmatprep.subr.bf16.mxu0 0
  %2764 = vmatpush2.bf16.msra.mxu0 0
  %2765 = vmatprep.subr.bf16.mxu0 0
  %2766 = vmatpush2.bf16.msra.mxu0 0
  %2767 = vmatprep.subr.bf16.mxu0 0
  %2768 = vmatpush2.bf16.msra.mxu0 0
  %2769 = vmatprep.subr.bf16.mxu0 0
  %2770 = vmatpush2.bf16.msra.mxu0 0
  %2771 = vmatprep.subr.bf16.mxu0 0
  %2772 = vmatpush2.bf16.msra.mxu0 0
  %2773 = vmatprep.mubr.bf16.mxu0 0
  %2774 = vmatmul.mubr.bf16.gmra.mxu0 %v2740
  %v2775 = vpop.f32.mrf.mxu0
  %v2776 = vadd.f32 0.0, %v2775
  %v2777 = vpop.f32.mrf.mxu0
  %v2778 = vadd.f32 0.0, %v2777
  %v2779 = vpop.f32.mrf.mxu0
  %v2780 = vadd.f32 0.0, %v2779
  %v2781 = vpop.f32.mrf.mxu0
  %v2782 = vadd.f32 0.0, %v2781
  %2783 = vdwg.mxu0
  %2784 = vmatprep.subr.bf16.mxu0 %v1552
  %2785 = vmatpush1.bf16.msra.mxu0 %v1551
  %2786 = vmatprep.subr.bf16.mxu0 %v1548
  %2787 = vmatpush1.bf16.msra.mxu0 %v1547
  %2788 = vmatprep.subr.bf16.mxu0 %v1544
  %2789 = vmatpush1.bf16.msra.mxu0 %v1543
  %2790 = vmatprep.subr.bf16.mxu0 %v1540
  %2791 = vmatpush1.bf16.msra.mxu0 %v1539
  %2792 = vmatprep.subr.bf16.mxu0 %v1536
  %2793 = vmatpush1.bf16.msra.mxu0 %v1535
  %2794 = vmatprep.subr.bf16.mxu0 %v1532
  %2795 = vmatpush1.bf16.msra.mxu0 %v1531
  %2796 = vmatprep.subr.bf16.mxu0 %v1528
  %2797 = vmatpush1.bf16.msra.mxu0 %v1527
  %2798 = vmatprep.subr.bf16.mxu0 %v1524
  %2799 = vmatpush1.bf16.msra.mxu0 %v1523
  %2800 = vmatprep.subr.bf16.mxu0 0
  %2801 = vmatpush2.bf16.msra.mxu0 0
  %2802 = vmatprep.subr.bf16.mxu0 0
  %2803 = vmatpush2.bf16.msra.mxu0 0
  %2804 = vmatprep.subr.bf16.mxu0 0
  %2805 = vmatpush2.bf16.msra.mxu0 0
  %2806 = vmatprep.subr.bf16.mxu0 0
  %2807 = vmatpush2.bf16.msra.mxu0 0
  %2808 = vmatprep.subr.bf16.mxu0 0
  %2809 = vmatpush2.bf16.msra.mxu0 0
  %2810 = vmatprep.subr.bf16.mxu0 0
  %2811 = vmatpush2.bf16.msra.mxu0 0
  %2812 = vmatprep.subr.bf16.mxu0 0
  %2813 = vmatpush2.bf16.msra.mxu0 0
  %2814 = vmatprep.subr.bf16.mxu0 0
  %2815 = vmatpush2.bf16.msra.mxu0 0
  %2816 = vmatprep.mubr.bf16.mxu0 0
  %2817 = vmatmul.mubr.bf16.gmra.mxu0 %v2740
  %v2818 = vpop.f32.mrf.mxu0
  %v2819 = vadd.f32 0.0, %v2818
  %v2820 = vpop.f32.mrf.mxu0
  %v2821 = vadd.f32 0.0, %v2820
  %v2822 = vpop.f32.mrf.mxu0
  %v2823 = vadd.f32 0.0, %v2822
  %v2824 = vpop.f32.mrf.mxu0
  %v2825 = vadd.f32 0.0, %v2824
  %2826 = vdwg.mxu0
  %s2827 = scalar_lea.vmem [#allocation2], 96
  %v2828 = vld [vmem:[%s2827] sm:$0xff]
  %v2829 = vld [vmem:[%s2827 + $0x8] sm:$0xff]
  %v2830 = vld [vmem:[%s2827 + $0x10] sm:$0xff]
  %v2831 = vld [vmem:[%s2827 + $0x18] sm:$0xff]
  %v2832 = vunpack.c.l.bf16 %v2828
  %v2833 = vunpack.c.h.bf16 %v2828
  %v2834 = vunpack.c.l.bf16 %v2829
  %v2835 = vunpack.c.h.bf16 %v2829
  %v2836 = vunpack.c.l.bf16 %v2830
  %v2837 = vunpack.c.h.bf16 %v2830
  %v2838 = vunpack.c.l.bf16 %v2831
  %v2839 = vunpack.c.h.bf16 %v2831
  %v2840 = vadd.f32 %v2832, %v2689
  %v2841 = vadd.f32 %v2833, %v2691
  %v2842 = vadd.f32 %v2834, %v2732
  %v2843 = vadd.f32 %v2835, %v2734
  %v2844 = vadd.f32 %v2836, %v2693
  %v2845 = vadd.f32 %v2837, %v2695
  %v2846 = vadd.f32 %v2838, %v2736
  %v2847 = vadd.f32 %v2839, %v2738
  %s2848 = scalar_lea.vmem [#allocation3], 128
  %v2849 = vld [vmem:[%s2848] sm:$0xff]
  %v2850 = vld [vmem:[%s2848 + $0x8] sm:$0xff]
  %v2851 = vld [vmem:[%s2848 + $0x10] sm:$0xff]
  %v2852 = vld [vmem:[%s2848 + $0x18] sm:$0xff]
  %v2853 = vunpack.c.l.bf16 %v2849
  %v2854 = vunpack.c.h.bf16 %v2849
  %v2855 = vunpack.c.l.bf16 %v2850
  %v2856 = vunpack.c.h.bf16 %v2850
  %v2857 = vunpack.c.l.bf16 %v2851
  %v2858 = vunpack.c.h.bf16 %v2851
  %v2859 = vunpack.c.l.bf16 %v2852
  %v2860 = vunpack.c.h.bf16 %v2852
  %v2861 = vadd.f32 %v2853, %v2776
  %v2862 = vadd.f32 %v2854, %v2778
  %v2863 = vadd.f32 %v2855, %v2819
  %v2864 = vadd.f32 %v2856, %v2821
  %v2865 = vadd.f32 %v2857, %v2780
  %v2866 = vadd.f32 %v2858, %v2782
  %v2867 = vadd.f32 %v2859, %v2823
  %v2868 = vadd.f32 %v2860, %v2825
  %v2869 = vxor.u32 %v2840, 2147483648
  %v2870 = vxor.u32 %v2844, 2147483648
  %v2871 = vmul.f32 %v2869, 1.442695
  %v2872 = vpow.pop %v2871
  %v2873 = vmul.f32 %v2870, 1.442695
  %v2874 = vpow.pop %v2873
  %v2875 = vadd.f32 %v2872, 1.0
  %v2876 = vadd.f32 %v2874, 1.0
  %v2877 = vrcp.pop %v2875
  %v2878 = vmul.f32 1.0, %v2877
  %v2879 = vrcp.pop %v2876
  %v2880 = vmul.f32 1.0, %v2879
  %v2881 = vxor.u32 %v2841, 2147483648
  %v2882 = vxor.u32 %v2845, 2147483648
  %v2883 = vmul.f32 %v2881, 1.442695
  %v2884 = vpow.pop %v2883
  %v2885 = vmul.f32 %v2882, 1.442695
  %v2886 = vpow.pop %v2885
  %v2887 = vadd.f32 %v2884, 1.0
  %v2888 = vadd.f32 %v2886, 1.0
  %v2889 = vrcp.pop %v2887
  %v2890 = vmul.f32 1.0, %v2889
  %v2891 = vrcp.pop %v2888
  %v2892 = vmul.f32 1.0, %v2891
  %v2893 = vtanh.pop %v2842
  %v2894 = vtanh.pop %v2846
  %v2895 = vxor.u32 %v2843, 2147483648
  %v2896 = vxor.u32 %v2847, 2147483648
  %v2897 = vmul.f32 %v2895, 1.442695
  %v2898 = vpow.pop %v2897
  %v2899 = vmul.f32 %v2896, 1.442695
  %v2900 = vpow.pop %v2899
  %v2901 = vadd.f32 %v2898, 1.0
  %v2902 = vadd.f32 %v2900, 1.0
  %v2903 = vrcp.pop %v2901
  %v2904 = vmul.f32 1.0, %v2903
  %v2905 = vrcp.pop %v2902
  %v2906 = vmul.f32 1.0, %v2905
  %v2907 = vmul.f32 %v2890, %v2647
  %v2908 = vmul.f32 %v2892, %v2648
  %v2909 = vmul.f32 %v2878, %v2893
  %v2910 = vmul.f32 %v2880, %v2894
  %v2911 = vadd.f32 %v2907, %v2909
  %v2912 = vadd.f32 %v2908, %v2910
  %v2913 = vtanh.pop %v2911
  %v2914 = vtanh.pop %v2912
  %v2915 = vmul.f32 %v2904, %v2913
  %v2916 = vmul.f32 %v2906, %v2914
  %v2917 = vxor.u32 %v2861, 2147483648
  %v2918 = vxor.u32 %v2865, 2147483648
  %v2919 = vmul.f32 %v2917, 1.442695
  %v2920 = vpow.pop %v2919
  %v2921 = vmul.f32 %v2918, 1.442695
  %v2922 = vpow.pop %v2921
  %v2923 = vadd.f32 %v2920, 1.0
  %v2924 = vadd.f32 %v2922, 1.0
  %v2925 = vrcp.pop %v2923
  %v2926 = vmul.f32 1.0, %v2925
  %v2927 = vrcp.pop %v2924
  %v2928 = vmul.f32 1.0, %v2927
  %v2929 = vxor.u32 %v2862, 2147483648
  %v2930 = vxor.u32 %v2866, 2147483648
  %v2931 = vmul.f32 %v2929, 1.442695
  %v2932 = vpow.pop %v2931
  %v2933 = vmul.f32 %v2930, 1.442695
  %v2934 = vpow.pop %v2933
  %v2935 = vadd.f32 %v2932, 1.0
  %v2936 = vadd.f32 %v2934, 1.0
  %v2937 = vrcp.pop %v2935
  %v2938 = vmul.f32 1.0, %v2937
  %v2939 = vrcp.pop %v2936
  %v2940 = vmul.f32 1.0, %v2939
  %v2941 = vtanh.pop %v2863
  %v2942 = vtanh.pop %v2867
  %v2943 = vxor.u32 %v2864, 2147483648
  %v2944 = vxor.u32 %v2868, 2147483648
  %v2945 = vmul.f32 %v2943, 1.442695
  %v2946 = vpow.pop %v2945
  %v2947 = vmul.f32 %v2944, 1.442695
  %v2948 = vpow.pop %v2947
  %v2949 = vadd.f32 %v2946, 1.0
  %v2950 = vadd.f32 %v2948, 1.0
  %v2951 = vrcp.pop %v2949
  %v2952 = vmul.f32 1.0, %v2951
  %v2953 = vrcp.pop %v2950
  %v2954 = vmul.f32 1.0, %v2953
  %v2955 = vmul.f32 %v2938, %v2651
  %v2956 = vmul.f32 %v2940, %v2652
  %v2957 = vmul.f32 %v2926, %v2941
  %v2958 = vmul.f32 %v2928, %v2942
  %v2959 = vadd.f32 %v2955, %v2957
  %v2960 = vadd.f32 %v2956, %v2958
  %v2961 = vtanh.pop %v2959
  %v2962 = vtanh.pop %v2960
  %v2963 = vmul.f32 %v2952, %v2961
  %v2964 = vmul.f32 %v2954, %v2962
  %vm2965 = vcmp.gt.s32.totalorder %v1159, 3
  %vm2966 = vcmp.gt.s32.totalorder %v1160, 3
  %vm2967 = vcmp.gt.s32.totalorder %v1159, 4
  %vm2968 = vcmp.gt.s32.totalorder %v1160, 4
  %v2969 = vsel %vm2965, 1, 0
  %v2970 = vsel %vm2966, 1, 0
  %2971 = vset.pattern.permute.xlu0 0
  %2972 = vperm.xlu0 %2971, %v2969
  %v2973 = vpop.permute.xlu0 %2972
  %2974 = vset.pattern.permute.xlu0 0
  %2975 = vperm.xlu0 %2974, %v2970
  %v2976 = vpop.permute.xlu0 %2975
  %vm2977 = vcmp.eq.s32.totalorder %v2973, 1
  %vm2978 = vcmp.eq.s32.totalorder %v2976, 1
  %v2979 = vsel %vm2977, %v2915, 0.0
  %v2980 = vsel %vm2978, %v2916, 0.0
  %v2981 = vpack.c.bf16 %v2980, %v2979
  %v2983 = vunpack.c.l.b16 %v2981
  %v2984 = vunpack.c.h.b16 %v2981
  %v2985 = vpack.c.b16 %v2983, %v2983
  %v2986 = vpack.c.b16 %v2984, %v2984
  %s2989 = scalar_lea.vmem %s6, 48
  %2990 = vst [vmem:[%s2989] sm:$0xf] %v2985
  %2991 = vst [vmem:[%s2989 + $0x8] sm:$0xf] %v2986
  %v2992 = vsel %vm2967, 1, 0
  %v2993 = vsel %vm2968, 1, 0
  %2994 = vset.pattern.permute.xlu0 0
  %2995 = vperm.xlu0 %2994, %v2992
  %v2996 = vpop.permute.xlu0 %2995
  %2997 = vset.pattern.permute.xlu0 0
  %2998 = vperm.xlu0 %2997, %v2993
  %v2999 = vpop.permute.xlu0 %2998
  %vm3000 = vcmp.eq.s32.totalorder %v2996, 1
  %vm3001 = vcmp.eq.s32.totalorder %v2999, 1
  %v3002 = vsel %vm3000, %v2963, 0.0
  %v3003 = vsel %vm3001, %v2964, 0.0
  %v3004 = vpack.c.bf16 %v3003, %v3002
  %v3006 = vunpack.c.l.b16 %v3004
  %v3007 = vunpack.c.h.b16 %v3004
  %v3008 = vpack.c.b16 %v3006, %v3006
  %v3009 = vpack.c.b16 %v3007, %v3007
  %s3012 = scalar_lea.vmem %s6, 64
  %3013 = vst [vmem:[%s3012 + $0x4] sm:$0xf] %v3008
  %3014 = vst [vmem:[%s3012 + $0xc] sm:$0xf] %v3009
  %v3015 = vsel %vm2977, %v2915, %v2645
  %v3016 = vsel %vm2978, %v2916, %v2646
  %3017 = vst [vmem:[#allocation4] sm:$0xff] %v3015
  %3018 = vst [vmem:[#allocation4 + $0x8] sm:$0xff] %v3016
  %v3019 = vsel %vm2977, %v2911, %v2647
  %v3020 = vsel %vm2978, %v2912, %v2648
  %3021 = vst [vmem:[#allocation5] sm:$0xff] %v3019
  %3022 = vst [vmem:[#allocation5 + $0x8] sm:$0xff] %v3020
  %v3023 = vsel %vm3000, %v2963, %v2649
  %v3024 = vsel %vm3001, %v2964, %v2650
  %3025 = vst [vmem:[#allocation6] sm:$0xff] %v3023
  %3026 = vst [vmem:[#allocation6 + $0x8] sm:$0xff] %v3024
  %v3027 = vsel %vm3000, %v2959, %v2651
  %v3028 = vsel %vm3001, %v2960, %v2652
  %3029 = vst [vmem:[#allocation7] sm:$0xff] %v3027
  %3030 = vst [vmem:[#allocation7 + $0x8] sm:$0xff] %v3028
  %v3031 = vld [vmem:[#allocation4] sm:$0xff]
  %v3032 = vld [vmem:[#allocation4 + $0x8] sm:$0xff]
  %v3033 = vld [vmem:[#allocation5] sm:$0xff]
  %v3034 = vld [vmem:[#allocation5 + $0x8] sm:$0xff]
  %v3035 = vld [vmem:[#allocation6] sm:$0xff]
  %v3036 = vld [vmem:[#allocation6 + $0x8] sm:$0xff]
  %v3037 = vld [vmem:[#allocation7] sm:$0xff]
  %v3038 = vld [vmem:[#allocation7 + $0x8] sm:$0xff]
  %v3039 = vpack.c.bf16 %v3032, %v3031
  %3040 = vmatprep.subr.bf16.mxu0 %v1303
  %3041 = vmatpush1.bf16.msra.mxu0 %v1302
  %3042 = vmatprep.subr.bf16.mxu0 %v1299
  %3043 = vmatpush1.bf16.msra.mxu0 %v1298
  %3044 = vmatprep.subr.bf16.mxu0 %v1295
  %3045 = vmatpush1.bf16.msra.mxu0 %v1294
  %3046 = vmatprep.subr.bf16.mxu0 %v1291
  %3047 = vmatpush1.bf16.msra.mxu0 %v1290
  %3048 = vmatprep.subr.bf16.mxu0 %v1287
  %3049 = vmatpush1.bf16.msra.mxu0 %v1286
  %3050 = vmatprep.subr.bf16.mxu0 %v1283
  %3051 = vmatpush1.bf16.msra.mxu0 %v1282
  %3052 = vmatprep.subr.bf16.mxu0 %v1279
  %3053 = vmatpush1.bf16.msra.mxu0 %v1278
  %3054 = vmatprep.subr.bf16.mxu0 %v1275
  %3055 = vmatpush1.bf16.msra.mxu0 %v1274
  %3056 = vmatprep.subr.bf16.mxu0 0
  %3057 = vmatpush2.bf16.msra.mxu0 0
  %3058 = vmatprep.subr.bf16.mxu0 0
  %3059 = vmatpush2.bf16.msra.mxu0 0
  %3060 = vmatprep.subr.bf16.mxu0 0
  %3061 = vmatpush2.bf16.msra.mxu0 0
  %3062 = vmatprep.subr.bf16.mxu0 0
  %3063 = vmatpush2.bf16.msra.mxu0 0
  %3064 = vmatprep.subr.bf16.mxu0 0
  %3065 = vmatpush2.bf16.msra.mxu0 0
  %3066 = vmatprep.subr.bf16.mxu0 0
  %3067 = vmatpush2.bf16.msra.mxu0 0
  %3068 = vmatprep.subr.bf16.mxu0 0
  %3069 = vmatpush2.bf16.msra.mxu0 0
  %3070 = vmatprep.subr.bf16.mxu0 0
  %3071 = vmatpush2.bf16.msra.mxu0 0
  %3072 = vmatprep.mubr.bf16.mxu0 0
  %3073 = vmatmul.mubr.bf16.gmra.mxu0 %v3039
  %v3074 = vpop.f32.mrf.mxu0
  %v3075 = vadd.f32 0.0, %v3074
  %v3076 = vpop.f32.mrf.mxu0
  %v3077 = vadd.f32 0.0, %v3076
  %v3078 = vpop.f32.mrf.mxu0
  %v3079 = vadd.f32 0.0, %v3078
  %v3080 = vpop.f32.mrf.mxu0
  %v3081 = vadd.f32 0.0, %v3080
  %3082 = vdwg.mxu0
  %3083 = vmatprep.subr.bf16.mxu0 %v1305
  %3084 = vmatpush1.bf16.msra.mxu0 %v1304
  %3085 = vmatprep.subr.bf16.mxu0 %v1301
  %3086 = vmatpush1.bf16.msra.mxu0 %v1300
  %3087 = vmatprep.subr.bf16.mxu0 %v1297
  %3088 = vmatpush1.bf16.msra.mxu0 %v1296
  %3089 = vmatprep.subr.bf16.mxu0 %v1293
  %3090 = vmatpush1.bf16.msra.mxu0 %v1292
  %3091 = vmatprep.subr.bf16.mxu0 %v1289
  %3092 = vmatpush1.bf16.msra.mxu0 %v1288
  %3093 = vmatprep.subr.bf16.mxu0 %v1285
  %3094 = vmatpush1.bf16.msra.mxu0 %v1284
  %3095 = vmatprep.subr.bf16.mxu0 %v1281
  %3096 = vmatpush1.bf16.msra.mxu0 %v1280
  %3097 = vmatprep.subr.bf16.mxu0 %v1277
  %3098 = vmatpush1.bf16.msra.mxu0 %v1276
  %3099 = vmatprep.subr.bf16.mxu0 0
  %3100 = vmatpush2.bf16.msra.mxu0 0
  %3101 = vmatprep.subr.bf16.mxu0 0
  %3102 = vmatpush2.bf16.msra.mxu0 0
  %3103 = vmatprep.subr.bf16.mxu0 0
  %3104 = vmatpush2.bf16.msra.mxu0 0
  %3105 = vmatprep.subr.bf16.mxu0 0
  %3106 = vmatpush2.bf16.msra.mxu0 0
  %3107 = vmatprep.subr.bf16.mxu0 0
  %3108 = vmatpush2.bf16.msra.mxu0 0
  %3109 = vmatprep.subr.bf16.mxu0 0
  %3110 = vmatpush2.bf16.msra.mxu0 0
  %3111 = vmatprep.subr.bf16.mxu0 0
  %3112 = vmatpush2.bf16.msra.mxu0 0
  %3113 = vmatprep.subr.bf16.mxu0 0
  %3114 = vmatpush2.bf16.msra.mxu0 0
  %3115 = vmatprep.mubr.bf16.mxu0 0
  %3116 = vmatmul.mubr.bf16.gmra.mxu0 %v3039
  %v3117 = vpop.f32.mrf.mxu0
  %v3118 = vadd.f32 0.0, %v3117
  %v3119 = vpop.f32.mrf.mxu0
  %v3120 = vadd.f32 0.0, %v3119
  %v3121 = vpop.f32.mrf.mxu0
  %v3122 = vadd.f32 0.0, %v3121
  %v3123 = vpop.f32.mrf.mxu0
  %v3124 = vadd.f32 0.0, %v3123
  %3125 = vdwg.mxu0
  %v3126 = vpack.c.bf16 %v3036, %v3035
  %3127 = vmatprep.subr.bf16.mxu0 %v1550
  %3128 = vmatpush1.bf16.msra.mxu0 %v1549
  %3129 = vmatprep.subr.bf16.mxu0 %v1546
  %3130 = vmatpush1.bf16.msra.mxu0 %v1545
  %3131 = vmatprep.subr.bf16.mxu0 %v1542
  %3132 = vmatpush1.bf16.msra.mxu0 %v1541
  %3133 = vmatprep.subr.bf16.mxu0 %v1538
  %3134 = vmatpush1.bf16.msra.mxu0 %v1537
  %3135 = vmatprep.subr.bf16.mxu0 %v1534
  %3136 = vmatpush1.bf16.msra.mxu0 %v1533
  %3137 = vmatprep.subr.bf16.mxu0 %v1530
  %3138 = vmatpush1.bf16.msra.mxu0 %v1529
  %3139 = vmatprep.subr.bf16.mxu0 %v1526
  %3140 = vmatpush1.bf16.msra.mxu0 %v1525
  %3141 = vmatprep.subr.bf16.mxu0 %v1522
  %3142 = vmatpush1.bf16.msra.mxu0 %v1521
  %3143 = vmatprep.subr.bf16.mxu0 0
  %3144 = vmatpush2.bf16.msra.mxu0 0
  %3145 = vmatprep.subr.bf16.mxu0 0
  %3146 = vmatpush2.bf16.msra.mxu0 0
  %3147 = vmatprep.subr.bf16.mxu0 0
  %3148 = vmatpush2.bf16.msra.mxu0 0
  %3149 = vmatprep.subr.bf16.mxu0 0
  %3150 = vmatpush2.bf16.msra.mxu0 0
  %3151 = vmatprep.subr.bf16.mxu0 0
  %3152 = vmatpush2.bf16.msra.mxu0 0
  %3153 = vmatprep.subr.bf16.mxu0 0
  %3154 = vmatpush2.bf16.msra.mxu0 0
  %3155 = vmatprep.subr.bf16.mxu0 0
  %3156 = vmatpush2.bf16.msra.mxu0 0
  %3157 = vmatprep.subr.bf16.mxu0 0
  %3158 = vmatpush2.bf16.msra.mxu0 0
  %3159 = vmatprep.mubr.bf16.mxu0 0
  %3160 = vmatmul.mubr.bf16.gmra.mxu0 %v3126
  %v3161 = vpop.f32.mrf.mxu0
  %v3162 = vadd.f32 0.0, %v3161
  %v3163 = vpop.f32.mrf.mxu0
  %v3164 = vadd.f32 0.0, %v3163
  %v3165 = vpop.f32.mrf.mxu0
  %v3166 = vadd.f32 0.0, %v3165
  %v3167 = vpop.f32.mrf.mxu0
  %v3168 = vadd.f32 0.0, %v3167
  %3169 = vdwg.mxu0
  %3170 = vmatprep.subr.bf16.mxu0 %v1552
  %3171 = vmatpush1.bf16.msra.mxu0 %v1551
  %3172 = vmatprep.subr.bf16.mxu0 %v1548
  %3173 = vmatpush1.bf16.msra.mxu0 %v1547
  %3174 = vmatprep.subr.bf16.mxu0 %v1544
  %3175 = vmatpush1.bf16.msra.mxu0 %v1543
  %3176 = vmatprep.subr.bf16.mxu0 %v1540
  %3177 = vmatpush1.bf16.msra.mxu0 %v1539
  %3178 = vmatprep.subr.bf16.mxu0 %v1536
  %3179 = vmatpush1.bf16.msra.mxu0 %v1535
  %3180 = vmatprep.subr.bf16.mxu0 %v1532
  %3181 = vmatpush1.bf16.msra.mxu0 %v1531
  %3182 = vmatprep.subr.bf16.mxu0 %v1528
  %3183 = vmatpush1.bf16.msra.mxu0 %v1527
  %3184 = vmatprep.subr.bf16.mxu0 %v1524
  %3185 = vmatpush1.bf16.msra.mxu0 %v1523
  %3186 = vmatprep.subr.bf16.mxu0 0
  %3187 = vmatpush2.bf16.msra.mxu0 0
  %3188 = vmatprep.subr.bf16.mxu0 0
  %3189 = vmatpush2.bf16.msra.mxu0 0
  %3190 = vmatprep.subr.bf16.mxu0 0
  %3191 = vmatpush2.bf16.msra.mxu0 0
  %3192 = vmatprep.subr.bf16.mxu0 0
  %3193 = vmatpush2.bf16.msra.mxu0 0
  %3194 = vmatprep.subr.bf16.mxu0 0
  %3195 = vmatpush2.bf16.msra.mxu0 0
  %3196 = vmatprep.subr.bf16.mxu0 0
  %3197 = vmatpush2.bf16.msra.mxu0 0
  %3198 = vmatprep.subr.bf16.mxu0 0
  %3199 = vmatpush2.bf16.msra.mxu0 0
  %3200 = vmatprep.subr.bf16.mxu0 0
  %3201 = vmatpush2.bf16.msra.mxu0 0
  %3202 = vmatprep.mubr.bf16.mxu0 0
  %3203 = vmatmul.mubr.bf16.gmra.mxu0 %v3126
  %v3204 = vpop.f32.mrf.mxu0
  %v3205 = vadd.f32 0.0, %v3204
  %v3206 = vpop.f32.mrf.mxu0
  %v3207 = vadd.f32 0.0, %v3206
  %v3208 = vpop.f32.mrf.mxu0
  %v3209 = vadd.f32 0.0, %v3208
  %v3210 = vpop.f32.mrf.mxu0
  %v3211 = vadd.f32 0.0, %v3210
  %3212 = vdwg.mxu0
  %s3213 = scalar_lea.vmem [#allocation2], 128
  %v3214 = vld [vmem:[%s3213] sm:$0xff]
  %v3215 = vld [vmem:[%s3213 + $0x8] sm:$0xff]
  %v3216 = vld [vmem:[%s3213 + $0x10] sm:$0xff]
  %v3217 = vld [vmem:[%s3213 + $0x18] sm:$0xff]
  %v3218 = vunpack.c.l.bf16 %v3214
  %v3219 = vunpack.c.h.bf16 %v3214
  %v3220 = vunpack.c.l.bf16 %v3215
  %v3221 = vunpack.c.h.bf16 %v3215
  %v3222 = vunpack.c.l.bf16 %v3216
  %v3223 = vunpack.c.h.bf16 %v3216
  %v3224 = vunpack.c.l.bf16 %v3217
  %v3225 = vunpack.c.h.bf16 %v3217
  %v3226 = vadd.f32 %v3218, %v3075
  %v3227 = vadd.f32 %v3219, %v3077
  %v3228 = vadd.f32 %v3220, %v3118
  %v3229 = vadd.f32 %v3221, %v3120
  %v3230 = vadd.f32 %v3222, %v3079
  %v3231 = vadd.f32 %v3223, %v3081
  %v3232 = vadd.f32 %v3224, %v3122
  %v3233 = vadd.f32 %v3225, %v3124
  %s3234 = scalar_lea.vmem [#allocation3], 96
  %v3235 = vld [vmem:[%s3234] sm:$0xff]
  %v3236 = vld [vmem:[%s3234 + $0x8] sm:$0xff]
  %v3237 = vld [vmem:[%s3234 + $0x10] sm:$0xff]
  %v3238 = vld [vmem:[%s3234 + $0x18] sm:$0xff]
  %v3239 = vunpack.c.l.bf16 %v3235
  %v3240 = vunpack.c.h.bf16 %v3235
  %v3241 = vunpack.c.l.bf16 %v3236
  %v3242 = vunpack.c.h.bf16 %v3236
  %v3243 = vunpack.c.l.bf16 %v3237
  %v3244 = vunpack.c.h.bf16 %v3237
  %v3245 = vunpack.c.l.bf16 %v3238
  %v3246 = vunpack.c.h.bf16 %v3238
  %v3247 = vadd.f32 %v3239, %v3162
  %v3248 = vadd.f32 %v3240, %v3164
  %v3249 = vadd.f32 %v3241, %v3205
  %v3250 = vadd.f32 %v3242, %v3207
  %v3251 = vadd.f32 %v3243, %v3166
  %v3252 = vadd.f32 %v3244, %v3168
  %v3253 = vadd.f32 %v3245, %v3209
  %v3254 = vadd.f32 %v3246, %v3211
  %v3255 = vxor.u32 %v3226, 2147483648
  %v3256 = vxor.u32 %v3230, 2147483648
  %v3257 = vmul.f32 %v3255, 1.442695
  %v3258 = vpow.pop %v3257
  %v3259 = vmul.f32 %v3256, 1.442695
  %v3260 = vpow.pop %v3259
  %v3261 = vadd.f32 %v3258, 1.0
  %v3262 = vadd.f32 %v3260, 1.0
  %v3263 = vrcp.pop %v3261
  %v3264 = vmul.f32 1.0, %v3263
  %v3265 = vrcp.pop %v3262
  %v3266 = vmul.f32 1.0, %v3265
  %v3267 = vxor.u32 %v3227, 2147483648
  %v3268 = vxor.u32 %v3231, 2147483648
  %v3269 = vmul.f32 %v3267, 1.442695
  %v3270 = vpow.pop %v3269
  %v3271 = vmul.f32 %v3268, 1.442695
  %v3272 = vpow.pop %v3271
  %v3273 = vadd.f32 %v3270, 1.0
  %v3274 = vadd.f32 %v3272, 1.0
  %v3275 = vrcp.pop %v3273
  %v3276 = vmul.f32 1.0, %v3275
  %v3277 = vrcp.pop %v3274
  %v3278 = vmul.f32 1.0, %v3277
  %v3279 = vtanh.pop %v3228
  %v3280 = vtanh.pop %v3232
  %v3281 = vxor.u32 %v3229, 2147483648
  %v3282 = vxor.u32 %v3233, 2147483648
  %v3283 = vmul.f32 %v3281, 1.442695
  %v3284 = vpow.pop %v3283
  %v3285 = vmul.f32 %v3282, 1.442695
  %v3286 = vpow.pop %v3285
  %v3287 = vadd.f32 %v3284, 1.0
  %v3288 = vadd.f32 %v3286, 1.0
  %v3289 = vrcp.pop %v3287
  %v3290 = vmul.f32 1.0, %v3289
  %v3291 = vrcp.pop %v3288
  %v3292 = vmul.f32 1.0, %v3291
  %v3293 = vmul.f32 %v3276, %v3033
  %v3294 = vmul.f32 %v3278, %v3034
  %v3295 = vmul.f32 %v3264, %v3279
  %v3296 = vmul.f32 %v3266, %v3280
  %v3297 = vadd.f32 %v3293, %v3295
  %v3298 = vadd.f32 %v3294, %v3296
  %v3299 = vtanh.pop %v3297
  %v3300 = vtanh.pop %v3298
  %v3301 = vmul.f32 %v3290, %v3299
  %v3302 = vmul.f32 %v3292, %v3300
  %v3303 = vxor.u32 %v3247, 2147483648
  %v3304 = vxor.u32 %v3251, 2147483648
  %v3305 = vmul.f32 %v3303, 1.442695
  %v3306 = vpow.pop %v3305
  %v3307 = vmul.f32 %v3304, 1.442695
  %v3308 = vpow.pop %v3307
  %v3309 = vadd.f32 %v3306, 1.0
  %v3310 = vadd.f32 %v3308, 1.0
  %v3311 = vrcp.pop %v3309
  %v3312 = vmul.f32 1.0, %v3311
  %v3313 = vrcp.pop %v3310
  %v3314 = vmul.f32 1.0, %v3313
  %v3315 = vxor.u32 %v3248, 2147483648
  %v3316 = vxor.u32 %v3252, 2147483648
  %v3317 = vmul.f32 %v3315, 1.442695
  %v3318 = vpow.pop %v3317
  %v3319 = vmul.f32 %v3316, 1.442695
  %v3320 = vpow.pop %v3319
  %v3321 = vadd.f32 %v3318, 1.0
  %v3322 = vadd.f32 %v3320, 1.0
  %v3323 = vrcp.pop %v3321
  %v3324 = vmul.f32 1.0, %v3323
  %v3325 = vrcp.pop %v3322
  %v3326 = vmul.f32 1.0, %v3325
  %v3327 = vtanh.pop %v3249
  %v3328 = vtanh.pop %v3253
  %v3329 = vxor.u32 %v3250, 2147483648
  %v3330 = vxor.u32 %v3254, 2147483648
  %v3331 = vmul.f32 %v3329, 1.442695
  %v3332 = vpow.pop %v3331
  %v3333 = vmul.f32 %v3330, 1.442695
  %v3334 = vpow.pop %v3333
  %v3335 = vadd.f32 %v3332, 1.0
  %v3336 = vadd.f32 %v3334, 1.0
  %v3337 = vrcp.pop %v3335
  %v3338 = vmul.f32 1.0, %v3337
  %v3339 = vrcp.pop %v3336
  %v3340 = vmul.f32 1.0, %v3339
  %v3341 = vmul.f32 %v3324, %v3037
  %v3342 = vmul.f32 %v3326, %v3038
  %v3343 = vmul.f32 %v3312, %v3327
  %v3344 = vmul.f32 %v3314, %v3328
  %v3345 = vadd.f32 %v3341, %v3343
  %v3346 = vadd.f32 %v3342, %v3344
  %v3347 = vtanh.pop %v3345
  %v3348 = vtanh.pop %v3346
  %v3349 = vmul.f32 %v3338, %v3347
  %v3350 = vmul.f32 %v3340, %v3348
  %v3351 = vsel %vm3000, %v3301, 0.0
  %v3352 = vsel %vm3001, %v3302, 0.0
  %v3353 = vpack.c.bf16 %v3352, %v3351
  %v3355 = vunpack.c.l.b16 %v3353
  %v3356 = vunpack.c.h.b16 %v3353
  %v3357 = vpack.c.b16 %v3355, %v3355
  %v3358 = vpack.c.b16 %v3356, %v3356
  %3361 = vst [vmem:[%s3012] sm:$0xf] %v3357
  %3362 = vst [vmem:[%s3012 + $0x8] sm:$0xf] %v3358
  %v3363 = vsel %vm2977, %v3349, 0.0
  %v3364 = vsel %vm2978, %v3350, 0.0
  %v3365 = vpack.c.bf16 %v3364, %v3363
  %v3367 = vunpack.c.l.b16 %v3365
  %v3368 = vunpack.c.h.b16 %v3365
  %v3369 = vpack.c.b16 %v3367, %v3367
  %v3370 = vpack.c.b16 %v3368, %v3368
  %3373 = vst [vmem:[%s2989 + $0x4] sm:$0xf] %v3369
  %3374 = vst [vmem:[%s2989 + $0xc] sm:$0xf] %v3370
  %v3375 = vsel %vm3000, %v3301, %v3031
  %v3376 = vsel %vm3001, %v3302, %v3032
  %3377 = vst [vmem:[#allocation4] sm:$0xff] %v3375
  %3378 = vst [vmem:[#allocation4 + $0x8] sm:$0xff] %v3376
  %v3379 = vsel %vm3000, %v3297, %v3033
  %v3380 = vsel %vm3001, %v3298, %v3034
  %3381 = vst [vmem:[#allocation5] sm:$0xff] %v3379
  %3382 = vst [vmem:[#allocation5 + $0x8] sm:$0xff] %v3380
  %v3383 = vsel %vm2977, %v3349, %v3035
  %v3384 = vsel %vm2978, %v3350, %v3036
  %3385 = vst [vmem:[#allocation6] sm:$0xff] %v3383
  %3386 = vst [vmem:[#allocation6 + $0x8] sm:$0xff] %v3384
  %v3387 = vsel %vm2977, %v3345, %v3037
  %v3388 = vsel %vm2978, %v3346, %v3038
  %3389 = vst [vmem:[#allocation7] sm:$0xff] %v3387
  %3390 = vst [vmem:[#allocation7 + $0x8] sm:$0xff] %v3388
  %v3391 = vld [vmem:[#allocation4] sm:$0xff]
  %v3392 = vld [vmem:[#allocation4 + $0x8] sm:$0xff]
  %v3393 = vld [vmem:[#allocation5] sm:$0xff]
  %v3394 = vld [vmem:[#allocation5 + $0x8] sm:$0xff]
  %v3395 = vld [vmem:[#allocation6] sm:$0xff]
  %v3396 = vld [vmem:[#allocation6 + $0x8] sm:$0xff]
  %v3397 = vld [vmem:[#allocation7] sm:$0xff]
  %v3398 = vld [vmem:[#allocation7 + $0x8] sm:$0xff]
  %v3399 = vpack.c.bf16 %v3392, %v3391
  %3400 = vmatprep.subr.bf16.mxu0 %v1303
  %3401 = vmatpush1.bf16.msra.mxu0 %v1302
  %3402 = vmatprep.subr.bf16.mxu0 %v1299
  %3403 = vmatpush1.bf16.msra.mxu0 %v1298
  %3404 = vmatprep.subr.bf16.mxu0 %v1295
  %3405 = vmatpush1.bf16.msra.mxu0 %v1294
  %3406 = vmatprep.subr.bf16.mxu0 %v1291
  %3407 = vmatpush1.bf16.msra.mxu0 %v1290
  %3408 = vmatprep.subr.bf16.mxu0 %v1287
  %3409 = vmatpush1.bf16.msra.mxu0 %v1286
  %3410 = vmatprep.subr.bf16.mxu0 %v1283
  %3411 = vmatpush1.bf16.msra.mxu0 %v1282
  %3412 = vmatprep.subr.bf16.mxu0 %v1279
  %3413 = vmatpush1.bf16.msra.mxu0 %v1278
  %3414 = vmatprep.subr.bf16.mxu0 %v1275
  %3415 = vmatpush1.bf16.msra.mxu0 %v1274
  %3416 = vmatprep.subr.bf16.mxu0 0
  %3417 = vmatpush2.bf16.msra.mxu0 0
  %3418 = vmatprep.subr.bf16.mxu0 0
  %3419 = vmatpush2.bf16.msra.mxu0 0
  %3420 = vmatprep.subr.bf16.mxu0 0
  %3421 = vmatpush2.bf16.msra.mxu0 0
  %3422 = vmatprep.subr.bf16.mxu0 0
  %3423 = vmatpush2.bf16.msra.mxu0 0
  %3424 = vmatprep.subr.bf16.mxu0 0
  %3425 = vmatpush2.bf16.msra.mxu0 0
  %3426 = vmatprep.subr.bf16.mxu0 0
  %3427 = vmatpush2.bf16.msra.mxu0 0
  %3428 = vmatprep.subr.bf16.mxu0 0
  %3429 = vmatpush2.bf16.msra.mxu0 0
  %3430 = vmatprep.subr.bf16.mxu0 0
  %3431 = vmatpush2.bf16.msra.mxu0 0
  %3432 = vmatprep.mubr.bf16.mxu0 0
  %3433 = vmatmul.mubr.bf16.gmra.mxu0 %v3399
  %v3434 = vpop.f32.mrf.mxu0
  %v3435 = vadd.f32 0.0, %v3434
  %v3436 = vpop.f32.mrf.mxu0
  %v3437 = vadd.f32 0.0, %v3436
  %v3438 = vpop.f32.mrf.mxu0
  %v3439 = vadd.f32 0.0, %v3438
  %v3440 = vpop.f32.mrf.mxu0
  %v3441 = vadd.f32 0.0, %v3440
  %3442 = vdwg.mxu0
  %3443 = vmatprep.subr.bf16.mxu0 %v1305
  %3444 = vmatpush1.bf16.msra.mxu0 %v1304
  %3445 = vmatprep.subr.bf16.mxu0 %v1301
  %3446 = vmatpush1.bf16.msra.mxu0 %v1300
  %3447 = vmatprep.subr.bf16.mxu0 %v1297
  %3448 = vmatpush1.bf16.msra.mxu0 %v1296
  %3449 = vmatprep.subr.bf16.mxu0 %v1293
  %3450 = vmatpush1.bf16.msra.mxu0 %v1292
  %3451 = vmatprep.subr.bf16.mxu0 %v1289
  %3452 = vmatpush1.bf16.msra.mxu0 %v1288
  %3453 = vmatprep.subr.bf16.mxu0 %v1285
  %3454 = vmatpush1.bf16.msra.mxu0 %v1284
  %3455 = vmatprep.subr.bf16.mxu0 %v1281
  %3456 = vmatpush1.bf16.msra.mxu0 %v1280
  %3457 = vmatprep.subr.bf16.mxu0 %v1277
  %3458 = vmatpush1.bf16.msra.mxu0 %v1276
  %3459 = vmatprep.subr.bf16.mxu0 0
  %3460 = vmatpush2.bf16.msra.mxu0 0
  %3461 = vmatprep.subr.bf16.mxu0 0
  %3462 = vmatpush2.bf16.msra.mxu0 0
  %3463 = vmatprep.subr.bf16.mxu0 0
  %3464 = vmatpush2.bf16.msra.mxu0 0
  %3465 = vmatprep.subr.bf16.mxu0 0
  %3466 = vmatpush2.bf16.msra.mxu0 0
  %3467 = vmatprep.subr.bf16.mxu0 0
  %3468 = vmatpush2.bf16.msra.mxu0 0
  %3469 = vmatprep.subr.bf16.mxu0 0
  %3470 = vmatpush2.bf16.msra.mxu0 0
  %3471 = vmatprep.subr.bf16.mxu0 0
  %3472 = vmatpush2.bf16.msra.mxu0 0
  %3473 = vmatprep.subr.bf16.mxu0 0
  %3474 = vmatpush2.bf16.msra.mxu0 0
  %3475 = vmatprep.mubr.bf16.mxu0 0
  %3476 = vmatmul.mubr.bf16.gmra.mxu0 %v3399
  %v3477 = vpop.f32.mrf.mxu0
  %v3478 = vadd.f32 0.0, %v3477
  %v3479 = vpop.f32.mrf.mxu0
  %v3480 = vadd.f32 0.0, %v3479
  %v3481 = vpop.f32.mrf.mxu0
  %v3482 = vadd.f32 0.0, %v3481
  %v3483 = vpop.f32.mrf.mxu0
  %v3484 = vadd.f32 0.0, %v3483
  %3485 = vdwg.mxu0
  %v3486 = vpack.c.bf16 %v3396, %v3395
  %3487 = vmatprep.subr.bf16.mxu0 %v1550
  %3488 = vmatpush1.bf16.msra.mxu0 %v1549
  %3489 = vmatprep.subr.bf16.mxu0 %v1546
  %3490 = vmatpush1.bf16.msra.mxu0 %v1545
  %3491 = vmatprep.subr.bf16.mxu0 %v1542
  %3492 = vmatpush1.bf16.msra.mxu0 %v1541
  %3493 = vmatprep.subr.bf16.mxu0 %v1538
  %3494 = vmatpush1.bf16.msra.mxu0 %v1537
  %3495 = vmatprep.subr.bf16.mxu0 %v1534
  %3496 = vmatpush1.bf16.msra.mxu0 %v1533
  %3497 = vmatprep.subr.bf16.mxu0 %v1530
  %3498 = vmatpush1.bf16.msra.mxu0 %v1529
  %3499 = vmatprep.subr.bf16.mxu0 %v1526
  %3500 = vmatpush1.bf16.msra.mxu0 %v1525
  %3501 = vmatprep.subr.bf16.mxu0 %v1522
  %3502 = vmatpush1.bf16.msra.mxu0 %v1521
  %3503 = vmatprep.subr.bf16.mxu0 0
  %3504 = vmatpush2.bf16.msra.mxu0 0
  %3505 = vmatprep.subr.bf16.mxu0 0
  %3506 = vmatpush2.bf16.msra.mxu0 0
  %3507 = vmatprep.subr.bf16.mxu0 0
  %3508 = vmatpush2.bf16.msra.mxu0 0
  %3509 = vmatprep.subr.bf16.mxu0 0
  %3510 = vmatpush2.bf16.msra.mxu0 0
  %3511 = vmatprep.subr.bf16.mxu0 0
  %3512 = vmatpush2.bf16.msra.mxu0 0
  %3513 = vmatprep.subr.bf16.mxu0 0
  %3514 = vmatpush2.bf16.msra.mxu0 0
  %3515 = vmatprep.subr.bf16.mxu0 0
  %3516 = vmatpush2.bf16.msra.mxu0 0
  %3517 = vmatprep.subr.bf16.mxu0 0
  %3518 = vmatpush2.bf16.msra.mxu0 0
  %3519 = vmatprep.mubr.bf16.mxu0 0
  %3520 = vmatmul.mubr.bf16.gmra.mxu0 %v3486
  %v3521 = vpop.f32.mrf.mxu0
  %v3522 = vadd.f32 0.0, %v3521
  %v3523 = vpop.f32.mrf.mxu0
  %v3524 = vadd.f32 0.0, %v3523
  %v3525 = vpop.f32.mrf.mxu0
  %v3526 = vadd.f32 0.0, %v3525
  %v3527 = vpop.f32.mrf.mxu0
  %v3528 = vadd.f32 0.0, %v3527
  %3529 = vdwg.mxu0
  %3530 = vmatprep.subr.bf16.mxu0 %v1552
  %3531 = vmatpush1.bf16.msra.mxu0 %v1551
  %3532 = vmatprep.subr.bf16.mxu0 %v1548
  %3533 = vmatpush1.bf16.msra.mxu0 %v1547
  %3534 = vmatprep.subr.bf16.mxu0 %v1544
  %3535 = vmatpush1.bf16.msra.mxu0 %v1543
  %3536 = vmatprep.subr.bf16.mxu0 %v1540
  %3537 = vmatpush1.bf16.msra.mxu0 %v1539
  %3538 = vmatprep.subr.bf16.mxu0 %v1536
  %3539 = vmatpush1.bf16.msra.mxu0 %v1535
  %3540 = vmatprep.subr.bf16.mxu0 %v1532
  %3541 = vmatpush1.bf16.msra.mxu0 %v1531
  %3542 = vmatprep.subr.bf16.mxu0 %v1528
  %3543 = vmatpush1.bf16.msra.mxu0 %v1527
  %3544 = vmatprep.subr.bf16.mxu0 %v1524
  %3545 = vmatpush1.bf16.msra.mxu0 %v1523
  %3546 = vmatprep.subr.bf16.mxu0 0
  %3547 = vmatpush2.bf16.msra.mxu0 0
  %3548 = vmatprep.subr.bf16.mxu0 0
  %3549 = vmatpush2.bf16.msra.mxu0 0
  %3550 = vmatprep.subr.bf16.mxu0 0
  %3551 = vmatpush2.bf16.msra.mxu0 0
  %3552 = vmatprep.subr.bf16.mxu0 0
  %3553 = vmatpush2.bf16.msra.mxu0 0
  %3554 = vmatprep.subr.bf16.mxu0 0
  %3555 = vmatpush2.bf16.msra.mxu0 0
  %3556 = vmatprep.subr.bf16.mxu0 0
  %3557 = vmatpush2.bf16.msra.mxu0 0
  %3558 = vmatprep.subr.bf16.mxu0 0
  %3559 = vmatpush2.bf16.msra.mxu0 0
  %3560 = vmatprep.subr.bf16.mxu0 0
  %3561 = vmatpush2.bf16.msra.mxu0 0
  %3562 = vmatprep.mubr.bf16.mxu0 0
  %3563 = vmatmul.mubr.bf16.gmra.mxu0 %v3486
  %v3564 = vpop.f32.mrf.mxu0
  %v3565 = vadd.f32 0.0, %v3564
  %v3566 = vpop.f32.mrf.mxu0
  %v3567 = vadd.f32 0.0, %v3566
  %v3568 = vpop.f32.mrf.mxu0
  %v3569 = vadd.f32 0.0, %v3568
  %v3570 = vpop.f32.mrf.mxu0
  %v3571 = vadd.f32 0.0, %v3570
  %3572 = vdwg.mxu0
  %s3573 = scalar_lea.vmem [#allocation2], 160
  %v3574 = vld [vmem:[%s3573] sm:$0xff]
  %v3575 = vld [vmem:[%s3573 + $0x8] sm:$0xff]
  %v3576 = vld [vmem:[%s3573 + $0x10] sm:$0xff]
  %v3577 = vld [vmem:[%s3573 + $0x18] sm:$0xff]
  %v3578 = vunpack.c.l.bf16 %v3574
  %v3579 = vunpack.c.h.bf16 %v3574
  %v3580 = vunpack.c.l.bf16 %v3575
  %v3581 = vunpack.c.h.bf16 %v3575
  %v3582 = vunpack.c.l.bf16 %v3576
  %v3583 = vunpack.c.h.bf16 %v3576
  %v3584 = vunpack.c.l.bf16 %v3577
  %v3585 = vunpack.c.h.bf16 %v3577
  %v3586 = vadd.f32 %v3578, %v3435
  %v3587 = vadd.f32 %v3579, %v3437
  %v3588 = vadd.f32 %v3580, %v3478
  %v3589 = vadd.f32 %v3581, %v3480
  %v3590 = vadd.f32 %v3582, %v3439
  %v3591 = vadd.f32 %v3583, %v3441
  %v3592 = vadd.f32 %v3584, %v3482
  %v3593 = vadd.f32 %v3585, %v3484
  %s3594 = scalar_lea.vmem [#allocation3], 64
  %v3595 = vld [vmem:[%s3594] sm:$0xff]
  %v3596 = vld [vmem:[%s3594 + $0x8] sm:$0xff]
  %v3597 = vld [vmem:[%s3594 + $0x10] sm:$0xff]
  %v3598 = vld [vmem:[%s3594 + $0x18] sm:$0xff]
  %v3599 = vunpack.c.l.bf16 %v3595
  %v3600 = vunpack.c.h.bf16 %v3595
  %v3601 = vunpack.c.l.bf16 %v3596
  %v3602 = vunpack.c.h.bf16 %v3596
  %v3603 = vunpack.c.l.bf16 %v3597
  %v3604 = vunpack.c.h.bf16 %v3597
  %v3605 = vunpack.c.l.bf16 %v3598
  %v3606 = vunpack.c.h.bf16 %v3598
  %v3607 = vadd.f32 %v3599, %v3522
  %v3608 = vadd.f32 %v3600, %v3524
  %v3609 = vadd.f32 %v3601, %v3565
  %v3610 = vadd.f32 %v3602, %v3567
  %v3611 = vadd.f32 %v3603, %v3526
  %v3612 = vadd.f32 %v3604, %v3528
  %v3613 = vadd.f32 %v3605, %v3569
  %v3614 = vadd.f32 %v3606, %v3571
  %v3615 = vxor.u32 %v3586, 2147483648
  %v3616 = vxor.u32 %v3590, 2147483648
  %v3617 = vmul.f32 %v3615, 1.442695
  %v3618 = vpow.pop %v3617
  %v3619 = vmul.f32 %v3616, 1.442695
  %v3620 = vpow.pop %v3619
  %v3621 = vadd.f32 %v3618, 1.0
  %v3622 = vadd.f32 %v3620, 1.0
  %v3623 = vrcp.pop %v3621
  %v3624 = vmul.f32 1.0, %v3623
  %v3625 = vrcp.pop %v3622
  %v3626 = vmul.f32 1.0, %v3625
  %v3627 = vxor.u32 %v3587, 2147483648
  %v3628 = vxor.u32 %v3591, 2147483648
  %v3629 = vmul.f32 %v3627, 1.442695
  %v3630 = vpow.pop %v3629
  %v3631 = vmul.f32 %v3628, 1.442695
  %v3632 = vpow.pop %v3631
  %v3633 = vadd.f32 %v3630, 1.0
  %v3634 = vadd.f32 %v3632, 1.0
  %v3635 = vrcp.pop %v3633
  %v3636 = vmul.f32 1.0, %v3635
  %v3637 = vrcp.pop %v3634
  %v3638 = vmul.f32 1.0, %v3637
  %v3639 = vtanh.pop %v3588
  %v3640 = vtanh.pop %v3592
  %v3641 = vxor.u32 %v3589, 2147483648
  %v3642 = vxor.u32 %v3593, 2147483648
  %v3643 = vmul.f32 %v3641, 1.442695
  %v3644 = vpow.pop %v3643
  %v3645 = vmul.f32 %v3642, 1.442695
  %v3646 = vpow.pop %v3645
  %v3647 = vadd.f32 %v3644, 1.0
  %v3648 = vadd.f32 %v3646, 1.0
  %v3649 = vrcp.pop %v3647
  %v3650 = vmul.f32 1.0, %v3649
  %v3651 = vrcp.pop %v3648
  %v3652 = vmul.f32 1.0, %v3651
  %v3653 = vmul.f32 %v3636, %v3393
  %v3654 = vmul.f32 %v3638, %v3394
  %v3655 = vmul.f32 %v3624, %v3639
  %v3656 = vmul.f32 %v3626, %v3640
  %v3657 = vadd.f32 %v3653, %v3655
  %v3658 = vadd.f32 %v3654, %v3656
  %v3659 = vtanh.pop %v3657
  %v3660 = vtanh.pop %v3658
  %v3661 = vmul.f32 %v3650, %v3659
  %v3662 = vmul.f32 %v3652, %v3660
  %v3663 = vxor.u32 %v3607, 2147483648
  %v3664 = vxor.u32 %v3611, 2147483648
  %v3665 = vmul.f32 %v3663, 1.442695
  %v3666 = vpow.pop %v3665
  %v3667 = vmul.f32 %v3664, 1.442695
  %v3668 = vpow.pop %v3667
  %v3669 = vadd.f32 %v3666, 1.0
  %v3670 = vadd.f32 %v3668, 1.0
  %v3671 = vrcp.pop %v3669
  %v3672 = vmul.f32 1.0, %v3671
  %v3673 = vrcp.pop %v3670
  %v3674 = vmul.f32 1.0, %v3673
  %v3675 = vxor.u32 %v3608, 2147483648
  %v3676 = vxor.u32 %v3612, 2147483648
  %v3677 = vmul.f32 %v3675, 1.442695
  %v3678 = vpow.pop %v3677
  %v3679 = vmul.f32 %v3676, 1.442695
  %v3680 = vpow.pop %v3679
  %v3681 = vadd.f32 %v3678, 1.0
  %v3682 = vadd.f32 %v3680, 1.0
  %v3683 = vrcp.pop %v3681
  %v3684 = vmul.f32 1.0, %v3683
  %v3685 = vrcp.pop %v3682
  %v3686 = vmul.f32 1.0, %v3685
  %v3687 = vtanh.pop %v3609
  %v3688 = vtanh.pop %v3613
  %v3689 = vxor.u32 %v3610, 2147483648
  %v3690 = vxor.u32 %v3614, 2147483648
  %v3691 = vmul.f32 %v3689, 1.442695
  %v3692 = vpow.pop %v3691
  %v3693 = vmul.f32 %v3690, 1.442695
  %v3694 = vpow.pop %v3693
  %v3695 = vadd.f32 %v3692, 1.0
  %v3696 = vadd.f32 %v3694, 1.0
  %v3697 = vrcp.pop %v3695
  %v3698 = vmul.f32 1.0, %v3697
  %v3699 = vrcp.pop %v3696
  %v3700 = vmul.f32 1.0, %v3699
  %v3701 = vmul.f32 %v3684, %v3397
  %v3702 = vmul.f32 %v3686, %v3398
  %v3703 = vmul.f32 %v3672, %v3687
  %v3704 = vmul.f32 %v3674, %v3688
  %v3705 = vadd.f32 %v3701, %v3703
  %v3706 = vadd.f32 %v3702, %v3704
  %v3707 = vtanh.pop %v3705
  %v3708 = vtanh.pop %v3706
  %v3709 = vmul.f32 %v3698, %v3707
  %v3710 = vmul.f32 %v3700, %v3708
  %v3711 = vsel %vm2614, %v3661, 0.0
  %v3712 = vsel %vm2615, %v3662, 0.0
  %v3713 = vpack.c.bf16 %v3712, %v3711
  %v3715 = vunpack.c.l.b16 %v3713
  %v3716 = vunpack.c.h.b16 %v3713
  %v3717 = vpack.c.b16 %v3715, %v3715
  %v3718 = vpack.c.b16 %v3716, %v3716
  %3721 = vst [vmem:[%s2626] sm:$0xf] %v3717
  %3722 = vst [vmem:[%s2626 + $0x8] sm:$0xf] %v3718
  %v3723 = vsel %vm2591, %v3709, 0.0
  %v3724 = vsel %vm2592, %v3710, 0.0
  %v3725 = vpack.c.bf16 %v3724, %v3723
  %v3727 = vunpack.c.l.b16 %v3725
  %v3728 = vunpack.c.h.b16 %v3725
  %v3729 = vpack.c.b16 %v3727, %v3727
  %v3730 = vpack.c.b16 %v3728, %v3728
  %3733 = vst [vmem:[%s2603 + $0x4] sm:$0xf] %v3729
  %3734 = vst [vmem:[%s2603 + $0xc] sm:$0xf] %v3730
  %v3735 = vsel %vm2614, %v3661, %v3391
  %v3736 = vsel %vm2615, %v3662, %v3392
  %3737 = vst [vmem:[#allocation4] sm:$0xff] %v3735
  %3738 = vst [vmem:[#allocation4 + $0x8] sm:$0xff] %v3736
  %v3739 = vsel %vm2614, %v3657, %v3393
  %v3740 = vsel %vm2615, %v3658, %v3394
  %3741 = vst [vmem:[#allocation5] sm:$0xff] %v3739
  %3742 = vst [vmem:[#allocation5 + $0x8] sm:$0xff] %v3740
  %v3743 = vsel %vm2591, %v3709, %v3395
  %v3744 = vsel %vm2592, %v3710, %v3396
  %3745 = vst [vmem:[#allocation6] sm:$0xff] %v3743
  %3746 = vst [vmem:[#allocation6 + $0x8] sm:$0xff] %v3744
  %v3747 = vsel %vm2591, %v3705, %v3397
  %v3748 = vsel %vm2592, %v3706, %v3398
  %3749 = vst [vmem:[#allocation7] sm:$0xff] %v3747
  %3750 = vst [vmem:[#allocation7 + $0x8] sm:$0xff] %v3748
  %v3751 = vld [vmem:[#allocation4] sm:$0xff]
  %v3752 = vld [vmem:[#allocation4 + $0x8] sm:$0xff]
  %v3753 = vld [vmem:[#allocation5] sm:$0xff]
  %v3754 = vld [vmem:[#allocation5 + $0x8] sm:$0xff]
  %v3755 = vld [vmem:[#allocation6] sm:$0xff]
  %v3756 = vld [vmem:[#allocation6 + $0x8] sm:$0xff]
  %v3757 = vld [vmem:[#allocation7] sm:$0xff]
  %v3758 = vld [vmem:[#allocation7 + $0x8] sm:$0xff]
  %v3759 = vpack.c.bf16 %v3752, %v3751
  %3760 = vmatprep.subr.bf16.mxu0 %v1303
  %3761 = vmatpush1.bf16.msra.mxu0 %v1302
  %3762 = vmatprep.subr.bf16.mxu0 %v1299
  %3763 = vmatpush1.bf16.msra.mxu0 %v1298
  %3764 = vmatprep.subr.bf16.mxu0 %v1295
  %3765 = vmatpush1.bf16.msra.mxu0 %v1294
  %3766 = vmatprep.subr.bf16.mxu0 %v1291
  %3767 = vmatpush1.bf16.msra.mxu0 %v1290
  %3768 = vmatprep.subr.bf16.mxu0 %v1287
  %3769 = vmatpush1.bf16.msra.mxu0 %v1286
  %3770 = vmatprep.subr.bf16.mxu0 %v1283
  %3771 = vmatpush1.bf16.msra.mxu0 %v1282
  %3772 = vmatprep.subr.bf16.mxu0 %v1279
  %3773 = vmatpush1.bf16.msra.mxu0 %v1278
  %3774 = vmatprep.subr.bf16.mxu0 %v1275
  %3775 = vmatpush1.bf16.msra.mxu0 %v1274
  %3776 = vmatprep.subr.bf16.mxu0 0
  %3777 = vmatpush2.bf16.msra.mxu0 0
  %3778 = vmatprep.subr.bf16.mxu0 0
  %3779 = vmatpush2.bf16.msra.mxu0 0
  %3780 = vmatprep.subr.bf16.mxu0 0
  %3781 = vmatpush2.bf16.msra.mxu0 0
  %3782 = vmatprep.subr.bf16.mxu0 0
  %3783 = vmatpush2.bf16.msra.mxu0 0
  %3784 = vmatprep.subr.bf16.mxu0 0
  %3785 = vmatpush2.bf16.msra.mxu0 0
  %3786 = vmatprep.subr.bf16.mxu0 0
  %3787 = vmatpush2.bf16.msra.mxu0 0
  %3788 = vmatprep.subr.bf16.mxu0 0
  %3789 = vmatpush2.bf16.msra.mxu0 0
  %3790 = vmatprep.subr.bf16.mxu0 0
  %3791 = vmatpush2.bf16.msra.mxu0 0
  %3792 = vmatprep.mubr.bf16.mxu0 0
  %3793 = vmatmul.mubr.bf16.gmra.mxu0 %v3759
  %v3794 = vpop.f32.mrf.mxu0
  %v3795 = vadd.f32 0.0, %v3794
  %v3796 = vpop.f32.mrf.mxu0
  %v3797 = vadd.f32 0.0, %v3796
  %v3798 = vpop.f32.mrf.mxu0
  %v3799 = vadd.f32 0.0, %v3798
  %v3800 = vpop.f32.mrf.mxu0
  %v3801 = vadd.f32 0.0, %v3800
  %3802 = vdwg.mxu0
  %3803 = vmatprep.subr.bf16.mxu0 %v1305
  %3804 = vmatpush1.bf16.msra.mxu0 %v1304
  %3805 = vmatprep.subr.bf16.mxu0 %v1301
  %3806 = vmatpush1.bf16.msra.mxu0 %v1300
  %3807 = vmatprep.subr.bf16.mxu0 %v1297
  %3808 = vmatpush1.bf16.msra.mxu0 %v1296
  %3809 = vmatprep.subr.bf16.mxu0 %v1293
  %3810 = vmatpush1.bf16.msra.mxu0 %v1292
  %3811 = vmatprep.subr.bf16.mxu0 %v1289
  %3812 = vmatpush1.bf16.msra.mxu0 %v1288
  %3813 = vmatprep.subr.bf16.mxu0 %v1285
  %3814 = vmatpush1.bf16.msra.mxu0 %v1284
  %3815 = vmatprep.subr.bf16.mxu0 %v1281
  %3816 = vmatpush1.bf16.msra.mxu0 %v1280
  %3817 = vmatprep.subr.bf16.mxu0 %v1277
  %3818 = vmatpush1.bf16.msra.mxu0 %v1276
  %3819 = vmatprep.subr.bf16.mxu0 0
  %3820 = vmatpush2.bf16.msra.mxu0 0
  %3821 = vmatprep.subr.bf16.mxu0 0
  %3822 = vmatpush2.bf16.msra.mxu0 0
  %3823 = vmatprep.subr.bf16.mxu0 0
  %3824 = vmatpush2.bf16.msra.mxu0 0
  %3825 = vmatprep.subr.bf16.mxu0 0
  %3826 = vmatpush2.bf16.msra.mxu0 0
  %3827 = vmatprep.subr.bf16.mxu0 0
  %3828 = vmatpush2.bf16.msra.mxu0 0
  %3829 = vmatprep.subr.bf16.mxu0 0
  %3830 = vmatpush2.bf16.msra.mxu0 0
  %3831 = vmatprep.subr.bf16.mxu0 0
  %3832 = vmatpush2.bf16.msra.mxu0 0
  %3833 = vmatprep.subr.bf16.mxu0 0
  %3834 = vmatpush2.bf16.msra.mxu0 0
  %3835 = vmatprep.mubr.bf16.mxu0 0
  %3836 = vmatmul.mubr.bf16.gmra.mxu0 %v3759
  %v3837 = vpop.f32.mrf.mxu0
  %v3838 = vadd.f32 0.0, %v3837
  %v3839 = vpop.f32.mrf.mxu0
  %v3840 = vadd.f32 0.0, %v3839
  %v3841 = vpop.f32.mrf.mxu0
  %v3842 = vadd.f32 0.0, %v3841
  %v3843 = vpop.f32.mrf.mxu0
  %v3844 = vadd.f32 0.0, %v3843
  %3845 = vdwg.mxu0
  %v3846 = vpack.c.bf16 %v3756, %v3755
  %3847 = vmatprep.subr.bf16.mxu0 %v1550
  %3848 = vmatpush1.bf16.msra.mxu0 %v1549
  %3849 = vmatprep.subr.bf16.mxu0 %v1546
  %3850 = vmatpush1.bf16.msra.mxu0 %v1545
  %3851 = vmatprep.subr.bf16.mxu0 %v1542
  %3852 = vmatpush1.bf16.msra.mxu0 %v1541
  %3853 = vmatprep.subr.bf16.mxu0 %v1538
  %3854 = vmatpush1.bf16.msra.mxu0 %v1537
  %3855 = vmatprep.subr.bf16.mxu0 %v1534
  %3856 = vmatpush1.bf16.msra.mxu0 %v1533
  %3857 = vmatprep.subr.bf16.mxu0 %v1530
  %3858 = vmatpush1.bf16.msra.mxu0 %v1529
  %3859 = vmatprep.subr.bf16.mxu0 %v1526
  %3860 = vmatpush1.bf16.msra.mxu0 %v1525
  %3861 = vmatprep.subr.bf16.mxu0 %v1522
  %3862 = vmatpush1.bf16.msra.mxu0 %v1521
  %3863 = vmatprep.subr.bf16.mxu0 0
  %3864 = vmatpush2.bf16.msra.mxu0 0
  %3865 = vmatprep.subr.bf16.mxu0 0
  %3866 = vmatpush2.bf16.msra.mxu0 0
  %3867 = vmatprep.subr.bf16.mxu0 0
  %3868 = vmatpush2.bf16.msra.mxu0 0
  %3869 = vmatprep.subr.bf16.mxu0 0
  %3870 = vmatpush2.bf16.msra.mxu0 0
  %3871 = vmatprep.subr.bf16.mxu0 0
  %3872 = vmatpush2.bf16.msra.mxu0 0
  %3873 = vmatprep.subr.bf16.mxu0 0
  %3874 = vmatpush2.bf16.msra.mxu0 0
  %3875 = vmatprep.subr.bf16.mxu0 0
  %3876 = vmatpush2.bf16.msra.mxu0 0
  %3877 = vmatprep.subr.bf16.mxu0 0
  %3878 = vmatpush2.bf16.msra.mxu0 0
  %3879 = vmatprep.mubr.bf16.mxu0 0
  %3880 = vmatmul.mubr.bf16.gmra.mxu0 %v3846
  %v3881 = vpop.f32.mrf.mxu0
  %v3882 = vadd.f32 0.0, %v3881
  %v3883 = vpop.f32.mrf.mxu0
  %v3884 = vadd.f32 0.0, %v3883
  %v3885 = vpop.f32.mrf.mxu0
  %v3886 = vadd.f32 0.0, %v3885
  %v3887 = vpop.f32.mrf.mxu0
  %v3888 = vadd.f32 0.0, %v3887
  %3889 = vdwg.mxu0
  %3890 = vmatprep.subr.bf16.mxu0 %v1552
  %3891 = vmatpush1.bf16.msra.mxu0 %v1551
  %3892 = vmatprep.subr.bf16.mxu0 %v1548
  %3893 = vmatpush1.bf16.msra.mxu0 %v1547
  %3894 = vmatprep.subr.bf16.mxu0 %v1544
  %3895 = vmatpush1.bf16.msra.mxu0 %v1543
  %3896 = vmatprep.subr.bf16.mxu0 %v1540
  %3897 = vmatpush1.bf16.msra.mxu0 %v1539
  %3898 = vmatprep.subr.bf16.mxu0 %v1536
  %3899 = vmatpush1.bf16.msra.mxu0 %v1535
  %3900 = vmatprep.subr.bf16.mxu0 %v1532
  %3901 = vmatpush1.bf16.msra.mxu0 %v1531
  %3902 = vmatprep.subr.bf16.mxu0 %v1528
  %3903 = vmatpush1.bf16.msra.mxu0 %v1527
  %3904 = vmatprep.subr.bf16.mxu0 %v1524
  %3905 = vmatpush1.bf16.msra.mxu0 %v1523
  %3906 = vmatprep.subr.bf16.mxu0 0
  %3907 = vmatpush2.bf16.msra.mxu0 0
  %3908 = vmatprep.subr.bf16.mxu0 0
  %3909 = vmatpush2.bf16.msra.mxu0 0
  %3910 = vmatprep.subr.bf16.mxu0 0
  %3911 = vmatpush2.bf16.msra.mxu0 0
  %3912 = vmatprep.subr.bf16.mxu0 0
  %3913 = vmatpush2.bf16.msra.mxu0 0
  %3914 = vmatprep.subr.bf16.mxu0 0
  %3915 = vmatpush2.bf16.msra.mxu0 0
  %3916 = vmatprep.subr.bf16.mxu0 0
  %3917 = vmatpush2.bf16.msra.mxu0 0
  %3918 = vmatprep.subr.bf16.mxu0 0
  %3919 = vmatpush2.bf16.msra.mxu0 0
  %3920 = vmatprep.subr.bf16.mxu0 0
  %3921 = vmatpush2.bf16.msra.mxu0 0
  %3922 = vmatprep.mubr.bf16.mxu0 0
  %3923 = vmatmul.mubr.bf16.gmra.mxu0 %v3846
  %v3924 = vpop.f32.mrf.mxu0
  %v3925 = vadd.f32 0.0, %v3924
  %v3926 = vpop.f32.mrf.mxu0
  %v3927 = vadd.f32 0.0, %v3926
  %v3928 = vpop.f32.mrf.mxu0
  %v3929 = vadd.f32 0.0, %v3928
  %v3930 = vpop.f32.mrf.mxu0
  %v3931 = vadd.f32 0.0, %v3930
  %3932 = vdwg.mxu0
  %s3933 = scalar_lea.vmem [#allocation2], 192
  %v3934 = vld [vmem:[%s3933] sm:$0xff]
  %v3935 = vld [vmem:[%s3933 + $0x8] sm:$0xff]
  %v3936 = vld [vmem:[%s3933 + $0x10] sm:$0xff]
  %v3937 = vld [vmem:[%s3933 + $0x18] sm:$0xff]
  %v3938 = vunpack.c.l.bf16 %v3934
  %v3939 = vunpack.c.h.bf16 %v3934
  %v3940 = vunpack.c.l.bf16 %v3935
  %v3941 = vunpack.c.h.bf16 %v3935
  %v3942 = vunpack.c.l.bf16 %v3936
  %v3943 = vunpack.c.h.bf16 %v3936
  %v3944 = vunpack.c.l.bf16 %v3937
  %v3945 = vunpack.c.h.bf16 %v3937
  %v3946 = vadd.f32 %v3938, %v3795
  %v3947 = vadd.f32 %v3939, %v3797
  %v3948 = vadd.f32 %v3940, %v3838
  %v3949 = vadd.f32 %v3941, %v3840
  %v3950 = vadd.f32 %v3942, %v3799
  %v3951 = vadd.f32 %v3943, %v3801
  %v3952 = vadd.f32 %v3944, %v3842
  %v3953 = vadd.f32 %v3945, %v3844
  %s3954 = scalar_lea.vmem [#allocation3], 32
  %v3955 = vld [vmem:[%s3954] sm:$0xff]
  %v3956 = vld [vmem:[%s3954 + $0x8] sm:$0xff]
  %v3957 = vld [vmem:[%s3954 + $0x10] sm:$0xff]
  %v3958 = vld [vmem:[%s3954 + $0x18] sm:$0xff]
  %v3959 = vunpack.c.l.bf16 %v3955
  %v3960 = vunpack.c.h.bf16 %v3955
  %v3961 = vunpack.c.l.bf16 %v3956
  %v3962 = vunpack.c.h.bf16 %v3956
  %v3963 = vunpack.c.l.bf16 %v3957
  %v3964 = vunpack.c.h.bf16 %v3957
  %v3965 = vunpack.c.l.bf16 %v3958
  %v3966 = vunpack.c.h.bf16 %v3958
  %v3967 = vadd.f32 %v3959, %v3882
  %v3968 = vadd.f32 %v3960, %v3884
  %v3969 = vadd.f32 %v3961, %v3925
  %v3970 = vadd.f32 %v3962, %v3927
  %v3971 = vadd.f32 %v3963, %v3886
  %v3972 = vadd.f32 %v3964, %v3888
  %v3973 = vadd.f32 %v3965, %v3929
  %v3974 = vadd.f32 %v3966, %v3931
  %v3975 = vxor.u32 %v3946, 2147483648
  %v3976 = vxor.u32 %v3950, 2147483648
  %v3977 = vmul.f32 %v3975, 1.442695
  %v3978 = vpow.pop %v3977
  %v3979 = vmul.f32 %v3976, 1.442695
  %v3980 = vpow.pop %v3979
  %v3981 = vadd.f32 %v3978, 1.0
  %v3982 = vadd.f32 %v3980, 1.0
  %v3983 = vrcp.pop %v3981
  %v3984 = vmul.f32 1.0, %v3983
  %v3985 = vrcp.pop %v3982
  %v3986 = vmul.f32 1.0, %v3985
  %v3987 = vxor.u32 %v3947, 2147483648
  %v3988 = vxor.u32 %v3951, 2147483648
  %v3989 = vmul.f32 %v3987, 1.442695
  %v3990 = vpow.pop %v3989
  %v3991 = vmul.f32 %v3988, 1.442695
  %v3992 = vpow.pop %v3991
  %v3993 = vadd.f32 %v3990, 1.0
  %v3994 = vadd.f32 %v3992, 1.0
  %v3995 = vrcp.pop %v3993
  %v3996 = vmul.f32 1.0, %v3995
  %v3997 = vrcp.pop %v3994
  %v3998 = vmul.f32 1.0, %v3997
  %v3999 = vtanh.pop %v3948
  %v4000 = vtanh.pop %v3952
  %v4001 = vxor.u32 %v3949, 2147483648
  %v4002 = vxor.u32 %v3953, 2147483648
  %v4003 = vmul.f32 %v4001, 1.442695
  %v4004 = vpow.pop %v4003
  %v4005 = vmul.f32 %v4002, 1.442695
  %v4006 = vpow.pop %v4005
  %v4007 = vadd.f32 %v4004, 1.0
  %v4008 = vadd.f32 %v4006, 1.0
  %v4009 = vrcp.pop %v4007
  %v4010 = vmul.f32 1.0, %v4009
  %v4011 = vrcp.pop %v4008
  %v4012 = vmul.f32 1.0, %v4011
  %v4013 = vmul.f32 %v3996, %v3753
  %v4014 = vmul.f32 %v3998, %v3754
  %v4015 = vmul.f32 %v3984, %v3999
  %v4016 = vmul.f32 %v3986, %v4000
  %v4017 = vadd.f32 %v4013, %v4015
  %v4018 = vadd.f32 %v4014, %v4016
  %v4019 = vtanh.pop %v4017
  %v4020 = vtanh.pop %v4018
  %v4021 = vmul.f32 %v4010, %v4019
  %v4022 = vmul.f32 %v4012, %v4020
  %v4023 = vxor.u32 %v3967, 2147483648
  %v4024 = vxor.u32 %v3971, 2147483648
  %v4025 = vmul.f32 %v4023, 1.442695
  %v4026 = vpow.pop %v4025
  %v4027 = vmul.f32 %v4024, 1.442695
  %v4028 = vpow.pop %v4027
  %v4029 = vadd.f32 %v4026, 1.0
  %v4030 = vadd.f32 %v4028, 1.0
  %v4031 = vrcp.pop %v4029
  %v4032 = vmul.f32 1.0, %v4031
  %v4033 = vrcp.pop %v4030
  %v4034 = vmul.f32 1.0, %v4033
  %v4035 = vxor.u32 %v3968, 2147483648
  %v4036 = vxor.u32 %v3972, 2147483648
  %v4037 = vmul.f32 %v4035, 1.442695
  %v4038 = vpow.pop %v4037
  %v4039 = vmul.f32 %v4036, 1.442695
  %v4040 = vpow.pop %v4039
  %v4041 = vadd.f32 %v4038, 1.0
  %v4042 = vadd.f32 %v4040, 1.0
  %v4043 = vrcp.pop %v4041
  %v4044 = vmul.f32 1.0, %v4043
  %v4045 = vrcp.pop %v4042
  %v4046 = vmul.f32 1.0, %v4045
  %v4047 = vtanh.pop %v3969
  %v4048 = vtanh.pop %v3973
  %v4049 = vxor.u32 %v3970, 2147483648
  %v4050 = vxor.u32 %v3974, 2147483648
  %v4051 = vmul.f32 %v4049, 1.442695
  %v4052 = vpow.pop %v4051
  %v4053 = vmul.f32 %v4050, 1.442695
  %v4054 = vpow.pop %v4053
  %v4055 = vadd.f32 %v4052, 1.0
  %v4056 = vadd.f32 %v4054, 1.0
  %v4057 = vrcp.pop %v4055
  %v4058 = vmul.f32 1.0, %v4057
  %v4059 = vrcp.pop %v4056
  %v4060 = vmul.f32 1.0, %v4059
  %v4061 = vmul.f32 %v4044, %v3757
  %v4062 = vmul.f32 %v4046, %v3758
  %v4063 = vmul.f32 %v4032, %v4047
  %v4064 = vmul.f32 %v4034, %v4048
  %v4065 = vadd.f32 %v4061, %v4063
  %v4066 = vadd.f32 %v4062, %v4064
  %v4067 = vtanh.pop %v4065
  %v4068 = vtanh.pop %v4066
  %v4069 = vmul.f32 %v4058, %v4067
  %v4070 = vmul.f32 %v4060, %v4068
  %v4071 = vsel %vm2228, %v4021, 0.0
  %v4072 = vsel %vm2229, %v4022, 0.0
  %v4073 = vpack.c.bf16 %v4072, %v4071
  %v4075 = vunpack.c.l.b16 %v4073
  %v4076 = vunpack.c.h.b16 %v4073
  %v4077 = vpack.c.b16 %v4075, %v4075
  %v4078 = vpack.c.b16 %v4076, %v4076
  %4081 = vst [vmem:[%s2240] sm:$0xf] %v4077
  %4082 = vst [vmem:[%s2240 + $0x8] sm:$0xf] %v4078
  %v4083 = vsel %vm2205, %v4069, 0.0
  %v4084 = vsel %vm2206, %v4070, 0.0
  %v4085 = vpack.c.bf16 %v4084, %v4083
  %v4087 = vunpack.c.l.b16 %v4085
  %v4088 = vunpack.c.h.b16 %v4085
  %v4089 = vpack.c.b16 %v4087, %v4087
  %v4090 = vpack.c.b16 %v4088, %v4088
  %4093 = vst [vmem:[%s2217 + $0x4] sm:$0xf] %v4089
  %4094 = vst [vmem:[%s2217 + $0xc] sm:$0xf] %v4090
  %v4095 = vsel %vm2228, %v4021, %v3751
  %v4096 = vsel %vm2229, %v4022, %v3752
  %4097 = vst [vmem:[#allocation4] sm:$0xff] %v4095
  %4098 = vst [vmem:[#allocation4 + $0x8] sm:$0xff] %v4096
  %v4099 = vsel %vm2228, %v4017, %v3753
  %v4100 = vsel %vm2229, %v4018, %v3754
  %4101 = vst [vmem:[#allocation5] sm:$0xff] %v4099
  %4102 = vst [vmem:[#allocation5 + $0x8] sm:$0xff] %v4100
  %v4103 = vsel %vm2205, %v4069, %v3755
  %v4104 = vsel %vm2206, %v4070, %v3756
  %4105 = vst [vmem:[#allocation6] sm:$0xff] %v4103
  %4106 = vst [vmem:[#allocation6 + $0x8] sm:$0xff] %v4104
  %v4107 = vsel %vm2205, %v4065, %v3757
  %v4108 = vsel %vm2206, %v4066, %v3758
  %4109 = vst [vmem:[#allocation7] sm:$0xff] %v4107
  %4110 = vst [vmem:[#allocation7 + $0x8] sm:$0xff] %v4108
  %v4111 = vld [vmem:[#allocation4] sm:$0xff]
  %v4112 = vld [vmem:[#allocation4 + $0x8] sm:$0xff]
  %v4113 = vld [vmem:[#allocation5] sm:$0xff]
  %v4114 = vld [vmem:[#allocation5 + $0x8] sm:$0xff]
  %v4115 = vld [vmem:[#allocation6] sm:$0xff]
  %v4116 = vld [vmem:[#allocation6 + $0x8] sm:$0xff]
  %v4117 = vld [vmem:[#allocation7] sm:$0xff]
  %v4118 = vld [vmem:[#allocation7 + $0x8] sm:$0xff]
  %v4119 = vpack.c.bf16 %v4112, %v4111
  %4120 = vmatprep.subr.bf16.mxu0 %v1303
  %4121 = vmatpush1.bf16.msra.mxu0 %v1302
  %4122 = vmatprep.subr.bf16.mxu0 %v1299
  %4123 = vmatpush1.bf16.msra.mxu0 %v1298
  %4124 = vmatprep.subr.bf16.mxu0 %v1295
  %4125 = vmatpush1.bf16.msra.mxu0 %v1294
  %4126 = vmatprep.subr.bf16.mxu0 %v1291
  %4127 = vmatpush1.bf16.msra.mxu0 %v1290
  %4128 = vmatprep.subr.bf16.mxu0 %v1287
  %4129 = vmatpush1.bf16.msra.mxu0 %v1286
  %4130 = vmatprep.subr.bf16.mxu0 %v1283
  %4131 = vmatpush1.bf16.msra.mxu0 %v1282
  %4132 = vmatprep.subr.bf16.mxu0 %v1279
  %4133 = vmatpush1.bf16.msra.mxu0 %v1278
  %4134 = vmatprep.subr.bf16.mxu0 %v1275
  %4135 = vmatpush1.bf16.msra.mxu0 %v1274
  %4136 = vmatprep.subr.bf16.mxu0 0
  %4137 = vmatpush2.bf16.msra.mxu0 0
  %4138 = vmatprep.subr.bf16.mxu0 0
  %4139 = vmatpush2.bf16.msra.mxu0 0
  %4140 = vmatprep.subr.bf16.mxu0 0
  %4141 = vmatpush2.bf16.msra.mxu0 0
  %4142 = vmatprep.subr.bf16.mxu0 0
  %4143 = vmatpush2.bf16.msra.mxu0 0
  %4144 = vmatprep.subr.bf16.mxu0 0
  %4145 = vmatpush2.bf16.msra.mxu0 0
  %4146 = vmatprep.subr.bf16.mxu0 0
  %4147 = vmatpush2.bf16.msra.mxu0 0
  %4148 = vmatprep.subr.bf16.mxu0 0
  %4149 = vmatpush2.bf16.msra.mxu0 0
  %4150 = vmatprep.subr.bf16.mxu0 0
  %4151 = vmatpush2.bf16.msra.mxu0 0
  %4152 = vmatprep.mubr.bf16.mxu0 0
  %4153 = vmatmul.mubr.bf16.gmra.mxu0 %v4119
  %v4154 = vpop.f32.mrf.mxu0
  %v4155 = vadd.f32 0.0, %v4154
  %v4156 = vpop.f32.mrf.mxu0
  %v4157 = vadd.f32 0.0, %v4156
  %v4158 = vpop.f32.mrf.mxu0
  %v4159 = vadd.f32 0.0, %v4158
  %v4160 = vpop.f32.mrf.mxu0
  %v4161 = vadd.f32 0.0, %v4160
  %4162 = vdwg.mxu0
  %4163 = vmatprep.subr.bf16.mxu0 %v1305
  %4164 = vmatpush1.bf16.msra.mxu0 %v1304
  %4165 = vmatprep.subr.bf16.mxu0 %v1301
  %4166 = vmatpush1.bf16.msra.mxu0 %v1300
  %4167 = vmatprep.subr.bf16.mxu0 %v1297
  %4168 = vmatpush1.bf16.msra.mxu0 %v1296
  %4169 = vmatprep.subr.bf16.mxu0 %v1293
  %4170 = vmatpush1.bf16.msra.mxu0 %v1292
  %4171 = vmatprep.subr.bf16.mxu0 %v1289
  %4172 = vmatpush1.bf16.msra.mxu0 %v1288
  %4173 = vmatprep.subr.bf16.mxu0 %v1285
  %4174 = vmatpush1.bf16.msra.mxu0 %v1284
  %4175 = vmatprep.subr.bf16.mxu0 %v1281
  %4176 = vmatpush1.bf16.msra.mxu0 %v1280
  %4177 = vmatprep.subr.bf16.mxu0 %v1277
  %4178 = vmatpush1.bf16.msra.mxu0 %v1276
  %4179 = vmatprep.subr.bf16.mxu0 0
  %4180 = vmatpush2.bf16.msra.mxu0 0
  %4181 = vmatprep.subr.bf16.mxu0 0
  %4182 = vmatpush2.bf16.msra.mxu0 0
  %4183 = vmatprep.subr.bf16.mxu0 0
  %4184 = vmatpush2.bf16.msra.mxu0 0
  %4185 = vmatprep.subr.bf16.mxu0 0
  %4186 = vmatpush2.bf16.msra.mxu0 0
  %4187 = vmatprep.subr.bf16.mxu0 0
  %4188 = vmatpush2.bf16.msra.mxu0 0
  %4189 = vmatprep.subr.bf16.mxu0 0
  %4190 = vmatpush2.bf16.msra.mxu0 0
  %4191 = vmatprep.subr.bf16.mxu0 0
  %4192 = vmatpush2.bf16.msra.mxu0 0
  %4193 = vmatprep.subr.bf16.mxu0 0
  %4194 = vmatpush2.bf16.msra.mxu0 0
  %4195 = vmatprep.mubr.bf16.mxu0 0
  %4196 = vmatmul.mubr.bf16.gmra.mxu0 %v4119
  %v4197 = vpop.f32.mrf.mxu0
  %v4198 = vadd.f32 0.0, %v4197
  %v4199 = vpop.f32.mrf.mxu0
  %v4200 = vadd.f32 0.0, %v4199
  %v4201 = vpop.f32.mrf.mxu0
  %v4202 = vadd.f32 0.0, %v4201
  %v4203 = vpop.f32.mrf.mxu0
  %v4204 = vadd.f32 0.0, %v4203
  %4205 = vdwg.mxu0
  %v4206 = vpack.c.bf16 %v4116, %v4115
  %4207 = vmatprep.subr.bf16.mxu0 %v1550
  %4208 = vmatpush1.bf16.msra.mxu0 %v1549
  %4209 = vmatprep.subr.bf16.mxu0 %v1546
  %4210 = vmatpush1.bf16.msra.mxu0 %v1545
  %4211 = vmatprep.subr.bf16.mxu0 %v1542
  %4212 = vmatpush1.bf16.msra.mxu0 %v1541
  %4213 = vmatprep.subr.bf16.mxu0 %v1538
  %4214 = vmatpush1.bf16.msra.mxu0 %v1537
  %4215 = vmatprep.subr.bf16.mxu0 %v1534
  %4216 = vmatpush1.bf16.msra.mxu0 %v1533
  %4217 = vmatprep.subr.bf16.mxu0 %v1530
  %4218 = vmatpush1.bf16.msra.mxu0 %v1529
  %4219 = vmatprep.subr.bf16.mxu0 %v1526
  %4220 = vmatpush1.bf16.msra.mxu0 %v1525
  %4221 = vmatprep.subr.bf16.mxu0 %v1522
  %4222 = vmatpush1.bf16.msra.mxu0 %v1521
  %4223 = vmatprep.subr.bf16.mxu0 0
  %4224 = vmatpush2.bf16.msra.mxu0 0
  %4225 = vmatprep.subr.bf16.mxu0 0
  %4226 = vmatpush2.bf16.msra.mxu0 0
  %4227 = vmatprep.subr.bf16.mxu0 0
  %4228 = vmatpush2.bf16.msra.mxu0 0
  %4229 = vmatprep.subr.bf16.mxu0 0
  %4230 = vmatpush2.bf16.msra.mxu0 0
  %4231 = vmatprep.subr.bf16.mxu0 0
  %4232 = vmatpush2.bf16.msra.mxu0 0
  %4233 = vmatprep.subr.bf16.mxu0 0
  %4234 = vmatpush2.bf16.msra.mxu0 0
  %4235 = vmatprep.subr.bf16.mxu0 0
  %4236 = vmatpush2.bf16.msra.mxu0 0
  %4237 = vmatprep.subr.bf16.mxu0 0
  %4238 = vmatpush2.bf16.msra.mxu0 0
  %4239 = vmatprep.mubr.bf16.mxu0 0
  %4240 = vmatmul.mubr.bf16.gmra.mxu0 %v4206
  %v4241 = vpop.f32.mrf.mxu0
  %v4242 = vadd.f32 0.0, %v4241
  %v4243 = vpop.f32.mrf.mxu0
  %v4244 = vadd.f32 0.0, %v4243
  %v4245 = vpop.f32.mrf.mxu0
  %v4246 = vadd.f32 0.0, %v4245
  %v4247 = vpop.f32.mrf.mxu0
  %v4248 = vadd.f32 0.0, %v4247
  %4249 = vdwg.mxu0
  %4250 = vmatprep.subr.bf16.mxu0 %v1552
  %4251 = vmatpush1.bf16.msra.mxu0 %v1551
  %4252 = vmatprep.subr.bf16.mxu0 %v1548
  %4253 = vmatpush1.bf16.msra.mxu0 %v1547
  %4254 = vmatprep.subr.bf16.mxu0 %v1544
  %4255 = vmatpush1.bf16.msra.mxu0 %v1543
  %4256 = vmatprep.subr.bf16.mxu0 %v1540
  %4257 = vmatpush1.bf16.msra.mxu0 %v1539
  %4258 = vmatprep.subr.bf16.mxu0 %v1536
  %4259 = vmatpush1.bf16.msra.mxu0 %v1535
  %4260 = vmatprep.subr.bf16.mxu0 %v1532
  %4261 = vmatpush1.bf16.msra.mxu0 %v1531
  %4262 = vmatprep.subr.bf16.mxu0 %v1528
  %4263 = vmatpush1.bf16.msra.mxu0 %v1527
  %4264 = vmatprep.subr.bf16.mxu0 %v1524
  %4265 = vmatpush1.bf16.msra.mxu0 %v1523
  %4266 = vmatprep.subr.bf16.mxu0 0
  %4267 = vmatpush2.bf16.msra.mxu0 0
  %4268 = vmatprep.subr.bf16.mxu0 0
  %4269 = vmatpush2.bf16.msra.mxu0 0
  %4270 = vmatprep.subr.bf16.mxu0 0
  %4271 = vmatpush2.bf16.msra.mxu0 0
  %4272 = vmatprep.subr.bf16.mxu0 0
  %4273 = vmatpush2.bf16.msra.mxu0 0
  %4274 = vmatprep.subr.bf16.mxu0 0
  %4275 = vmatpush2.bf16.msra.mxu0 0
  %4276 = vmatprep.subr.bf16.mxu0 0
  %4277 = vmatpush2.bf16.msra.mxu0 0
  %4278 = vmatprep.subr.bf16.mxu0 0
  %4279 = vmatpush2.bf16.msra.mxu0 0
  %4280 = vmatprep.subr.bf16.mxu0 0
  %4281 = vmatpush2.bf16.msra.mxu0 0
  %4282 = vmatprep.mubr.bf16.mxu0 0
  %4283 = vmatmul.mubr.bf16.gmra.mxu0 %v4206
  %v4284 = vpop.f32.mrf.mxu0
  %v4285 = vadd.f32 0.0, %v4284
  %v4286 = vpop.f32.mrf.mxu0
  %v4287 = vadd.f32 0.0, %v4286
  %v4288 = vpop.f32.mrf.mxu0
  %v4289 = vadd.f32 0.0, %v4288
  %v4290 = vpop.f32.mrf.mxu0
  %v4291 = vadd.f32 0.0, %v4290
  %4292 = vdwg.mxu0
  %s4293 = scalar_lea.vmem [#allocation2], 224
  %v4294 = vld [vmem:[%s4293] sm:$0xff]
  %v4295 = vld [vmem:[%s4293 + $0x8] sm:$0xff]
  %v4296 = vld [vmem:[%s4293 + $0x10] sm:$0xff]
  %v4297 = vld [vmem:[%s4293 + $0x18] sm:$0xff]
  %v4298 = vunpack.c.l.bf16 %v4294
  %v4299 = vunpack.c.h.bf16 %v4294
  %v4300 = vunpack.c.l.bf16 %v4295
  %v4301 = vunpack.c.h.bf16 %v4295
  %v4302 = vunpack.c.l.bf16 %v4296
  %v4303 = vunpack.c.h.bf16 %v4296
  %v4304 = vunpack.c.l.bf16 %v4297
  %v4305 = vunpack.c.h.bf16 %v4297
  %v4306 = vadd.f32 %v4298, %v4155
  %v4307 = vadd.f32 %v4299, %v4157
  %v4308 = vadd.f32 %v4300, %v4198
  %v4309 = vadd.f32 %v4301, %v4200
  %v4310 = vadd.f32 %v4302, %v4159
  %v4311 = vadd.f32 %v4303, %v4161
  %v4312 = vadd.f32 %v4304, %v4202
  %v4313 = vadd.f32 %v4305, %v4204
  %v4314 = vld [vmem:[#allocation3] sm:$0xff]
  %v4315 = vld [vmem:[#allocation3 + $0x8] sm:$0xff]
  %v4316 = vld [vmem:[#allocation3 + $0x10] sm:$0xff]
  %v4317 = vld [vmem:[#allocation3 + $0x18] sm:$0xff]
  %v4318 = vunpack.c.l.bf16 %v4314
  %v4319 = vunpack.c.h.bf16 %v4314
  %v4320 = vunpack.c.l.bf16 %v4315
  %v4321 = vunpack.c.h.bf16 %v4315
  %v4322 = vunpack.c.l.bf16 %v4316
  %v4323 = vunpack.c.h.bf16 %v4316
  %v4324 = vunpack.c.l.bf16 %v4317
  %v4325 = vunpack.c.h.bf16 %v4317
  %v4326 = vadd.f32 %v4318, %v4242
  %v4327 = vadd.f32 %v4319, %v4244
  %v4328 = vadd.f32 %v4320, %v4285
  %v4329 = vadd.f32 %v4321, %v4287
  %v4330 = vadd.f32 %v4322, %v4246
  %v4331 = vadd.f32 %v4323, %v4248
  %v4332 = vadd.f32 %v4324, %v4289
  %v4333 = vadd.f32 %v4325, %v4291
  %v4334 = vxor.u32 %v4306, 2147483648
  %v4335 = vxor.u32 %v4310, 2147483648
  %v4336 = vmul.f32 %v4334, 1.442695
  %v4337 = vpow.pop %v4336
  %v4338 = vmul.f32 %v4335, 1.442695
  %v4339 = vpow.pop %v4338
  %v4340 = vadd.f32 %v4337, 1.0
  %v4341 = vadd.f32 %v4339, 1.0
  %v4342 = vrcp.pop %v4340
  %v4343 = vmul.f32 1.0, %v4342
  %v4344 = vrcp.pop %v4341
  %v4345 = vmul.f32 1.0, %v4344
  %v4346 = vxor.u32 %v4307, 2147483648
  %v4347 = vxor.u32 %v4311, 2147483648
  %v4348 = vmul.f32 %v4346, 1.442695
  %v4349 = vpow.pop %v4348
  %v4350 = vmul.f32 %v4347, 1.442695
  %v4351 = vpow.pop %v4350
  %v4352 = vadd.f32 %v4349, 1.0
  %v4353 = vadd.f32 %v4351, 1.0
  %v4354 = vrcp.pop %v4352
  %v4355 = vmul.f32 1.0, %v4354
  %v4356 = vrcp.pop %v4353
  %v4357 = vmul.f32 1.0, %v4356
  %v4358 = vtanh.pop %v4308
  %v4359 = vtanh.pop %v4312
  %v4360 = vxor.u32 %v4309, 2147483648
  %v4361 = vxor.u32 %v4313, 2147483648
  %v4362 = vmul.f32 %v4360, 1.442695
  %v4363 = vpow.pop %v4362
  %v4364 = vmul.f32 %v4361, 1.442695
  %v4365 = vpow.pop %v4364
  %v4366 = vadd.f32 %v4363, 1.0
  %v4367 = vadd.f32 %v4365, 1.0
  %v4368 = vrcp.pop %v4366
  %v4369 = vmul.f32 1.0, %v4368
  %v4370 = vrcp.pop %v4367
  %v4371 = vmul.f32 1.0, %v4370
  %v4372 = vmul.f32 %v4355, %v4113
  %v4373 = vmul.f32 %v4357, %v4114
  %v4374 = vmul.f32 %v4343, %v4358
  %v4375 = vmul.f32 %v4345, %v4359
  %v4376 = vadd.f32 %v4372, %v4374
  %v4377 = vadd.f32 %v4373, %v4375
  %v4378 = vtanh.pop %v4376
  %v4379 = vtanh.pop %v4377
  %v4380 = vmul.f32 %v4369, %v4378
  %v4381 = vmul.f32 %v4371, %v4379
  %v4382 = vxor.u32 %v4326, 2147483648
  %v4383 = vxor.u32 %v4330, 2147483648
  %v4384 = vmul.f32 %v4382, 1.442695
  %v4385 = vpow.pop %v4384
  %v4386 = vmul.f32 %v4383, 1.442695
  %v4387 = vpow.pop %v4386
  %v4388 = vadd.f32 %v4385, 1.0
  %v4389 = vadd.f32 %v4387, 1.0
  %v4390 = vrcp.pop %v4388
  %v4391 = vmul.f32 1.0, %v4390
  %v4392 = vrcp.pop %v4389
  %v4393 = vmul.f32 1.0, %v4392
  %v4394 = vxor.u32 %v4327, 2147483648
  %v4395 = vxor.u32 %v4331, 2147483648
  %v4396 = vmul.f32 %v4394, 1.442695
  %v4397 = vpow.pop %v4396
  %v4398 = vmul.f32 %v4395, 1.442695
  %v4399 = vpow.pop %v4398
  %v4400 = vadd.f32 %v4397, 1.0
  %v4401 = vadd.f32 %v4399, 1.0
  %v4402 = vrcp.pop %v4400
  %v4403 = vmul.f32 1.0, %v4402
  %v4404 = vrcp.pop %v4401
  %v4405 = vmul.f32 1.0, %v4404
  %v4406 = vtanh.pop %v4328
  %v4407 = vtanh.pop %v4332
  %v4408 = vxor.u32 %v4329, 2147483648
  %v4409 = vxor.u32 %v4333, 2147483648
  %v4410 = vmul.f32 %v4408, 1.442695
  %v4411 = vpow.pop %v4410
  %v4412 = vmul.f32 %v4409, 1.442695
  %v4413 = vpow.pop %v4412
  %v4414 = vadd.f32 %v4411, 1.0
  %v4415 = vadd.f32 %v4413, 1.0
  %v4416 = vrcp.pop %v4414
  %v4417 = vmul.f32 1.0, %v4416
  %v4418 = vrcp.pop %v4415
  %v4419 = vmul.f32 1.0, %v4418
  %v4420 = vmul.f32 %v4403, %v4117
  %v4421 = vmul.f32 %v4405, %v4118
  %v4422 = vmul.f32 %v4391, %v4406
  %v4423 = vmul.f32 %v4393, %v4407
  %v4424 = vadd.f32 %v4420, %v4422
  %v4425 = vadd.f32 %v4421, %v4423
  %v4426 = vtanh.pop %v4424
  %v4427 = vtanh.pop %v4425
  %v4428 = vmul.f32 %v4417, %v4426
  %v4429 = vmul.f32 %v4419, %v4427
  %v4430 = vsel %vm1842, %v4380, 0.0
  %v4431 = vsel %vm1843, %v4381, 0.0
  %v4432 = vpack.c.bf16 %v4431, %v4430
  %v4434 = vunpack.c.l.b16 %v4432
  %v4435 = vunpack.c.h.b16 %v4432
  %v4436 = vpack.c.b16 %v4434, %v4434
  %v4437 = vpack.c.b16 %v4435, %v4435
  %4440 = vst [vmem:[%s1854] sm:$0xf] %v4436
  %4441 = vst [vmem:[%s1854 + $0x8] sm:$0xf] %v4437
  %v4442 = vsel %vm1820, %v4428, 0.0
  %v4443 = vsel %vm1821, %v4429, 0.0
  %v4444 = vpack.c.bf16 %v4443, %v4442
  %v4446 = vunpack.c.l.b16 %v4444
  %v4447 = vunpack.c.h.b16 %v4444
  %v4448 = vpack.c.b16 %v4446, %v4446
  %v4449 = vpack.c.b16 %v4447, %v4447
  %4452 = vst [vmem:[%s6 + $0x4] sm:$0xf] %v4448
  %4453 = vst [vmem:[%s6 + $0xc] sm:$0xf] %v4449
  %v4454 = vsel %vm1842, %v4380, %v4111
  %v4455 = vsel %vm1843, %v4381, %v4112
  %4456 = vst [vmem:[#allocation4] sm:$0xff] %v4454
  %4457 = vst [vmem:[#allocation4 + $0x8] sm:$0xff] %v4455
  %v4458 = vsel %vm1842, %v4376, %v4113
  %v4459 = vsel %vm1843, %v4377, %v4114
  %4460 = vst [vmem:[#allocation5] sm:$0xff] %v4458
  %4461 = vst [vmem:[#allocation5 + $0x8] sm:$0xff] %v4459
  %v4462 = vsel %vm1820, %v4428, %v4115
  %v4463 = vsel %vm1821, %v4429, %v4116
  %4464 = vst [vmem:[#allocation6] sm:$0xff] %v4462
  %4465 = vst [vmem:[#allocation6 + $0x8] sm:$0xff] %v4463
  %v4466 = vsel %vm1820, %v4424, %v4117
  %v4467 = vsel %vm1821, %v4425, %v4118
  %4468 = vst [vmem:[#allocation7] sm:$0xff] %v4466
  %4469 = vst [vmem:[#allocation7 + $0x8] sm:$0xff] %v4467
  // Predicated region
  $region26: #{bilstm_forward.1} parent=0 // pred_check
    _
  $region27: #{bilstm_forward.1} parent=0 // pred_check_branch
    %4471 = sbr.rel (0) target = $region29
  $region28: #{bilstm_forward.1} parent=0 // pred_region
    _
  $region29: #{bilstm_forward.1} parent=0 // pred_fallthru
    _
  // Predicated region
  $region30: #{bilstm_forward.1} parent=0 // pred_check
    _
  $region31: #{bilstm_forward.1} parent=0 // pred_check_branch
    %4473 = sbr.rel (0) target = $region33
  $region32: #{bilstm_forward.1} parent=0 // pred_region
    _
  $region33: #{bilstm_forward.1} parent=0 // pred_fallthru
    _

</llo_original>
